<compile_context>
chip_gen: v6e
topology: v6e:2x2x1
jax: 0.10.0
libtpu: 0.0.40
codegen_flags: <defaults>
</compile_context>

<pallas_src>
import jax
import jax.numpy as jnp
from jax.experimental import pallas as pl
from jax.experimental.pallas import tpu as pltpu

K_SIZES = (5, 9, 13)   # SPP kernel sizes (module default); realized as a 5-5-5 cascade
STAGE_K = 5
PAD = STAGE_K // 2     # halo needed per cascade stage


def spp_kernel(x_ref, o_ref, src_ref, mh_ref):
    """One (image, channel-tile) block, channels on lanes.

    x_ref:   (H, W, TC)            input tile
    o_ref:   (4, H, W, TC)         [identity, pool5, pool9, pool13]
    src_ref: (H + 2*PAD, W, TC)    stage input with -inf rows as H halo
    mh_ref:  (H, W + 2*PAD, TC)    row-pass result with -inf cols as W halo
    """
    H, W, TC = x_ref.shape
    dtype = x_ref.dtype

    x = x_ref[...]
    o_ref[0] = x                                  # identity branch

    # Initialise only the tiny halo strips (never the full buffers); the centre
    # regions are always overwritten below.  Re-done every block so the kernel
    # stays correct under megacore grid sharding (per-core scratch).
    src_ref[0:PAD, :, :] = jnp.full((PAD, W, TC), -jnp.inf, dtype)
    src_ref[H + PAD:H + 2 * PAD, :, :] = jnp.full((PAD, W, TC), -jnp.inf, dtype)
    mh_ref[:, 0:PAD, :] = jnp.full((H, PAD, TC), -jnp.inf, dtype)
    mh_ref[:, W + PAD:W + 2 * PAD, :] = jnp.full((H, PAD, TC), -jnp.inf, dtype)

    src_ref[PAD:PAD + H, :, :] = x                # stage-0 input

    for stage in range(3):                        # 5, 5∘5 (=9), 5∘5∘5 (=13) -- exact
        # Row pass: H shifts are leading-dim address offsets on src_ref.
        m = src_ref[0:H, :, :]
        for dh in range(1, STAGE_K):
            m = jnp.maximum(m, src_ref[dh:dh + H, :, :])
        mh_ref[:, PAD:PAD + W, :] = m             # W halo columns stay -inf

        # Column pass: W shifts are sublane offsets read back from mh_ref.
        y = mh_ref[:, 0:W, :]
        for dw in range(1, STAGE_K):
            y = jnp.maximum(y, mh_ref[:, dw:dw + W, :])

        o_ref[stage + 1] = y
        if stage < 2:
            # Feed the cascade: re-centre src (the -inf H-halo rows are untouched).
            src_ref[PAD:PAD + H, :, :] = y


def _footprint_bytes(H, W, tc, itemsize):
    in_blk = H * W * tc                      # double-buffered by the pipeline
    out_blk = 4 * H * W * tc                 # double-buffered by the pipeline
    scratch = (H + 2 * PAD) * W * tc + H * (W + 2 * PAD) * tc
    return itemsize * (2 * in_blk + 2 * out_blk + scratch)


def _pick_channel_tile(N, C, H, W, itemsize, budget_bytes):
    """Largest channel tile (C itself, or a multiple of 128 dividing C) that fits
    the VMEM budget; among fitting tiles prefer one that yields >= 2 grid points
    so both v7x TensorCores get work."""
    cands = [C]
    if C % 128 == 0:
        cands += [tc for tc in range(C - 128, 0, -128) if C % tc == 0]
    cands = sorted(set(cands), reverse=True)

    fitting = [tc for tc in cands if _footprint_bytes(H, W, tc, itemsize) <= budget_bytes]
    if not fitting:
        # TODO(synk): add H tiling (overlapping halo blocks) for very large feature maps.
        return cands[-1]
    for tc in fitting:
        if N * (C // tc) >= 2:
            return tc
    return fitting[0]


def _vmem_capacity_and_limits():
    """(physical_vmem, tile_budget, vmem_limit) tuned per TPU generation."""
    cap = None
    try:
        info = pltpu.get_tpu_info()
        cap = getattr(info, "vmem_capacity_bytes", None)
    except Exception:
        cap = None
    if not cap:
        cap = 64 * 2 ** 20            # conservative fallback (v7x per-core VMEM)
    budget = int(cap * 0.40)          # ~25 MiB on v7x, ~51 MiB on v5e/v6e
    limit = min(int(cap * 0.75), 96 * 2 ** 20)
    return cap, budget, limit


def spp(x):
    """x: (N, C, H, W) -> (N, 4*C, H, W), matching SPP.forward with k=(5, 9, 13)."""
    N, C, H, W = x.shape
    dtype = x.dtype
    itemsize = jnp.dtype(dtype).itemsize

    cap, budget, vmem_limit = _vmem_capacity_and_limits()
    TC = _pick_channel_tile(N, C, H, W, itemsize, budget)
    # TODO(synk): for C < 128, fold W onto lanes to avoid idle lanes (the smoke
    # test below uses C=4; real SPP feature maps have C >= 512 so C-on-lanes is dense).
    fp = _footprint_bytes(H, W, TC, itemsize)
    vmem_limit = int(min(cap, max(vmem_limit, int(fp * 1.25))))

    # Channels on lanes for the kernel (relayout stays in XLA; see header comment).
    xt = jnp.transpose(x, (0, 2, 3, 1))          # (N, H, W, C)

    out = pl.pallas_call(
        spp_kernel,
        out_shape=jax.ShapeDtypeStruct((N, 4, H, W, C), dtype),
        grid=(N, C // TC),
        in_specs=[pl.BlockSpec((None, H, W, TC), lambda n, c: (n, 0, 0, c))],
        out_specs=pl.BlockSpec((None, 4, H, W, TC), lambda n, c: (n, 0, 0, 0, c)),
        scratch_shapes=[
            pltpu.VMEM((H + 2 * PAD, W, TC), dtype),   # src: stage input + H halo
            pltpu.VMEM((H, W + 2 * PAD, TC), dtype),   # mh : row-pass result + W halo
        ],
        compiler_params=pltpu.CompilerParams(
            dimension_semantics=("parallel", "parallel"),
            vmem_limit_bytes=vmem_limit),
    )(xt)

    # (N, 4, H, W, C) -> (N, 4, C, H, W) -> free contiguous reshape to (N, 4C, H, W).
    return jnp.transpose(out, (0, 1, 4, 2, 3)).reshape(N, 4 * C, H, W)


def spp_reference(x):
    """Plain-JAX reference (reduce_window) for verification."""
    pools = [x]
    for k in K_SIZES:
        p = k // 2
        pools.append(
            jax.lax.reduce_window(
                x,
                -jnp.inf,
                jax.lax.max,
                window_dimensions=(1, 1, k, k),
                window_strides=(1, 1, 1, 1),
                padding=((0, 0), (0, 0), (p, p), (p, p)),
            )
        )
    return jnp.concatenate(pools, axis=1)


if __name__ == "__main__":
    key = jax.random.PRNGKey(0)
    x = jax.random.normal(key, (2, 4, 16, 16), dtype=jnp.float32)

    spp_fn = jax.jit(spp)
    y = jax.block_until_ready(spp_fn(x))
    y_ref = jax.block_until_ready(spp_reference(x))

    assert y.shape == (2, 16, 16, 16), y.shape
    assert jnp.allclose(y, y_ref), "mismatch vs reference"
    print("KERNEL_OK")
</pallas_src>

<mosaic_0001>
module attributes {stable_mosaic.version = 11 : i64} {
  func.func @spp_kernel(%arg0: i32, %arg1: i32, %arg2: memref<1x16x16x4xf32, #tpu.memory_space<vmem>>, %arg3: memref<1x4x16x16x4xf32, #tpu.memory_space<vmem>>, %arg4: memref<20x16x4xf32, #tpu.memory_space<vmem>>, %arg5: memref<16x20x4xf32, #tpu.memory_space<vmem>>) attributes {dimension_semantics = [#tpu.dimension_semantics<parallel>, #tpu.dimension_semantics<parallel>], iteration_bounds = array<i64: 2, 1>, scalar_prefetch = 0 : i64, scratch_operands = 2 : i64, tpu.core_type = #tpu.core_type<tc>, window_params = [{transform_indices = @transform_0, window_bounds = array<i64: 1, 16, 16, 4>}, {transform_indices = @transform_1, window_bounds = array<i64: 1, 4, 16, 16, 4>}]} {
    %c0 = arith.constant 0 : index
    %c0_0 = arith.constant 0 : index
    %c0_1 = arith.constant 0 : index
    %c0_2 = arith.constant 0 : index
    %0 = vector.load %arg2[%c0, %c0_0, %c0_1, %c0_2] : memref<1x16x16x4xf32, #tpu.memory_space<vmem>>, vector<1x16x16x4xf32>
    %1 = vector.shape_cast %0 : vector<1x16x16x4xf32> to vector<16x16x4xf32>
    %c0_3 = arith.constant 0 : index
    %c0_4 = arith.constant 0 : index
    %c0_5 = arith.constant 0 : index
    %c0_6 = arith.constant 0 : index
    %c0_7 = arith.constant 0 : index
    %2 = vector.load %arg3[%c0_3, %c0_4, %c0_5, %c0_6, %c0_7] : memref<1x4x16x16x4xf32, #tpu.memory_space<vmem>>, vector<1x1x16x16x4xf32>
    %3 = vector.shape_cast %2 : vector<1x1x16x16x4xf32> to vector<16x16x4xf32>
    %4 = vector.shape_cast %1 : vector<16x16x4xf32> to vector<1x1x16x16x4xf32>
    tpu.vector_store %arg3[%c0_3, %c0_4, %c0_5, %c0_6, %c0_7], %4 {strides = array<i32>} : memref<1x4x16x16x4xf32, #tpu.memory_space<vmem>>, vector<1x1x16x16x4xf32>,
    %cst = arith.constant 0xFF800000 : f32
    %5 = vector.broadcast %cst : f32 to vector<2x16x4xf32>
    %c0_8 = arith.constant 0 : index
    %c0_9 = arith.constant 0 : index
    %c0_10 = arith.constant 0 : index
    %6 = vector.load %arg4[%c0_8, %c0_9, %c0_10] : memref<20x16x4xf32, #tpu.memory_space<vmem>>, vector<2x16x4xf32>
    tpu.vector_store %arg4[%c0_8, %c0_9, %c0_10], %5 {strides = array<i32>} : memref<20x16x4xf32, #tpu.memory_space<vmem>>, vector<2x16x4xf32>,
    %cst_11 = arith.constant 0xFF800000 : f32
    %7 = vector.broadcast %cst_11 : f32 to vector<2x16x4xf32>
    %c18 = arith.constant 18 : index
    %c0_12 = arith.constant 0 : index
    %c0_13 = arith.constant 0 : index
    %8 = vector.load %arg4[%c18, %c0_12, %c0_13] : memref<20x16x4xf32, #tpu.memory_space<vmem>>, vector<2x16x4xf32>
    tpu.vector_store %arg4[%c18, %c0_12, %c0_13], %7 {strides = array<i32>} : memref<20x16x4xf32, #tpu.memory_space<vmem>>, vector<2x16x4xf32>,
    %cst_14 = arith.constant 0xFF800000 : f32
    %9 = vector.broadcast %cst_14 : f32 to vector<16x2x4xf32>
    %c0_15 = arith.constant 0 : index
    %c0_16 = arith.constant 0 : index
    %c0_17 = arith.constant 0 : index
    %10 = vector.load %arg5[%c0_15, %c0_16, %c0_17] : memref<16x20x4xf32, #tpu.memory_space<vmem>>, vector<16x2x4xf32>
    tpu.vector_store %arg5[%c0_15, %c0_16, %c0_17], %9 {strides = array<i32>} : memref<16x20x4xf32, #tpu.memory_space<vmem>>, vector<16x2x4xf32>,
    %cst_18 = arith.constant 0xFF800000 : f32
    %11 = vector.broadcast %cst_18 : f32 to vector<16x2x4xf32>
    %c0_19 = arith.constant 0 : index
    %c18_20 = arith.constant 18 : index
    %c0_21 = arith.constant 0 : index
    %12 = vector.load %arg5[%c0_19, %c18_20, %c0_21] : memref<16x20x4xf32, #tpu.memory_space<vmem>>, vector<16x2x4xf32>
    tpu.vector_store %arg5[%c0_19, %c18_20, %c0_21], %11 {strides = array<i32>} : memref<16x20x4xf32, #tpu.memory_space<vmem>>, vector<16x2x4xf32>,
    %c2 = arith.constant 2 : index
    %c0_22 = arith.constant 0 : index
    %c0_23 = arith.constant 0 : index
    %13 = vector.load %arg4[%c2, %c0_22, %c0_23] : memref<20x16x4xf32, #tpu.memory_space<vmem>>, vector<16x16x4xf32>
    tpu.vector_store %arg4[%c2, %c0_22, %c0_23], %1 {strides = array<i32>} : memref<20x16x4xf32, #tpu.memory_space<vmem>>, vector<16x16x4xf32>,
    %c0_24 = arith.constant 0 : index
    %c0_25 = arith.constant 0 : index
    %c0_26 = arith.constant 0 : index
    %14 = vector.load %arg4[%c0_24, %c0_25, %c0_26] : memref<20x16x4xf32, #tpu.memory_space<vmem>>, vector<16x16x4xf32>
    %c1 = arith.constant 1 : index
    %c0_27 = arith.constant 0 : index
    %c0_28 = arith.constant 0 : index
    %15 = vector.load %arg4[%c1, %c0_27, %c0_28] : memref<20x16x4xf32, #tpu.memory_space<vmem>>, vector<16x16x4xf32>
    %16 = arith.maximumf %14, %15 : vector<16x16x4xf32>
    %c2_29 = arith.constant 2 : index
    %c0_30 = arith.constant 0 : index
    %c0_31 = arith.constant 0 : index
    %17 = vector.load %arg4[%c2_29, %c0_30, %c0_31] : memref<20x16x4xf32, #tpu.memory_space<vmem>>, vector<16x16x4xf32>
    %18 = arith.maximumf %16, %17 : vector<16x16x4xf32>
    %c3 = arith.constant 3 : index
    %c0_32 = arith.constant 0 : index
    %c0_33 = arith.constant 0 : index
    %19 = vector.load %arg4[%c3, %c0_32, %c0_33] : memref<20x16x4xf32, #tpu.memory_space<vmem>>, vector<16x16x4xf32>
    %20 = arith.maximumf %18, %19 : vector<16x16x4xf32>
    %c4 = arith.constant 4 : index
    %c0_34 = arith.constant 0 : index
    %c0_35 = arith.constant 0 : index
    %21 = vector.load %arg4[%c4, %c0_34, %c0_35] : memref<20x16x4xf32, #tpu.memory_space<vmem>>, vector<16x16x4xf32>
    %22 = arith.maximumf %20, %21 : vector<16x16x4xf32>
    %c0_36 = arith.constant 0 : index
    %c2_37 = arith.constant 2 : index
    %c0_38 = arith.constant 0 : index
    %23 = vector.load %arg5[%c0_36, %c2_37, %c0_38] : memref<16x20x4xf32, #tpu.memory_space<vmem>>, vector<16x16x4xf32>
    tpu.vector_store %arg5[%c0_36, %c2_37, %c0_38], %22 {strides = array<i32>} : memref<16x20x4xf32, #tpu.memory_space<vmem>>, vector<16x16x4xf32>,
    %c0_39 = arith.constant 0 : index
    %c0_40 = arith.constant 0 : index
    %c0_41 = arith.constant 0 : index
    %24 = vector.load %arg5[%c0_39, %c0_40, %c0_41] : memref<16x20x4xf32, #tpu.memory_space<vmem>>, vector<16x16x4xf32>
    %c0_42 = arith.constant 0 : index
    %c1_43 = arith.constant 1 : index
    %c0_44 = arith.constant 0 : index
    %25 = vector.load %arg5[%c0_42, %c1_43, %c0_44] : memref<16x20x4xf32, #tpu.memory_space<vmem>>, vector<16x16x4xf32>
    %26 = arith.maximumf %24, %25 : vector<16x16x4xf32>
    %c0_45 = arith.constant 0 : index
    %c2_46 = arith.constant 2 : index
    %c0_47 = arith.constant 0 : index
    %27 = vector.load %arg5[%c0_45, %c2_46, %c0_47] : memref<16x20x4xf32, #tpu.memory_space<vmem>>, vector<16x16x4xf32>
    %28 = arith.maximumf %26, %27 : vector<16x16x4xf32>
    %c0_48 = arith.constant 0 : index
    %c3_49 = arith.constant 3 : index
    %c0_50 = arith.constant 0 : index
    %29 = vector.load %arg5[%c0_48, %c3_49, %c0_50] : memref<16x20x4xf32, #tpu.memory_space<vmem>>, vector<16x16x4xf32>
    %30 = arith.maximumf %28, %29 : vector<16x16x4xf32>
    %c0_51 = arith.constant 0 : index
    %c4_52 = arith.constant 4 : index
    %c0_53 = arith.constant 0 : index
    %31 = vector.load %arg5[%c0_51, %c4_52, %c0_53] : memref<16x20x4xf32, #tpu.memory_space<vmem>>, vector<16x16x4xf32>
    %32 = arith.maximumf %30, %31 : vector<16x16x4xf32>
    %c0_54 = arith.constant 0 : index
    %c1_55 = arith.constant 1 : index
    %c0_56 = arith.constant 0 : index
    %c0_57 = arith.constant 0 : index
    %c0_58 = arith.constant 0 : index
    %33 = vector.load %arg3[%c0_54, %c1_55, %c0_56, %c0_57, %c0_58] : memref<1x4x16x16x4xf32, #tpu.memory_space<vmem>>, vector<1x1x16x16x4xf32>
    %34 = vector.shape_cast %33 : vector<1x1x16x16x4xf32> to vector<16x16x4xf32>
    %35 = vector.shape_cast %32 : vector<16x16x4xf32> to vector<1x1x16x16x4xf32>
    tpu.vector_store %arg3[%c0_54, %c1_55, %c0_56, %c0_57, %c0_58], %35 {strides = array<i32>} : memref<1x4x16x16x4xf32, #tpu.memory_space<vmem>>, vector<1x1x16x16x4xf32>,
    %c2_59 = arith.constant 2 : index
    %c0_60 = arith.constant 0 : index
    %c0_61 = arith.constant 0 : index
    %36 = vector.load %arg4[%c2_59, %c0_60, %c0_61] : memref<20x16x4xf32, #tpu.memory_space<vmem>>, vector<16x16x4xf32>
    tpu.vector_store %arg4[%c2_59, %c0_60, %c0_61], %32 {strides = array<i32>} : memref<20x16x4xf32, #tpu.memory_space<vmem>>, vector<16x16x4xf32>,
    %c0_62 = arith.constant 0 : index
    %c0_63 = arith.constant 0 : index
    %c0_64 = arith.constant 0 : index
    %37 = vector.load %arg4[%c0_62, %c0_63, %c0_64] : memref<20x16x4xf32, #tpu.memory_space<vmem>>, vector<16x16x4xf32>
    %c1_65 = arith.constant 1 : index
    %c0_66 = arith.constant 0 : index
    %c0_67 = arith.constant 0 : index
    %38 = vector.load %arg4[%c1_65, %c0_66, %c0_67] : memref<20x16x4xf32, #tpu.memory_space<vmem>>, vector<16x16x4xf32>
    %39 = arith.maximumf %37, %38 : vector<16x16x4xf32>
    %c2_68 = arith.constant 2 : index
    %c0_69 = arith.constant 0 : index
    %c0_70 = arith.constant 0 : index
    %40 = vector.load %arg4[%c2_68, %c0_69, %c0_70] : memref<20x16x4xf32, #tpu.memory_space<vmem>>, vector<16x16x4xf32>
    %41 = arith.maximumf %39, %40 : vector<16x16x4xf32>
    %c3_71 = arith.constant 3 : index
    %c0_72 = arith.constant 0 : index
    %c0_73 = arith.constant 0 : index
    %42 = vector.load %arg4[%c3_71, %c0_72, %c0_73] : memref<20x16x4xf32, #tpu.memory_space<vmem>>, vector<16x16x4xf32>
    %43 = arith.maximumf %41, %42 : vector<16x16x4xf32>
    %c4_74 = arith.constant 4 : index
    %c0_75 = arith.constant 0 : index
    %c0_76 = arith.constant 0 : index
    %44 = vector.load %arg4[%c4_74, %c0_75, %c0_76] : memref<20x16x4xf32, #tpu.memory_space<vmem>>, vector<16x16x4xf32>
    %45 = arith.maximumf %43, %44 : vector<16x16x4xf32>
    %c0_77 = arith.constant 0 : index
    %c2_78 = arith.constant 2 : index
    %c0_79 = arith.constant 0 : index
    %46 = vector.load %arg5[%c0_77, %c2_78, %c0_79] : memref<16x20x4xf32, #tpu.memory_space<vmem>>, vector<16x16x4xf32>
    tpu.vector_store %arg5[%c0_77, %c2_78, %c0_79], %45 {strides = array<i32>} : memref<16x20x4xf32, #tpu.memory_space<vmem>>, vector<16x16x4xf32>,
    %c0_80 = arith.constant 0 : index
    %c0_81 = arith.constant 0 : index
    %c0_82 = arith.constant 0 : index
    %47 = vector.load %arg5[%c0_80, %c0_81, %c0_82] : memref<16x20x4xf32, #tpu.memory_space<vmem>>, vector<16x16x4xf32>
    %c0_83 = arith.constant 0 : index
    %c1_84 = arith.constant 1 : index
    %c0_85 = arith.constant 0 : index
    %48 = vector.load %arg5[%c0_83, %c1_84, %c0_85] : memref<16x20x4xf32, #tpu.memory_space<vmem>>, vector<16x16x4xf32>
    %49 = arith.maximumf %47, %48 : vector<16x16x4xf32>
    %c0_86 = arith.constant 0 : index
    %c2_87 = arith.constant 2 : index
    %c0_88 = arith.constant 0 : index
    %50 = vector.load %arg5[%c0_86, %c2_87, %c0_88] : memref<16x20x4xf32, #tpu.memory_space<vmem>>, vector<16x16x4xf32>
    %51 = arith.maximumf %49, %50 : vector<16x16x4xf32>
    %c0_89 = arith.constant 0 : index
    %c3_90 = arith.constant 3 : index
    %c0_91 = arith.constant 0 : index
    %52 = vector.load %arg5[%c0_89, %c3_90, %c0_91] : memref<16x20x4xf32, #tpu.memory_space<vmem>>, vector<16x16x4xf32>
    %53 = arith.maximumf %51, %52 : vector<16x16x4xf32>
    %c0_92 = arith.constant 0 : index
    %c4_93 = arith.constant 4 : index
    %c0_94 = arith.constant 0 : index
    %54 = vector.load %arg5[%c0_92, %c4_93, %c0_94] : memref<16x20x4xf32, #tpu.memory_space<vmem>>, vector<16x16x4xf32>
    %55 = arith.maximumf %53, %54 : vector<16x16x4xf32>
    %c0_95 = arith.constant 0 : index
    %c2_96 = arith.constant 2 : index
    %c0_97 = arith.constant 0 : index
    %c0_98 = arith.constant 0 : index
    %c0_99 = arith.constant 0 : index
    %56 = vector.load %arg3[%c0_95, %c2_96, %c0_97, %c0_98, %c0_99] : memref<1x4x16x16x4xf32, #tpu.memory_space<vmem>>, vector<1x1x16x16x4xf32>
    %57 = vector.shape_cast %56 : vector<1x1x16x16x4xf32> to vector<16x16x4xf32>
    %58 = vector.shape_cast %55 : vector<16x16x4xf32> to vector<1x1x16x16x4xf32>
    tpu.vector_store %arg3[%c0_95, %c2_96, %c0_97, %c0_98, %c0_99], %58 {strides = array<i32>} : memref<1x4x16x16x4xf32, #tpu.memory_space<vmem>>, vector<1x1x16x16x4xf32>,
    %c2_100 = arith.constant 2 : index
    %c0_101 = arith.constant 0 : index
    %c0_102 = arith.constant 0 : index
    %59 = vector.load %arg4[%c2_100, %c0_101, %c0_102] : memref<20x16x4xf32, #tpu.memory_space<vmem>>, vector<16x16x4xf32>
    tpu.vector_store %arg4[%c2_100, %c0_101, %c0_102], %55 {strides = array<i32>} : memref<20x16x4xf32, #tpu.memory_space<vmem>>, vector<16x16x4xf32>,
    %c0_103 = arith.constant 0 : index
    %c0_104 = arith.constant 0 : index
    %c0_105 = arith.constant 0 : index
    %60 = vector.load %arg4[%c0_103, %c0_104, %c0_105] : memref<20x16x4xf32, #tpu.memory_space<vmem>>, vector<16x16x4xf32>
    %c1_106 = arith.constant 1 : index
    %c0_107 = arith.constant 0 : index
    %c0_108 = arith.constant 0 : index
    %61 = vector.load %arg4[%c1_106, %c0_107, %c0_108] : memref<20x16x4xf32, #tpu.memory_space<vmem>>, vector<16x16x4xf32>
    %62 = arith.maximumf %60, %61 : vector<16x16x4xf32>
    %c2_109 = arith.constant 2 : index
    %c0_110 = arith.constant 0 : index
    %c0_111 = arith.constant 0 : index
    %63 = vector.load %arg4[%c2_109, %c0_110, %c0_111] : memref<20x16x4xf32, #tpu.memory_space<vmem>>, vector<16x16x4xf32>
    %64 = arith.maximumf %62, %63 : vector<16x16x4xf32>
    %c3_112 = arith.constant 3 : index
    %c0_113 = arith.constant 0 : index
    %c0_114 = arith.constant 0 : index
    %65 = vector.load %arg4[%c3_112, %c0_113, %c0_114] : memref<20x16x4xf32, #tpu.memory_space<vmem>>, vector<16x16x4xf32>
    %66 = arith.maximumf %64, %65 : vector<16x16x4xf32>
    %c4_115 = arith.constant 4 : index
    %c0_116 = arith.constant 0 : index
    %c0_117 = arith.constant 0 : index
    %67 = vector.load %arg4[%c4_115, %c0_116, %c0_117] : memref<20x16x4xf32, #tpu.memory_space<vmem>>, vector<16x16x4xf32>
    %68 = arith.maximumf %66, %67 : vector<16x16x4xf32>
    %c0_118 = arith.constant 0 : index
    %c2_119 = arith.constant 2 : index
    %c0_120 = arith.constant 0 : index
    %69 = vector.load %arg5[%c0_118, %c2_119, %c0_120] : memref<16x20x4xf32, #tpu.memory_space<vmem>>, vector<16x16x4xf32>
    tpu.vector_store %arg5[%c0_118, %c2_119, %c0_120], %68 {strides = array<i32>} : memref<16x20x4xf32, #tpu.memory_space<vmem>>, vector<16x16x4xf32>,
    %c0_121 = arith.constant 0 : index
    %c0_122 = arith.constant 0 : index
    %c0_123 = arith.constant 0 : index
    %70 = vector.load %arg5[%c0_121, %c0_122, %c0_123] : memref<16x20x4xf32, #tpu.memory_space<vmem>>, vector<16x16x4xf32>
    %c0_124 = arith.constant 0 : index
    %c1_125 = arith.constant 1 : index
    %c0_126 = arith.constant 0 : index
    %71 = vector.load %arg5[%c0_124, %c1_125, %c0_126] : memref<16x20x4xf32, #tpu.memory_space<vmem>>, vector<16x16x4xf32>
    %72 = arith.maximumf %70, %71 : vector<16x16x4xf32>
    %c0_127 = arith.constant 0 : index
    %c2_128 = arith.constant 2 : index
    %c0_129 = arith.constant 0 : index
    %73 = vector.load %arg5[%c0_127, %c2_128, %c0_129] : memref<16x20x4xf32, #tpu.memory_space<vmem>>, vector<16x16x4xf32>
    %74 = arith.maximumf %72, %73 : vector<16x16x4xf32>
    %c0_130 = arith.constant 0 : index
    %c3_131 = arith.constant 3 : index
    %c0_132 = arith.constant 0 : index
    %75 = vector.load %arg5[%c0_130, %c3_131, %c0_132] : memref<16x20x4xf32, #tpu.memory_space<vmem>>, vector<16x16x4xf32>
    %76 = arith.maximumf %74, %75 : vector<16x16x4xf32>
    %c0_133 = arith.constant 0 : index
    %c4_134 = arith.constant 4 : index
    %c0_135 = arith.constant 0 : index
    %77 = vector.load %arg5[%c0_133, %c4_134, %c0_135] : memref<16x20x4xf32, #tpu.memory_space<vmem>>, vector<16x16x4xf32>
    %78 = arith.maximumf %76, %77 : vector<16x16x4xf32>
    %c0_136 = arith.constant 0 : index
    %c3_137 = arith.constant 3 : index
    %c0_138 = arith.constant 0 : index
    %c0_139 = arith.constant 0 : index
    %c0_140 = arith.constant 0 : index
    %79 = vector.load %arg3[%c0_136, %c3_137, %c0_138, %c0_139, %c0_140] : memref<1x4x16x16x4xf32, #tpu.memory_space<vmem>>, vector<1x1x16x16x4xf32>
    %80 = vector.shape_cast %79 : vector<1x1x16x16x4xf32> to vector<16x16x4xf32>
    %81 = vector.shape_cast %78 : vector<16x16x4xf32> to vector<1x1x16x16x4xf32>
    tpu.vector_store %arg3[%c0_136, %c3_137, %c0_138, %c0_139, %c0_140], %81 {strides = array<i32>} : memref<1x4x16x16x4xf32, #tpu.memory_space<vmem>>, vector<1x1x16x16x4xf32>,
    return
  }
  func.func @transform_0(%arg0: i32, %arg1: i32) -> (i32, i32, i32, i32) {
    %c0_i32 = arith.constant 0 : i32
    %c0_i32_0 = arith.constant 0 : i32
    %c0_i32_1 = arith.constant 0 : i32
    return %arg0, %c0_i32, %c0_i32_0, %arg1 : i32, i32, i32, i32
  }
  func.func @transform_1(%arg0: i32, %arg1: i32) -> (i32, i32, i32, i32, i32) {
    %c0_i32 = arith.constant 0 : i32
    %c0_i32_0 = arith.constant 0 : i32
    %c0_i32_1 = arith.constant 0 : i32
    %c0_i32_2 = arith.constant 0 : i32
    return %arg0, %c0_i32, %c0_i32_0, %c0_i32_1, %arg1 : i32, i32, i32, i32, i32
  }
}

</mosaic_0001>

<llo_original>
// kernel: spp.1
$region0: #{spp.1}
  #allocation0 [shape = 'u32[]', space=smem, size = 0x4, offset = 0x4, fixed_abs, tag = 'smem constant byte address 0x4 - core index']
  #allocation1 [shape = 'u32[144,128]{1,0:T(1,128)}', space=vmem, size = 0x12000, scoped, tag = 'internal scratch']
  #allocation2 [shape = 'f32[20,16,4]{2,1,0:T(8,128)}', space=vmem, size = 0x28000, scoped, tag = 'scratch operand']
  #allocation3 [shape = 'f32[16,20,4]{2,1,0:T(8,128)}', space=vmem, size = 0x30000, scoped, tag = 'scratch operand']
  %s0 = inlined_call_operand.vmem [shape: f32[2,16,16,4], index: 0, kind: input, shape index: {}]
  %s1 = inlined_call_operand.vmem [shape: f32[2,4,16,16,4], index: 1, kind: output, shape index: {}]
  %s2 = sld [smem:[#allocation0]]
  $region37: #{spp.1} parent=0
    _
  %s4 = ssub.s32 1, %s2
  %s5 = scalar_select 0, %s4, %s2
  loop: start=0, step=1, limit=4
  $region2: #{spp.1} parent=0 // loop_pre_header
    _
  $region3: #{spp.1} parent=0 // loop_header
    %s7 = sphi 0, %s11
    %p8 = scmp.ge.s32.totalorder %s7, 4
    %s14 = sphi 0, %s26
    %s15 = sphi 0, %s22
    %s16 = sphi 0, %s14
    %s17 = sphi 0, %s15
    %s18 = sphi 0, %s16
    %s19 = sphi 0, %s17
    %s31 = sphi 0, %s33
    %s34 = sphi 0, %s31
    %s35 = sphi 0, %s34
    %s51 = sphi 0, %s35
    %s59 = sphi 0, %s61
    %s62 = sphi 0, %s59
    %s63 = sphi 0, %s62
    %s79 = sphi 0, %s63
  $region4: #{spp.1} parent=0 // loop_header_branch
    %10 = sbr.rel (%p8) target = $region8
  $region5: #{spp.1} parent=0 // loop_body
    %s12 = ssub.s32 %s7, 1
    %s13 = ssub.s32 %s7, 2
    %s20 = sadd.s32 1, %s15
    %p21 = scmp.ge.s32.totalorder %s20, 1
    %s22 = scalar_select %p21, 0, %s20
    %s23 = sadd.s32 1, %s14
    %s24 = scalar_select %p21, %s23, %s14
    %p25 = scmp.ge.s32.totalorder %s24, 2
    %s26 = scalar_select %p25, 0, %s24
    %s27 = ssub.s32 %s14, %s26
    %s28 = ssub.s32 %s15, %s22
    %s29 = sor.u32 %s27, %s28
    %p30 = scmp.eq.s32.totalorder %s29, 0
    %s32 = sadd.s32 %s31, 1
    %s33 = scalar_select %p30, %s31, %s32
    %p36 = pneg %p30
    %p37 = scmp.eq.s32.totalorder %s7, 1
    %p38 = por %p36, %p37
    %p39 = scmp.ne.s32.totalorder %s31, %s34
    %p40 = scmp.eq.s32.totalorder %s7, 0
    %p41 = por %p39, %p40
    %p42 = scmp.ne.s32.totalorder %s31, %s34
    %p43 = scmp.eq.s32.totalorder %s12, 1
    %p44 = por %p42, %p43
    %p45 = scmp.ne.s32.totalorder %s34, %s35
    %p46 = scmp.eq.s32.totalorder %s12, 0
    %p47 = por %p45, %p46
    %p48 = scmp.ne.s32.totalorder %s34, %s35
    %p49 = scmp.eq.s32.totalorder %s13, 1
    %p50 = por %p48, %p49
    %p52 = scmp.ne.s32.totalorder %s35, %s51
    %p53 = scmp.eq.s32.totalorder %s13, 0
    %p54 = por %p52, %p53
    %s55 = ssub.s32 %s14, %s26
    %s56 = ssub.s32 %s15, %s22
    %s57 = sor.u32 %s55, %s56
    %p58 = scmp.eq.s32.totalorder %s57, 0
    %s60 = sadd.s32 %s59, 1
    %s61 = scalar_select %p58, %s59, %s60
    %p64 = pneg %p58
    %p65 = scmp.eq.s32.totalorder %s7, 1
    %p66 = por %p64, %p65
    %p67 = scmp.ne.s32.totalorder %s59, %s62
    %p68 = scmp.eq.s32.totalorder %s7, 0
    %p69 = por %p67, %p68
    %p70 = scmp.ne.s32.totalorder %s59, %s62
    %p71 = scmp.eq.s32.totalorder %s12, 1
    %p72 = por %p70, %p71
    %p73 = scmp.ne.s32.totalorder %s62, %s63
    %p74 = scmp.eq.s32.totalorder %s12, 0
    %p75 = por %p73, %p74
    %p76 = scmp.ne.s32.totalorder %s62, %s63
    %p77 = scmp.eq.s32.totalorder %s13, 1
    %p78 = por %p76, %p77
    %p80 = scmp.ne.s32.totalorder %s63, %s79
    %p81 = scmp.eq.s32.totalorder %s13, 0
    %p82 = por %p80, %p81
    %p83 = scmp.le.s32.totalorder 1, %s7
    %p84 = scmp.lt.s32.totalorder %s7, 3
    %p85 = pnand %p83, %p84
    %p86 = pneg %p85
    // Predicated region
    $region9: #{spp.1} parent=5 // pred_check
      _
    $region10: #{spp.1} parent=5 // pred_check_branch
      %88 = sbr.rel (%p85) target = $region12
    $region11: #{spp.1} parent=5 // pred_region
      %s89 = ssub.s32 %s7, 1
    $region12: #{spp.1} parent=5 // pred_fallthru
      _
    %p90 = scmp.lt.s32.totalorder %s7, 2
    // Predicated region
    $region13: #{spp.1} parent=5 // pred_check
      %p91 = pneg %p90
    $region14: #{spp.1} parent=5 // pred_check_branch
      %93 = sbr.rel (%p91) target = $region16
    $region15: #{spp.1} parent=5 // pred_region
      // Predicated region
      $region17: #{spp.1} parent=15 // pred_check
        %p94 = pneg %p41
      $region18: #{spp.1} parent=15 // pred_check_branch
        %96 = sbr.rel (%p94) target = $region20
      $region19: #{spp.1} parent=15 // pred_region
        %p97 = scmp.lt.s32.totalorder %s14, 1
        %s98 = scalar_select %p97, %s14, 1
        %p99 = scmp.lt.s32.totalorder %s15, 0
        %s100 = scalar_select %p99, %s15, 0
        %s101 = smul.addr %s98, 32
        %s102 = sadd.s32 %s100, %s101
        %s103 = smul.addr %s102, 8
        %s104 = scalar_lea.vmem %s0, %s103
      $region20: #{spp.1} parent=15 // pred_fallthru
        _
    $region16: #{spp.1} parent=5 // pred_fallthru
      _
    %p105 = scmp.le.s32.totalorder 1, %s7
    %p106 = scmp.lt.s32.totalorder %s7, 3
    %p107 = pnand %p105, %p106
    %p108 = pneg %p107
    // Predicated region
    $region21: #{spp.1} parent=5 // pred_check
      _
    $region22: #{spp.1} parent=5 // pred_check_branch
      %110 = sbr.rel (%p107) target = $region24
    $region23: #{spp.1} parent=5 // pred_region
      %s111 = ssub.s32 %s7, 1
      %p112 = scmp.lt.s32.totalorder %s16, 1
      %s113 = scalar_select %p112, %s16, 1
      %p114 = scmp.lt.s32.totalorder %s17, 0
      %s115 = scalar_select %p114, %s17, 0
      %s116 = smul.addr %s113, 32
      %s117 = sadd.s32 %s115, %s116
      %s118 = smul.addr %s117, 8
      %s119 = scalar_lea.vmem %s0, %s118
      %p120 = pneg %p47
      %p121 = pneg %p44
      %p122 = pneg %p75
      %p123 = pneg %p72
      %p124 = scmp.lt.s32.totalorder %s16, 1
      %s125 = scalar_select %p124, %s16, 1
      %p126 = scmp.lt.s32.totalorder %s17, 0
      %s127 = scalar_select %p126, %s17, 0
      %s128 = smul.addr %s125, 128
      %s129 = sadd.s32 %s127, %s128
      %s130 = smul.addr %s129, 8
      %s131 = scalar_lea.vmem %s1, %s130
      %p132 = scmp.lt.s32.totalorder %s16, 1
      %s133 = scalar_select %p132, %s16, 1
      %p134 = scmp.lt.s32.totalorder %s17, 0
      %s135 = scalar_select %p134, %s17, 0
      %s136 = smul.addr %s133, 32
      %s137 = sadd.s32 %s135, %s136
      %s138 = smul.addr %s137, 8
      %s139 = scalar_lea.vmem %s0, %s138
      %p140 = scmp.lt.s32.totalorder %s16, 1
      %s141 = scalar_select %p140, %s16, 1
      %p142 = scmp.lt.s32.totalorder %s17, 0
      %s143 = scalar_select %p142, %s17, 0
      %s144 = smul.addr %s141, 128
      %s145 = sadd.s32 %s143, %s144
      %s146 = smul.addr %s145, 8
      %s147 = scalar_lea.vmem %s1, %s146
      %v148 = vld [vmem:[%s139] sm:$0xff]
      %v149 = vld [vmem:[%s139 + $0x8] sm:$0xff]
      %v150 = vld [vmem:[%s139 + $0x10] sm:$0xff]
      %v151 = vld [vmem:[%s139 + $0x18] sm:$0xff]
      %v152 = vld [vmem:[%s139 + $0x20] sm:$0xff]
      %v153 = vld [vmem:[%s139 + $0x28] sm:$0xff]
      %v154 = vld [vmem:[%s139 + $0x30] sm:$0xff]
      %v155 = vld [vmem:[%s139 + $0x38] sm:$0xff]
      %v156 = vld [vmem:[%s139 + $0x40] sm:$0xff]
      %v157 = vld [vmem:[%s139 + $0x48] sm:$0xff]
      %v158 = vld [vmem:[%s139 + $0x50] sm:$0xff]
      %v159 = vld [vmem:[%s139 + $0x58] sm:$0xff]
      %v160 = vld [vmem:[%s139 + $0x60] sm:$0xff]
      %v161 = vld [vmem:[%s139 + $0x68] sm:$0xff]
      %v162 = vld [vmem:[%s139 + $0x70] sm:$0xff]
      %v163 = vld [vmem:[%s139 + $0x78] sm:$0xff]
      %v164 = vld [vmem:[%s139 + $0x80] sm:$0xff]
      %v165 = vld [vmem:[%s139 + $0x88] sm:$0xff]
      %v166 = vld [vmem:[%s139 + $0x90] sm:$0xff]
      %v167 = vld [vmem:[%s139 + $0x98] sm:$0xff]
      %v168 = vld [vmem:[%s139 + $0xa0] sm:$0xff]
      %v169 = vld [vmem:[%s139 + $0xa8] sm:$0xff]
      %v170 = vld [vmem:[%s139 + $0xb0] sm:$0xff]
      %v171 = vld [vmem:[%s139 + $0xb8] sm:$0xff]
      %v172 = vld [vmem:[%s139 + $0xc0] sm:$0xff]
      %v173 = vld [vmem:[%s139 + $0xc8] sm:$0xff]
      %v174 = vld [vmem:[%s139 + $0xd0] sm:$0xff]
      %v175 = vld [vmem:[%s139 + $0xd8] sm:$0xff]
      %v176 = vld [vmem:[%s139 + $0xe0] sm:$0xff]
      %v177 = vld [vmem:[%s139 + $0xe8] sm:$0xff]
      %v178 = vld [vmem:[%s139 + $0xf0] sm:$0xff]
      %v179 = vld [vmem:[%s139 + $0xf8] sm:$0xff]
      %vm180 = vcmask 31744
      %181 = vst.msk [vmem:[%s147] sm:$0xff] %vm180, %v148
      %182 = vst.msk [vmem:[%s147 + $0x8] sm:$0xff] %vm180, %v149
      %183 = vst.msk [vmem:[%s147 + $0x10] sm:$0xff] %vm180, %v150
      %184 = vst.msk [vmem:[%s147 + $0x18] sm:$0xff] %vm180, %v151
      %185 = vst.msk [vmem:[%s147 + $0x20] sm:$0xff] %vm180, %v152
      %186 = vst.msk [vmem:[%s147 + $0x28] sm:$0xff] %vm180, %v153
      %187 = vst.msk [vmem:[%s147 + $0x30] sm:$0xff] %vm180, %v154
      %188 = vst.msk [vmem:[%s147 + $0x38] sm:$0xff] %vm180, %v155
      %189 = vst.msk [vmem:[%s147 + $0x40] sm:$0xff] %vm180, %v156
      %190 = vst.msk [vmem:[%s147 + $0x48] sm:$0xff] %vm180, %v157
      %191 = vst.msk [vmem:[%s147 + $0x50] sm:$0xff] %vm180, %v158
      %192 = vst.msk [vmem:[%s147 + $0x58] sm:$0xff] %vm180, %v159
      %193 = vst.msk [vmem:[%s147 + $0x60] sm:$0xff] %vm180, %v160
      %194 = vst.msk [vmem:[%s147 + $0x68] sm:$0xff] %vm180, %v161
      %195 = vst.msk [vmem:[%s147 + $0x70] sm:$0xff] %vm180, %v162
      %196 = vst.msk [vmem:[%s147 + $0x78] sm:$0xff] %vm180, %v163
      %197 = vst.msk [vmem:[%s147 + $0x80] sm:$0xff] %vm180, %v164
      %198 = vst.msk [vmem:[%s147 + $0x88] sm:$0xff] %vm180, %v165
      %199 = vst.msk [vmem:[%s147 + $0x90] sm:$0xff] %vm180, %v166
      %200 = vst.msk [vmem:[%s147 + $0x98] sm:$0xff] %vm180, %v167
      %201 = vst.msk [vmem:[%s147 + $0xa0] sm:$0xff] %vm180, %v168
      %202 = vst.msk [vmem:[%s147 + $0xa8] sm:$0xff] %vm180, %v169
      %203 = vst.msk [vmem:[%s147 + $0xb0] sm:$0xff] %vm180, %v170
      %204 = vst.msk [vmem:[%s147 + $0xb8] sm:$0xff] %vm180, %v171
      %205 = vst.msk [vmem:[%s147 + $0xc0] sm:$0xff] %vm180, %v172
      %206 = vst.msk [vmem:[%s147 + $0xc8] sm:$0xff] %vm180, %v173
      %207 = vst.msk [vmem:[%s147 + $0xd0] sm:$0xff] %vm180, %v174
      %208 = vst.msk [vmem:[%s147 + $0xd8] sm:$0xff] %vm180, %v175
      %209 = vst.msk [vmem:[%s147 + $0xe0] sm:$0xff] %vm180, %v176
      %210 = vst.msk [vmem:[%s147 + $0xe8] sm:$0xff] %vm180, %v177
      %211 = vst.msk [vmem:[%s147 + $0xf0] sm:$0xff] %vm180, %v178
      %212 = vst.msk [vmem:[%s147 + $0xf8] sm:$0xff] %vm180, %v179
      %213 = vst.msk [vmem:[#allocation2] sm:$0xff] %vm180, -inf
      %214 = vst.msk [vmem:[#allocation2 + $0x8] sm:$0xff] %vm180, -inf
      %215 = vst.msk [vmem:[#allocation2 + $0x10] sm:$0xff] %vm180, -inf
      %216 = vst.msk [vmem:[#allocation2 + $0x18] sm:$0xff] %vm180, -inf
      %s217 = scalar_lea.vmem [#allocation2], 288
      %218 = vst.msk [vmem:[%s217] sm:$0xff] %vm180, -inf
      %219 = vst.msk [vmem:[%s217 + $0x8] sm:$0xff] %vm180, -inf
      %220 = vst.msk [vmem:[%s217 + $0x10] sm:$0xff] %vm180, -inf
      %221 = vst.msk [vmem:[%s217 + $0x18] sm:$0xff] %vm180, -inf
      %vm222 = vcmask 25600
      %223 = vst.msk [vmem:[#allocation3] sm:$0x3] %vm222, -inf
      %224 = vst.msk [vmem:[#allocation3 + $0x18] sm:$0x3] %vm222, -inf
      %225 = vst.msk [vmem:[#allocation3 + $0x30] sm:$0x3] %vm222, -inf
      %226 = vst.msk [vmem:[#allocation3 + $0x48] sm:$0x3] %vm222, -inf
      %227 = vst.msk [vmem:[#allocation3 + $0x60] sm:$0x3] %vm222, -inf
      %228 = vst.msk [vmem:[#allocation3 + $0x78] sm:$0x3] %vm222, -inf
      %229 = vst.msk [vmem:[#allocation3 + $0x90] sm:$0x3] %vm222, -inf
      %230 = vst.msk [vmem:[#allocation3 + $0xa8] sm:$0x3] %vm222, -inf
      %231 = vst.msk [vmem:[#allocation3 + $0xc0] sm:$0x3] %vm222, -inf
      %232 = vst.msk [vmem:[#allocation3 + $0xd8] sm:$0x3] %vm222, -inf
      %233 = vst.msk [vmem:[#allocation3 + $0xf0] sm:$0x3] %vm222, -inf
      %234 = vst.msk [vmem:[#allocation3 + $0x108] sm:$0x3] %vm222, -inf
      %235 = vst.msk [vmem:[#allocation3 + $0x120] sm:$0x3] %vm222, -inf
      %236 = vst.msk [vmem:[#allocation3 + $0x138] sm:$0x3] %vm222, -inf
      %237 = vst.msk [vmem:[#allocation3 + $0x150] sm:$0x3] %vm222, -inf
      %238 = vst.msk [vmem:[#allocation3 + $0x168] sm:$0x3] %vm222, -inf
      %239 = vst.msk [vmem:[#allocation3 + $0x12] sm:$0x3] %vm222, -inf
      %240 = vst.msk [vmem:[#allocation3 + $0x2a] sm:$0x3] %vm222, -inf
      %241 = vst.msk [vmem:[#allocation3 + $0x42] sm:$0x3] %vm222, -inf
      %242 = vst.msk [vmem:[#allocation3 + $0x5a] sm:$0x3] %vm222, -inf
      %243 = vst.msk [vmem:[#allocation3 + $0x72] sm:$0x3] %vm222, -inf
      %244 = vst.msk [vmem:[#allocation3 + $0x8a] sm:$0x3] %vm222, -inf
      %245 = vst.msk [vmem:[#allocation3 + $0xa2] sm:$0x3] %vm222, -inf
      %246 = vst.msk [vmem:[#allocation3 + $0xba] sm:$0x3] %vm222, -inf
      %247 = vst.msk [vmem:[#allocation3 + $0xd2] sm:$0x3] %vm222, -inf
      %248 = vst.msk [vmem:[#allocation3 + $0xea] sm:$0x3] %vm222, -inf
      %249 = vst.msk [vmem:[#allocation3 + $0x102] sm:$0x3] %vm222, -inf
      %250 = vst.msk [vmem:[#allocation3 + $0x11a] sm:$0x3] %vm222, -inf
      %251 = vst.msk [vmem:[#allocation3 + $0x132] sm:$0x3] %vm222, -inf
      %252 = vst.msk [vmem:[#allocation3 + $0x14a] sm:$0x3] %vm222, -inf
      %253 = vst.msk [vmem:[#allocation3 + $0x162] sm:$0x3] %vm222, -inf
      %254 = vst.msk [vmem:[#allocation3 + $0x17a] sm:$0x3] %vm222, -inf
      %s255 = scalar_lea.vmem [#allocation2], 32
      %256 = vst.msk [vmem:[%s255] sm:$0xff] %vm180, %v148
      %257 = vst.msk [vmem:[%s255 + $0x8] sm:$0xff] %vm180, %v149
      %258 = vst.msk [vmem:[%s255 + $0x10] sm:$0xff] %vm180, %v150
      %259 = vst.msk [vmem:[%s255 + $0x18] sm:$0xff] %vm180, %v151
      %260 = vst.msk [vmem:[%s255 + $0x20] sm:$0xff] %vm180, %v152
      %261 = vst.msk [vmem:[%s255 + $0x28] sm:$0xff] %vm180, %v153
      %262 = vst.msk [vmem:[%s255 + $0x30] sm:$0xff] %vm180, %v154
      %263 = vst.msk [vmem:[%s255 + $0x38] sm:$0xff] %vm180, %v155
      %264 = vst.msk [vmem:[%s255 + $0x40] sm:$0xff] %vm180, %v156
      %265 = vst.msk [vmem:[%s255 + $0x48] sm:$0xff] %vm180, %v157
      %266 = vst.msk [vmem:[%s255 + $0x50] sm:$0xff] %vm180, %v158
      %267 = vst.msk [vmem:[%s255 + $0x58] sm:$0xff] %vm180, %v159
      %268 = vst.msk [vmem:[%s255 + $0x60] sm:$0xff] %vm180, %v160
      %269 = vst.msk [vmem:[%s255 + $0x68] sm:$0xff] %vm180, %v161
      %270 = vst.msk [vmem:[%s255 + $0x70] sm:$0xff] %vm180, %v162
      %271 = vst.msk [vmem:[%s255 + $0x78] sm:$0xff] %vm180, %v163
      %272 = vst.msk [vmem:[%s255 + $0x80] sm:$0xff] %vm180, %v164
      %273 = vst.msk [vmem:[%s255 + $0x88] sm:$0xff] %vm180, %v165
      %274 = vst.msk [vmem:[%s255 + $0x90] sm:$0xff] %vm180, %v166
      %275 = vst.msk [vmem:[%s255 + $0x98] sm:$0xff] %vm180, %v167
      %276 = vst.msk [vmem:[%s255 + $0xa0] sm:$0xff] %vm180, %v168
      %277 = vst.msk [vmem:[%s255 + $0xa8] sm:$0xff] %vm180, %v169
      %278 = vst.msk [vmem:[%s255 + $0xb0] sm:$0xff] %vm180, %v170
      %279 = vst.msk [vmem:[%s255 + $0xb8] sm:$0xff] %vm180, %v171
      %280 = vst.msk [vmem:[%s255 + $0xc0] sm:$0xff] %vm180, %v172
      %281 = vst.msk [vmem:[%s255 + $0xc8] sm:$0xff] %vm180, %v173
      %282 = vst.msk [vmem:[%s255 + $0xd0] sm:$0xff] %vm180, %v174
      %283 = vst.msk [vmem:[%s255 + $0xd8] sm:$0xff] %vm180, %v175
      %284 = vst.msk [vmem:[%s255 + $0xe0] sm:$0xff] %vm180, %v176
      %285 = vst.msk [vmem:[%s255 + $0xe8] sm:$0xff] %vm180, %v177
      %286 = vst.msk [vmem:[%s255 + $0xf0] sm:$0xff] %vm180, %v178
      %287 = vst.msk [vmem:[%s255 + $0xf8] sm:$0xff] %vm180, %v179
      %v288 = vld [vmem:[#allocation2] sm:$0xff]
      %v289 = vld [vmem:[#allocation2 + $0x8] sm:$0xff]
      %v290 = vld [vmem:[#allocation2 + $0x10] sm:$0xff]
      %v291 = vld [vmem:[#allocation2 + $0x18] sm:$0xff]
      %v292 = vld [vmem:[#allocation2 + $0x20] sm:$0xff]
      %v293 = vld [vmem:[#allocation2 + $0x28] sm:$0xff]
      %v294 = vld [vmem:[#allocation2 + $0x30] sm:$0xff]
      %v295 = vld [vmem:[#allocation2 + $0x38] sm:$0xff]
      %v296 = vld [vmem:[#allocation2 + $0x40] sm:$0xff]
      %v297 = vld [vmem:[#allocation2 + $0x48] sm:$0xff]
      %v298 = vld [vmem:[#allocation2 + $0x50] sm:$0xff]
      %v299 = vld [vmem:[#allocation2 + $0x58] sm:$0xff]
      %v300 = vld [vmem:[#allocation2 + $0x60] sm:$0xff]
      %v301 = vld [vmem:[#allocation2 + $0x68] sm:$0xff]
      %v302 = vld [vmem:[#allocation2 + $0x70] sm:$0xff]
      %v303 = vld [vmem:[#allocation2 + $0x78] sm:$0xff]
      %v304 = vld [vmem:[#allocation2 + $0x80] sm:$0xff]
      %v305 = vld [vmem:[#allocation2 + $0x88] sm:$0xff]
      %v306 = vld [vmem:[#allocation2 + $0x90] sm:$0xff]
      %v307 = vld [vmem:[#allocation2 + $0x98] sm:$0xff]
      %v308 = vld [vmem:[#allocation2 + $0xa0] sm:$0xff]
      %v309 = vld [vmem:[#allocation2 + $0xa8] sm:$0xff]
      %v310 = vld [vmem:[#allocation2 + $0xb0] sm:$0xff]
      %v311 = vld [vmem:[#allocation2 + $0xb8] sm:$0xff]
      %v312 = vld [vmem:[#allocation2 + $0xc0] sm:$0xff]
      %v313 = vld [vmem:[#allocation2 + $0xc8] sm:$0xff]
      %v314 = vld [vmem:[#allocation2 + $0xd0] sm:$0xff]
      %v315 = vld [vmem:[#allocation2 + $0xd8] sm:$0xff]
      %v316 = vld [vmem:[#allocation2 + $0xe0] sm:$0xff]
      %v317 = vld [vmem:[#allocation2 + $0xe8] sm:$0xff]
      %v318 = vld [vmem:[#allocation2 + $0xf0] sm:$0xff]
      %v319 = vld [vmem:[#allocation2 + $0xf8] sm:$0xff]
      %s320 = scalar_lea.vmem [#allocation2], 16
      %v321 = vld [vmem:[%s320] sm:$0xff]
      %v322 = vld [vmem:[%s320 + $0x8] sm:$0xff]
      %v323 = vld [vmem:[%s320 + $0x10] sm:$0xff]
      %v324 = vld [vmem:[%s320 + $0x18] sm:$0xff]
      %v325 = vld [vmem:[%s320 + $0x20] sm:$0xff]
      %v326 = vld [vmem:[%s320 + $0x28] sm:$0xff]
      %v327 = vld [vmem:[%s320 + $0x30] sm:$0xff]
      %v328 = vld [vmem:[%s320 + $0x38] sm:$0xff]
      %v329 = vld [vmem:[%s320 + $0x40] sm:$0xff]
      %v330 = vld [vmem:[%s320 + $0x48] sm:$0xff]
      %v331 = vld [vmem:[%s320 + $0x50] sm:$0xff]
      %v332 = vld [vmem:[%s320 + $0x58] sm:$0xff]
      %v333 = vld [vmem:[%s320 + $0x60] sm:$0xff]
      %v334 = vld [vmem:[%s320 + $0x68] sm:$0xff]
      %v335 = vld [vmem:[%s320 + $0x70] sm:$0xff]
      %v336 = vld [vmem:[%s320 + $0x78] sm:$0xff]
      %v337 = vld [vmem:[%s320 + $0x80] sm:$0xff]
      %v338 = vld [vmem:[%s320 + $0x88] sm:$0xff]
      %v339 = vld [vmem:[%s320 + $0x90] sm:$0xff]
      %v340 = vld [vmem:[%s320 + $0x98] sm:$0xff]
      %v341 = vld [vmem:[%s320 + $0xa0] sm:$0xff]
      %v342 = vld [vmem:[%s320 + $0xa8] sm:$0xff]
      %v343 = vld [vmem:[%s320 + $0xb0] sm:$0xff]
      %v344 = vld [vmem:[%s320 + $0xb8] sm:$0xff]
      %v345 = vld [vmem:[%s320 + $0xc0] sm:$0xff]
      %v346 = vld [vmem:[%s320 + $0xc8] sm:$0xff]
      %v347 = vld [vmem:[%s320 + $0xd0] sm:$0xff]
      %v348 = vld [vmem:[%s320 + $0xd8] sm:$0xff]
      %v349 = vld [vmem:[%s320 + $0xe0] sm:$0xff]
      %v350 = vld [vmem:[%s320 + $0xe8] sm:$0xff]
      %v351 = vld [vmem:[%s320 + $0xf0] sm:$0xff]
      %v352 = vld [vmem:[%s320 + $0xf8] sm:$0xff]
      %v353 = vmax.f32 %v288, %v321
      %v354 = vmax.f32 %v289, %v322
      %v355 = vmax.f32 %v290, %v323
      %v356 = vmax.f32 %v291, %v324
      %v357 = vmax.f32 %v292, %v325
      %v358 = vmax.f32 %v293, %v326
      %v359 = vmax.f32 %v294, %v327
      %v360 = vmax.f32 %v295, %v328
      %v361 = vmax.f32 %v296, %v329
      %v362 = vmax.f32 %v297, %v330
      %v363 = vmax.f32 %v298, %v331
      %v364 = vmax.f32 %v299, %v332
      %v365 = vmax.f32 %v300, %v333
      %v366 = vmax.f32 %v301, %v334
      %v367 = vmax.f32 %v302, %v335
      %v368 = vmax.f32 %v303, %v336
      %v369 = vmax.f32 %v304, %v337
      %v370 = vmax.f32 %v305, %v338
      %v371 = vmax.f32 %v306, %v339
      %v372 = vmax.f32 %v307, %v340
      %v373 = vmax.f32 %v308, %v341
      %v374 = vmax.f32 %v309, %v342
      %v375 = vmax.f32 %v310, %v343
      %v376 = vmax.f32 %v311, %v344
      %v377 = vmax.f32 %v312, %v345
      %v378 = vmax.f32 %v313, %v346
      %v379 = vmax.f32 %v314, %v347
      %v380 = vmax.f32 %v315, %v348
      %v381 = vmax.f32 %v316, %v349
      %v382 = vmax.f32 %v317, %v350
      %v383 = vmax.f32 %v318, %v351
      %v384 = vmax.f32 %v319, %v352
      %v385 = vld [vmem:[%s255] sm:$0xff]
      %v386 = vld [vmem:[%s255 + $0x8] sm:$0xff]
      %v387 = vld [vmem:[%s255 + $0x10] sm:$0xff]
      %v388 = vld [vmem:[%s255 + $0x18] sm:$0xff]
      %v389 = vld [vmem:[%s255 + $0x20] sm:$0xff]
      %v390 = vld [vmem:[%s255 + $0x28] sm:$0xff]
      %v391 = vld [vmem:[%s255 + $0x30] sm:$0xff]
      %v392 = vld [vmem:[%s255 + $0x38] sm:$0xff]
      %v393 = vld [vmem:[%s255 + $0x40] sm:$0xff]
      %v394 = vld [vmem:[%s255 + $0x48] sm:$0xff]
      %v395 = vld [vmem:[%s255 + $0x50] sm:$0xff]
      %v396 = vld [vmem:[%s255 + $0x58] sm:$0xff]
      %v397 = vld [vmem:[%s255 + $0x60] sm:$0xff]
      %v398 = vld [vmem:[%s255 + $0x68] sm:$0xff]
      %v399 = vld [vmem:[%s255 + $0x70] sm:$0xff]
      %v400 = vld [vmem:[%s255 + $0x78] sm:$0xff]
      %v401 = vld [vmem:[%s255 + $0x80] sm:$0xff]
      %v402 = vld [vmem:[%s255 + $0x88] sm:$0xff]
      %v403 = vld [vmem:[%s255 + $0x90] sm:$0xff]
      %v404 = vld [vmem:[%s255 + $0x98] sm:$0xff]
      %v405 = vld [vmem:[%s255 + $0xa0] sm:$0xff]
      %v406 = vld [vmem:[%s255 + $0xa8] sm:$0xff]
      %v407 = vld [vmem:[%s255 + $0xb0] sm:$0xff]
      %v408 = vld [vmem:[%s255 + $0xb8] sm:$0xff]
      %v409 = vld [vmem:[%s255 + $0xc0] sm:$0xff]
      %v410 = vld [vmem:[%s255 + $0xc8] sm:$0xff]
      %v411 = vld [vmem:[%s255 + $0xd0] sm:$0xff]
      %v412 = vld [vmem:[%s255 + $0xd8] sm:$0xff]
      %v413 = vld [vmem:[%s255 + $0xe0] sm:$0xff]
      %v414 = vld [vmem:[%s255 + $0xe8] sm:$0xff]
      %v415 = vld [vmem:[%s255 + $0xf0] sm:$0xff]
      %v416 = vld [vmem:[%s255 + $0xf8] sm:$0xff]
      %v417 = vmax.f32 %v353, %v385
      %v418 = vmax.f32 %v354, %v386
      %v419 = vmax.f32 %v355, %v387
      %v420 = vmax.f32 %v356, %v388
      %v421 = vmax.f32 %v357, %v389
      %v422 = vmax.f32 %v358, %v390
      %v423 = vmax.f32 %v359, %v391
      %v424 = vmax.f32 %v360, %v392
      %v425 = vmax.f32 %v361, %v393
      %v426 = vmax.f32 %v362, %v394
      %v427 = vmax.f32 %v363, %v395
      %v428 = vmax.f32 %v364, %v396
      %v429 = vmax.f32 %v365, %v397
      %v430 = vmax.f32 %v366, %v398
      %v431 = vmax.f32 %v367, %v399
      %v432 = vmax.f32 %v368, %v400
      %v433 = vmax.f32 %v369, %v401
      %v434 = vmax.f32 %v370, %v402
      %v435 = vmax.f32 %v371, %v403
      %v436 = vmax.f32 %v372, %v404
      %v437 = vmax.f32 %v373, %v405
      %v438 = vmax.f32 %v374, %v406
      %v439 = vmax.f32 %v375, %v407
      %v440 = vmax.f32 %v376, %v408
      %v441 = vmax.f32 %v377, %v409
      %v442 = vmax.f32 %v378, %v410
      %v443 = vmax.f32 %v379, %v411
      %v444 = vmax.f32 %v380, %v412
      %v445 = vmax.f32 %v381, %v413
      %v446 = vmax.f32 %v382, %v414
      %v447 = vmax.f32 %v383, %v415
      %v448 = vmax.f32 %v384, %v416
      %s449 = scalar_lea.vmem [#allocation2], 48
      %v450 = vld [vmem:[%s449] sm:$0xff]
      %v451 = vld [vmem:[%s449 + $0x8] sm:$0xff]
      %v452 = vld [vmem:[%s449 + $0x10] sm:$0xff]
      %v453 = vld [vmem:[%s449 + $0x18] sm:$0xff]
      %v454 = vld [vmem:[%s449 + $0x20] sm:$0xff]
      %v455 = vld [vmem:[%s449 + $0x28] sm:$0xff]
      %v456 = vld [vmem:[%s449 + $0x30] sm:$0xff]
      %v457 = vld [vmem:[%s449 + $0x38] sm:$0xff]
      %v458 = vld [vmem:[%s449 + $0x40] sm:$0xff]
      %v459 = vld [vmem:[%s449 + $0x48] sm:$0xff]
      %v460 = vld [vmem:[%s449 + $0x50] sm:$0xff]
      %v461 = vld [vmem:[%s449 + $0x58] sm:$0xff]
      %v462 = vld [vmem:[%s449 + $0x60] sm:$0xff]
      %v463 = vld [vmem:[%s449 + $0x68] sm:$0xff]
      %v464 = vld [vmem:[%s449 + $0x70] sm:$0xff]
      %v465 = vld [vmem:[%s449 + $0x78] sm:$0xff]
      %v466 = vld [vmem:[%s449 + $0x80] sm:$0xff]
      %v467 = vld [vmem:[%s449 + $0x88] sm:$0xff]
      %v468 = vld [vmem:[%s449 + $0x90] sm:$0xff]
      %v469 = vld [vmem:[%s449 + $0x98] sm:$0xff]
      %v470 = vld [vmem:[%s449 + $0xa0] sm:$0xff]
      %v471 = vld [vmem:[%s449 + $0xa8] sm:$0xff]
      %v472 = vld [vmem:[%s449 + $0xb0] sm:$0xff]
      %v473 = vld [vmem:[%s449 + $0xb8] sm:$0xff]
      %v474 = vld [vmem:[%s449 + $0xc0] sm:$0xff]
      %v475 = vld [vmem:[%s449 + $0xc8] sm:$0xff]
      %v476 = vld [vmem:[%s449 + $0xd0] sm:$0xff]
      %v477 = vld [vmem:[%s449 + $0xd8] sm:$0xff]
      %v478 = vld [vmem:[%s449 + $0xe0] sm:$0xff]
      %v479 = vld [vmem:[%s449 + $0xe8] sm:$0xff]
      %v480 = vld [vmem:[%s449 + $0xf0] sm:$0xff]
      %v481 = vld [vmem:[%s449 + $0xf8] sm:$0xff]
      %v482 = vmax.f32 %v417, %v450
      %v483 = vmax.f32 %v418, %v451
      %v484 = vmax.f32 %v419, %v452
      %v485 = vmax.f32 %v420, %v453
      %v486 = vmax.f32 %v421, %v454
      %v487 = vmax.f32 %v422, %v455
      %v488 = vmax.f32 %v423, %v456
      %v489 = vmax.f32 %v424, %v457
      %v490 = vmax.f32 %v425, %v458
      %v491 = vmax.f32 %v426, %v459
      %v492 = vmax.f32 %v427, %v460
      %v493 = vmax.f32 %v428, %v461
      %v494 = vmax.f32 %v429, %v462
      %v495 = vmax.f32 %v430, %v463
      %v496 = vmax.f32 %v431, %v464
      %v497 = vmax.f32 %v432, %v465
      %v498 = vmax.f32 %v433, %v466
      %v499 = vmax.f32 %v434, %v467
      %v500 = vmax.f32 %v435, %v468
      %v501 = vmax.f32 %v436, %v469
      %v502 = vmax.f32 %v437, %v470
      %v503 = vmax.f32 %v438, %v471
      %v504 = vmax.f32 %v439, %v472
      %v505 = vmax.f32 %v440, %v473
      %v506 = vmax.f32 %v441, %v474
      %v507 = vmax.f32 %v442, %v475
      %v508 = vmax.f32 %v443, %v476
      %v509 = vmax.f32 %v444, %v477
      %v510 = vmax.f32 %v445, %v478
      %v511 = vmax.f32 %v446, %v479
      %v512 = vmax.f32 %v447, %v480
      %v513 = vmax.f32 %v448, %v481
      %s514 = scalar_lea.vmem [#allocation2], 64
      %v515 = vld [vmem:[%s514] sm:$0xff]
      %v516 = vld [vmem:[%s514 + $0x8] sm:$0xff]
      %v517 = vld [vmem:[%s514 + $0x10] sm:$0xff]
      %v518 = vld [vmem:[%s514 + $0x18] sm:$0xff]
      %v519 = vld [vmem:[%s514 + $0x20] sm:$0xff]
      %v520 = vld [vmem:[%s514 + $0x28] sm:$0xff]
      %v521 = vld [vmem:[%s514 + $0x30] sm:$0xff]
      %v522 = vld [vmem:[%s514 + $0x38] sm:$0xff]
      %v523 = vld [vmem:[%s514 + $0x40] sm:$0xff]
      %v524 = vld [vmem:[%s514 + $0x48] sm:$0xff]
      %v525 = vld [vmem:[%s514 + $0x50] sm:$0xff]
      %v526 = vld [vmem:[%s514 + $0x58] sm:$0xff]
      %v527 = vld [vmem:[%s514 + $0x60] sm:$0xff]
      %v528 = vld [vmem:[%s514 + $0x68] sm:$0xff]
      %v529 = vld [vmem:[%s514 + $0x70] sm:$0xff]
      %v530 = vld [vmem:[%s514 + $0x78] sm:$0xff]
      %v531 = vld [vmem:[%s514 + $0x80] sm:$0xff]
      %v532 = vld [vmem:[%s514 + $0x88] sm:$0xff]
      %v533 = vld [vmem:[%s514 + $0x90] sm:$0xff]
      %v534 = vld [vmem:[%s514 + $0x98] sm:$0xff]
      %v535 = vld [vmem:[%s514 + $0xa0] sm:$0xff]
      %v536 = vld [vmem:[%s514 + $0xa8] sm:$0xff]
      %v537 = vld [vmem:[%s514 + $0xb0] sm:$0xff]
      %v538 = vld [vmem:[%s514 + $0xb8] sm:$0xff]
      %v539 = vld [vmem:[%s514 + $0xc0] sm:$0xff]
      %v540 = vld [vmem:[%s514 + $0xc8] sm:$0xff]
      %v541 = vld [vmem:[%s514 + $0xd0] sm:$0xff]
      %v542 = vld [vmem:[%s514 + $0xd8] sm:$0xff]
      %v543 = vld [vmem:[%s514 + $0xe0] sm:$0xff]
      %v544 = vld [vmem:[%s514 + $0xe8] sm:$0xff]
      %v545 = vld [vmem:[%s514 + $0xf0] sm:$0xff]
      %v546 = vld [vmem:[%s514 + $0xf8] sm:$0xff]
      %v547 = vmax.f32 %v482, %v515
      %v548 = vmax.f32 %v483, %v516
      %v549 = vmax.f32 %v484, %v517
      %v550 = vmax.f32 %v485, %v518
      %v551 = vmax.f32 %v486, %v519
      %v552 = vmax.f32 %v487, %v520
      %v553 = vmax.f32 %v488, %v521
      %v554 = vmax.f32 %v489, %v522
      %v555 = vmax.f32 %v490, %v523
      %v556 = vmax.f32 %v491, %v524
      %v557 = vmax.f32 %v492, %v525
      %v558 = vmax.f32 %v493, %v526
      %v559 = vmax.f32 %v494, %v527
      %v560 = vmax.f32 %v495, %v528
      %v561 = vmax.f32 %v496, %v529
      %v562 = vmax.f32 %v497, %v530
      %v563 = vmax.f32 %v498, %v531
      %v564 = vmax.f32 %v499, %v532
      %v565 = vmax.f32 %v500, %v533
      %v566 = vmax.f32 %v501, %v534
      %v567 = vmax.f32 %v502, %v535
      %v568 = vmax.f32 %v503, %v536
      %v569 = vmax.f32 %v504, %v537
      %v570 = vmax.f32 %v505, %v538
      %v571 = vmax.f32 %v506, %v539
      %v572 = vmax.f32 %v507, %v540
      %v573 = vmax.f32 %v508, %v541
      %v574 = vmax.f32 %v509, %v542
      %v575 = vmax.f32 %v510, %v543
      %v576 = vmax.f32 %v511, %v544
      %v577 = vmax.f32 %v512, %v545
      %v578 = vmax.f32 %v513, %v546
      %579 = vst.msk [vmem:[#allocation3 + $0x2] sm:$0xff] %vm180, %v547
      %580 = vst.msk [vmem:[#allocation3 + $0xa] sm:$0xff] %vm180, %v548
      %581 = vst.msk [vmem:[#allocation3 + $0x1a] sm:$0xff] %vm180, %v549
      %582 = vst.msk [vmem:[#allocation3 + $0x22] sm:$0xff] %vm180, %v550
      %583 = vst.msk [vmem:[#allocation3 + $0x32] sm:$0xff] %vm180, %v551
      %584 = vst.msk [vmem:[#allocation3 + $0x3a] sm:$0xff] %vm180, %v552
      %585 = vst.msk [vmem:[#allocation3 + $0x4a] sm:$0xff] %vm180, %v553
      %586 = vst.msk [vmem:[#allocation3 + $0x52] sm:$0xff] %vm180, %v554
      %587 = vst.msk [vmem:[#allocation3 + $0x62] sm:$0xff] %vm180, %v555
      %588 = vst.msk [vmem:[#allocation3 + $0x6a] sm:$0xff] %vm180, %v556
      %589 = vst.msk [vmem:[#allocation3 + $0x7a] sm:$0xff] %vm180, %v557
      %590 = vst.msk [vmem:[#allocation3 + $0x82] sm:$0xff] %vm180, %v558
      %591 = vst.msk [vmem:[#allocation3 + $0x92] sm:$0xff] %vm180, %v559
      %592 = vst.msk [vmem:[#allocation3 + $0x9a] sm:$0xff] %vm180, %v560
      %593 = vst.msk [vmem:[#allocation3 + $0xaa] sm:$0xff] %vm180, %v561
      %594 = vst.msk [vmem:[#allocation3 + $0xb2] sm:$0xff] %vm180, %v562
      %595 = vst.msk [vmem:[#allocation3 + $0xc2] sm:$0xff] %vm180, %v563
      %596 = vst.msk [vmem:[#allocation3 + $0xca] sm:$0xff] %vm180, %v564
      %597 = vst.msk [vmem:[#allocation3 + $0xda] sm:$0xff] %vm180, %v565
      %598 = vst.msk [vmem:[#allocation3 + $0xe2] sm:$0xff] %vm180, %v566
      %599 = vst.msk [vmem:[#allocation3 + $0xf2] sm:$0xff] %vm180, %v567
      %600 = vst.msk [vmem:[#allocation3 + $0xfa] sm:$0xff] %vm180, %v568
      %601 = vst.msk [vmem:[#allocation3 + $0x10a] sm:$0xff] %vm180, %v569
      %602 = vst.msk [vmem:[#allocation3 + $0x112] sm:$0xff] %vm180, %v570
      %603 = vst.msk [vmem:[#allocation3 + $0x122] sm:$0xff] %vm180, %v571
      %604 = vst.msk [vmem:[#allocation3 + $0x12a] sm:$0xff] %vm180, %v572
      %605 = vst.msk [vmem:[#allocation3 + $0x13a] sm:$0xff] %vm180, %v573
      %606 = vst.msk [vmem:[#allocation3 + $0x142] sm:$0xff] %vm180, %v574
      %607 = vst.msk [vmem:[#allocation3 + $0x152] sm:$0xff] %vm180, %v575
      %608 = vst.msk [vmem:[#allocation3 + $0x15a] sm:$0xff] %vm180, %v576
      %609 = vst.msk [vmem:[#allocation3 + $0x16a] sm:$0xff] %vm180, %v577
      %610 = vst.msk [vmem:[#allocation3 + $0x172] sm:$0xff] %vm180, %v578
      %v611 = vld [vmem:[#allocation3] sm:$0xff]
      %v612 = vld [vmem:[#allocation3 + $0x8] sm:$0xff]
      %v613 = vld [vmem:[#allocation3 + $0x18] sm:$0xff]
      %v614 = vld [vmem:[#allocation3 + $0x20] sm:$0xff]
      %v615 = vld [vmem:[#allocation3 + $0x30] sm:$0xff]
      %v616 = vld [vmem:[#allocation3 + $0x38] sm:$0xff]
      %v617 = vld [vmem:[#allocation3 + $0x48] sm:$0xff]
      %v618 = vld [vmem:[#allocation3 + $0x50] sm:$0xff]
      %v619 = vld [vmem:[#allocation3 + $0x60] sm:$0xff]
      %v620 = vld [vmem:[#allocation3 + $0x68] sm:$0xff]
      %v621 = vld [vmem:[#allocation3 + $0x78] sm:$0xff]
      %v622 = vld [vmem:[#allocation3 + $0x80] sm:$0xff]
      %v623 = vld [vmem:[#allocation3 + $0x90] sm:$0xff]
      %v624 = vld [vmem:[#allocation3 + $0x98] sm:$0xff]
      %v625 = vld [vmem:[#allocation3 + $0xa8] sm:$0xff]
      %v626 = vld [vmem:[#allocation3 + $0xb0] sm:$0xff]
      %v627 = vld [vmem:[#allocation3 + $0xc0] sm:$0xff]
      %v628 = vld [vmem:[#allocation3 + $0xc8] sm:$0xff]
      %v629 = vld [vmem:[#allocation3 + $0xd8] sm:$0xff]
      %v630 = vld [vmem:[#allocation3 + $0xe0] sm:$0xff]
      %v631 = vld [vmem:[#allocation3 + $0xf0] sm:$0xff]
      %v632 = vld [vmem:[#allocation3 + $0xf8] sm:$0xff]
      %v633 = vld [vmem:[#allocation3 + $0x108] sm:$0xff]
      %v634 = vld [vmem:[#allocation3 + $0x110] sm:$0xff]
      %v635 = vld [vmem:[#allocation3 + $0x120] sm:$0xff]
      %v636 = vld [vmem:[#allocation3 + $0x128] sm:$0xff]
      %v637 = vld [vmem:[#allocation3 + $0x138] sm:$0xff]
      %v638 = vld [vmem:[#allocation3 + $0x140] sm:$0xff]
      %v639 = vld [vmem:[#allocation3 + $0x150] sm:$0xff]
      %v640 = vld [vmem:[#allocation3 + $0x158] sm:$0xff]
      %v641 = vld [vmem:[#allocation3 + $0x168] sm:$0xff]
      %v642 = vld [vmem:[#allocation3 + $0x170] sm:$0xff]
      %v643 = vld [vmem:[#allocation3 + $0x1] sm:$0xff]
      %v644 = vld [vmem:[#allocation3 + $0x9] sm:$0xff]
      %v645 = vld [vmem:[#allocation3 + $0x19] sm:$0xff]
      %v646 = vld [vmem:[#allocation3 + $0x21] sm:$0xff]
      %v647 = vld [vmem:[#allocation3 + $0x31] sm:$0xff]
      %v648 = vld [vmem:[#allocation3 + $0x39] sm:$0xff]
      %v649 = vld [vmem:[#allocation3 + $0x49] sm:$0xff]
      %v650 = vld [vmem:[#allocation3 + $0x51] sm:$0xff]
      %v651 = vld [vmem:[#allocation3 + $0x61] sm:$0xff]
      %v652 = vld [vmem:[#allocation3 + $0x69] sm:$0xff]
      %v653 = vld [vmem:[#allocation3 + $0x79] sm:$0xff]
      %v654 = vld [vmem:[#allocation3 + $0x81] sm:$0xff]
      %v655 = vld [vmem:[#allocation3 + $0x91] sm:$0xff]
      %v656 = vld [vmem:[#allocation3 + $0x99] sm:$0xff]
      %v657 = vld [vmem:[#allocation3 + $0xa9] sm:$0xff]
      %v658 = vld [vmem:[#allocation3 + $0xb1] sm:$0xff]
      %v659 = vld [vmem:[#allocation3 + $0xc1] sm:$0xff]
      %v660 = vld [vmem:[#allocation3 + $0xc9] sm:$0xff]
      %v661 = vld [vmem:[#allocation3 + $0xd9] sm:$0xff]
      %v662 = vld [vmem:[#allocation3 + $0xe1] sm:$0xff]
      %v663 = vld [vmem:[#allocation3 + $0xf1] sm:$0xff]
      %v664 = vld [vmem:[#allocation3 + $0xf9] sm:$0xff]
      %v665 = vld [vmem:[#allocation3 + $0x109] sm:$0xff]
      %v666 = vld [vmem:[#allocation3 + $0x111] sm:$0xff]
      %v667 = vld [vmem:[#allocation3 + $0x121] sm:$0xff]
      %v668 = vld [vmem:[#allocation3 + $0x129] sm:$0xff]
      %v669 = vld [vmem:[#allocation3 + $0x139] sm:$0xff]
      %v670 = vld [vmem:[#allocation3 + $0x141] sm:$0xff]
      %v671 = vld [vmem:[#allocation3 + $0x151] sm:$0xff]
      %v672 = vld [vmem:[#allocation3 + $0x159] sm:$0xff]
      %v673 = vld [vmem:[#allocation3 + $0x169] sm:$0xff]
      %v674 = vld [vmem:[#allocation3 + $0x171] sm:$0xff]
      %v675 = vmax.f32 %v611, %v643
      %v676 = vmax.f32 %v612, %v644
      %v677 = vmax.f32 %v613, %v645
      %v678 = vmax.f32 %v614, %v646
      %v679 = vmax.f32 %v615, %v647
      %v680 = vmax.f32 %v616, %v648
      %v681 = vmax.f32 %v617, %v649
      %v682 = vmax.f32 %v618, %v650
      %v683 = vmax.f32 %v619, %v651
      %v684 = vmax.f32 %v620, %v652
      %v685 = vmax.f32 %v621, %v653
      %v686 = vmax.f32 %v622, %v654
      %v687 = vmax.f32 %v623, %v655
      %v688 = vmax.f32 %v624, %v656
      %v689 = vmax.f32 %v625, %v657
      %v690 = vmax.f32 %v626, %v658
      %v691 = vmax.f32 %v627, %v659
      %v692 = vmax.f32 %v628, %v660
      %v693 = vmax.f32 %v629, %v661
      %v694 = vmax.f32 %v630, %v662
      %v695 = vmax.f32 %v631, %v663
      %v696 = vmax.f32 %v632, %v664
      %v697 = vmax.f32 %v633, %v665
      %v698 = vmax.f32 %v634, %v666
      %v699 = vmax.f32 %v635, %v667
      %v700 = vmax.f32 %v636, %v668
      %v701 = vmax.f32 %v637, %v669
      %v702 = vmax.f32 %v638, %v670
      %v703 = vmax.f32 %v639, %v671
      %v704 = vmax.f32 %v640, %v672
      %v705 = vmax.f32 %v641, %v673
      %v706 = vmax.f32 %v642, %v674
      %v707 = vld [vmem:[#allocation3 + $0x2] sm:$0xff]
      %v708 = vld [vmem:[#allocation3 + $0xa] sm:$0xff]
      %v709 = vld [vmem:[#allocation3 + $0x1a] sm:$0xff]
      %v710 = vld [vmem:[#allocation3 + $0x22] sm:$0xff]
      %v711 = vld [vmem:[#allocation3 + $0x32] sm:$0xff]
      %v712 = vld [vmem:[#allocation3 + $0x3a] sm:$0xff]
      %v713 = vld [vmem:[#allocation3 + $0x4a] sm:$0xff]
      %v714 = vld [vmem:[#allocation3 + $0x52] sm:$0xff]
      %v715 = vld [vmem:[#allocation3 + $0x62] sm:$0xff]
      %v716 = vld [vmem:[#allocation3 + $0x6a] sm:$0xff]
      %v717 = vld [vmem:[#allocation3 + $0x7a] sm:$0xff]
      %v718 = vld [vmem:[#allocation3 + $0x82] sm:$0xff]
      %v719 = vld [vmem:[#allocation3 + $0x92] sm:$0xff]
      %v720 = vld [vmem:[#allocation3 + $0x9a] sm:$0xff]
      %v721 = vld [vmem:[#allocation3 + $0xaa] sm:$0xff]
      %v722 = vld [vmem:[#allocation3 + $0xb2] sm:$0xff]
      %v723 = vld [vmem:[#allocation3 + $0xc2] sm:$0xff]
      %v724 = vld [vmem:[#allocation3 + $0xca] sm:$0xff]
      %v725 = vld [vmem:[#allocation3 + $0xda] sm:$0xff]
      %v726 = vld [vmem:[#allocation3 + $0xe2] sm:$0xff]
      %v727 = vld [vmem:[#allocation3 + $0xf2] sm:$0xff]
      %v728 = vld [vmem:[#allocation3 + $0xfa] sm:$0xff]
      %v729 = vld [vmem:[#allocation3 + $0x10a] sm:$0xff]
      %v730 = vld [vmem:[#allocation3 + $0x112] sm:$0xff]
      %v731 = vld [vmem:[#allocation3 + $0x122] sm:$0xff]
      %v732 = vld [vmem:[#allocation3 + $0x12a] sm:$0xff]
      %v733 = vld [vmem:[#allocation3 + $0x13a] sm:$0xff]
      %v734 = vld [vmem:[#allocation3 + $0x142] sm:$0xff]
      %v735 = vld [vmem:[#allocation3 + $0x152] sm:$0xff]
      %v736 = vld [vmem:[#allocation3 + $0x15a] sm:$0xff]
      %v737 = vld [vmem:[#allocation3 + $0x16a] sm:$0xff]
      %v738 = vld [vmem:[#allocation3 + $0x172] sm:$0xff]
      %v739 = vmax.f32 %v675, %v707
      %v740 = vmax.f32 %v676, %v708
      %v741 = vmax.f32 %v677, %v709
      %v742 = vmax.f32 %v678, %v710
      %v743 = vmax.f32 %v679, %v711
      %v744 = vmax.f32 %v680, %v712
      %v745 = vmax.f32 %v681, %v713
      %v746 = vmax.f32 %v682, %v714
      %v747 = vmax.f32 %v683, %v715
      %v748 = vmax.f32 %v684, %v716
      %v749 = vmax.f32 %v685, %v717
      %v750 = vmax.f32 %v686, %v718
      %v751 = vmax.f32 %v687, %v719
      %v752 = vmax.f32 %v688, %v720
      %v753 = vmax.f32 %v689, %v721
      %v754 = vmax.f32 %v690, %v722
      %v755 = vmax.f32 %v691, %v723
      %v756 = vmax.f32 %v692, %v724
      %v757 = vmax.f32 %v693, %v725
      %v758 = vmax.f32 %v694, %v726
      %v759 = vmax.f32 %v695, %v727
      %v760 = vmax.f32 %v696, %v728
      %v761 = vmax.f32 %v697, %v729
      %v762 = vmax.f32 %v698, %v730
      %v763 = vmax.f32 %v699, %v731
      %v764 = vmax.f32 %v700, %v732
      %v765 = vmax.f32 %v701, %v733
      %v766 = vmax.f32 %v702, %v734
      %v767 = vmax.f32 %v703, %v735
      %v768 = vmax.f32 %v704, %v736
      %v769 = vmax.f32 %v705, %v737
      %v770 = vmax.f32 %v706, %v738
      %v771 = vld [vmem:[#allocation3 + $0x3] sm:$0xff]
      %v772 = vld [vmem:[#allocation3 + $0xb] sm:$0xff]
      %v773 = vld [vmem:[#allocation3 + $0x1b] sm:$0xff]
      %v774 = vld [vmem:[#allocation3 + $0x23] sm:$0xff]
      %v775 = vld [vmem:[#allocation3 + $0x33] sm:$0xff]
      %v776 = vld [vmem:[#allocation3 + $0x3b] sm:$0xff]
      %v777 = vld [vmem:[#allocation3 + $0x4b] sm:$0xff]
      %v778 = vld [vmem:[#allocation3 + $0x53] sm:$0xff]
      %v779 = vld [vmem:[#allocation3 + $0x63] sm:$0xff]
      %v780 = vld [vmem:[#allocation3 + $0x6b] sm:$0xff]
      %v781 = vld [vmem:[#allocation3 + $0x7b] sm:$0xff]
      %v782 = vld [vmem:[#allocation3 + $0x83] sm:$0xff]
      %v783 = vld [vmem:[#allocation3 + $0x93] sm:$0xff]
      %v784 = vld [vmem:[#allocation3 + $0x9b] sm:$0xff]
      %v785 = vld [vmem:[#allocation3 + $0xab] sm:$0xff]
      %v786 = vld [vmem:[#allocation3 + $0xb3] sm:$0xff]
      %v787 = vld [vmem:[#allocation3 + $0xc3] sm:$0xff]
      %v788 = vld [vmem:[#allocation3 + $0xcb] sm:$0xff]
      %v789 = vld [vmem:[#allocation3 + $0xdb] sm:$0xff]
      %v790 = vld [vmem:[#allocation3 + $0xe3] sm:$0xff]
      %v791 = vld [vmem:[#allocation3 + $0xf3] sm:$0xff]
      %v792 = vld [vmem:[#allocation3 + $0xfb] sm:$0xff]
      %v793 = vld [vmem:[#allocation3 + $0x10b] sm:$0xff]
      %v794 = vld [vmem:[#allocation3 + $0x113] sm:$0xff]
      %v795 = vld [vmem:[#allocation3 + $0x123] sm:$0xff]
      %v796 = vld [vmem:[#allocation3 + $0x12b] sm:$0xff]
      %v797 = vld [vmem:[#allocation3 + $0x13b] sm:$0xff]
      %v798 = vld [vmem:[#allocation3 + $0x143] sm:$0xff]
      %v799 = vld [vmem:[#allocation3 + $0x153] sm:$0xff]
      %v800 = vld [vmem:[#allocation3 + $0x15b] sm:$0xff]
      %v801 = vld [vmem:[#allocation3 + $0x16b] sm:$0xff]
      %v802 = vld [vmem:[#allocation3 + $0x173] sm:$0xff]
      %v803 = vmax.f32 %v739, %v771
      %v804 = vmax.f32 %v740, %v772
      %v805 = vmax.f32 %v741, %v773
      %v806 = vmax.f32 %v742, %v774
      %v807 = vmax.f32 %v743, %v775
      %v808 = vmax.f32 %v744, %v776
      %v809 = vmax.f32 %v745, %v777
      %v810 = vmax.f32 %v746, %v778
      %v811 = vmax.f32 %v747, %v779
      %v812 = vmax.f32 %v748, %v780
      %v813 = vmax.f32 %v749, %v781
      %v814 = vmax.f32 %v750, %v782
      %v815 = vmax.f32 %v751, %v783
      %v816 = vmax.f32 %v752, %v784
      %v817 = vmax.f32 %v753, %v785
      %v818 = vmax.f32 %v754, %v786
      %v819 = vmax.f32 %v755, %v787
      %v820 = vmax.f32 %v756, %v788
      %v821 = vmax.f32 %v757, %v789
      %v822 = vmax.f32 %v758, %v790
      %v823 = vmax.f32 %v759, %v791
      %v824 = vmax.f32 %v760, %v792
      %v825 = vmax.f32 %v761, %v793
      %v826 = vmax.f32 %v762, %v794
      %v827 = vmax.f32 %v763, %v795
      %v828 = vmax.f32 %v764, %v796
      %v829 = vmax.f32 %v765, %v797
      %v830 = vmax.f32 %v766, %v798
      %v831 = vmax.f32 %v767, %v799
      %v832 = vmax.f32 %v768, %v800
      %v833 = vmax.f32 %v769, %v801
      %v834 = vmax.f32 %v770, %v802
      %v835 = vld [vmem:[#allocation3 + $0x4] sm:$0xff]
      %v836 = vld [vmem:[#allocation3 + $0xc] sm:$0xff]
      %v837 = vld [vmem:[#allocation3 + $0x1c] sm:$0xff]
      %v838 = vld [vmem:[#allocation3 + $0x24] sm:$0xff]
      %v839 = vld [vmem:[#allocation3 + $0x34] sm:$0xff]
      %v840 = vld [vmem:[#allocation3 + $0x3c] sm:$0xff]
      %v841 = vld [vmem:[#allocation3 + $0x4c] sm:$0xff]
      %v842 = vld [vmem:[#allocation3 + $0x54] sm:$0xff]
      %v843 = vld [vmem:[#allocation3 + $0x64] sm:$0xff]
      %v844 = vld [vmem:[#allocation3 + $0x6c] sm:$0xff]
      %v845 = vld [vmem:[#allocation3 + $0x7c] sm:$0xff]
      %v846 = vld [vmem:[#allocation3 + $0x84] sm:$0xff]
      %v847 = vld [vmem:[#allocation3 + $0x94] sm:$0xff]
      %v848 = vld [vmem:[#allocation3 + $0x9c] sm:$0xff]
      %v849 = vld [vmem:[#allocation3 + $0xac] sm:$0xff]
      %v850 = vld [vmem:[#allocation3 + $0xb4] sm:$0xff]
      %v851 = vld [vmem:[#allocation3 + $0xc4] sm:$0xff]
      %v852 = vld [vmem:[#allocation3 + $0xcc] sm:$0xff]
      %v853 = vld [vmem:[#allocation3 + $0xdc] sm:$0xff]
      %v854 = vld [vmem:[#allocation3 + $0xe4] sm:$0xff]
      %v855 = vld [vmem:[#allocation3 + $0xf4] sm:$0xff]
      %v856 = vld [vmem:[#allocation3 + $0xfc] sm:$0xff]
      %v857 = vld [vmem:[#allocation3 + $0x10c] sm:$0xff]
      %v858 = vld [vmem:[#allocation3 + $0x114] sm:$0xff]
      %v859 = vld [vmem:[#allocation3 + $0x124] sm:$0xff]
      %v860 = vld [vmem:[#allocation3 + $0x12c] sm:$0xff]
      %v861 = vld [vmem:[#allocation3 + $0x13c] sm:$0xff]
      %v862 = vld [vmem:[#allocation3 + $0x144] sm:$0xff]
      %v863 = vld [vmem:[#allocation3 + $0x154] sm:$0xff]
      %v864 = vld [vmem:[#allocation3 + $0x15c] sm:$0xff]
      %v865 = vld [vmem:[#allocation3 + $0x16c] sm:$0xff]
      %v866 = vld [vmem:[#allocation3 + $0x174] sm:$0xff]
      %v867 = vmax.f32 %v803, %v835
      %v868 = vmax.f32 %v804, %v836
      %v869 = vmax.f32 %v805, %v837
      %v870 = vmax.f32 %v806, %v838
      %v871 = vmax.f32 %v807, %v839
      %v872 = vmax.f32 %v808, %v840
      %v873 = vmax.f32 %v809, %v841
      %v874 = vmax.f32 %v810, %v842
      %v875 = vmax.f32 %v811, %v843
      %v876 = vmax.f32 %v812, %v844
      %v877 = vmax.f32 %v813, %v845
      %v878 = vmax.f32 %v814, %v846
      %v879 = vmax.f32 %v815, %v847
      %v880 = vmax.f32 %v816, %v848
      %v881 = vmax.f32 %v817, %v849
      %v882 = vmax.f32 %v818, %v850
      %v883 = vmax.f32 %v819, %v851
      %v884 = vmax.f32 %v820, %v852
      %v885 = vmax.f32 %v821, %v853
      %v886 = vmax.f32 %v822, %v854
      %v887 = vmax.f32 %v823, %v855
      %v888 = vmax.f32 %v824, %v856
      %v889 = vmax.f32 %v825, %v857
      %v890 = vmax.f32 %v826, %v858
      %v891 = vmax.f32 %v827, %v859
      %v892 = vmax.f32 %v828, %v860
      %v893 = vmax.f32 %v829, %v861
      %v894 = vmax.f32 %v830, %v862
      %v895 = vmax.f32 %v831, %v863
      %v896 = vmax.f32 %v832, %v864
      %v897 = vmax.f32 %v833, %v865
      %v898 = vmax.f32 %v834, %v866
      %s899 = scalar_lea.vmem %s147, 256
      %900 = vst.msk [vmem:[%s899] sm:$0xff] %vm180, %v867
      %901 = vst.msk [vmem:[%s899 + $0x8] sm:$0xff] %vm180, %v868
      %902 = vst.msk [vmem:[%s899 + $0x10] sm:$0xff] %vm180, %v869
      %903 = vst.msk [vmem:[%s899 + $0x18] sm:$0xff] %vm180, %v870
      %904 = vst.msk [vmem:[%s899 + $0x20] sm:$0xff] %vm180, %v871
      %905 = vst.msk [vmem:[%s899 + $0x28] sm:$0xff] %vm180, %v872
      %906 = vst.msk [vmem:[%s899 + $0x30] sm:$0xff] %vm180, %v873
      %907 = vst.msk [vmem:[%s899 + $0x38] sm:$0xff] %vm180, %v874
      %908 = vst.msk [vmem:[%s899 + $0x40] sm:$0xff] %vm180, %v875
      %909 = vst.msk [vmem:[%s899 + $0x48] sm:$0xff] %vm180, %v876
      %910 = vst.msk [vmem:[%s899 + $0x50] sm:$0xff] %vm180, %v877
      %911 = vst.msk [vmem:[%s899 + $0x58] sm:$0xff] %vm180, %v878
      %912 = vst.msk [vmem:[%s899 + $0x60] sm:$0xff] %vm180, %v879
      %913 = vst.msk [vmem:[%s899 + $0x68] sm:$0xff] %vm180, %v880
      %914 = vst.msk [vmem:[%s899 + $0x70] sm:$0xff] %vm180, %v881
      %915 = vst.msk [vmem:[%s899 + $0x78] sm:$0xff] %vm180, %v882
      %916 = vst.msk [vmem:[%s899 + $0x80] sm:$0xff] %vm180, %v883
      %917 = vst.msk [vmem:[%s899 + $0x88] sm:$0xff] %vm180, %v884
      %918 = vst.msk [vmem:[%s899 + $0x90] sm:$0xff] %vm180, %v885
      %919 = vst.msk [vmem:[%s899 + $0x98] sm:$0xff] %vm180, %v886
      %920 = vst.msk [vmem:[%s899 + $0xa0] sm:$0xff] %vm180, %v887
      %921 = vst.msk [vmem:[%s899 + $0xa8] sm:$0xff] %vm180, %v888
      %922 = vst.msk [vmem:[%s899 + $0xb0] sm:$0xff] %vm180, %v889
      %923 = vst.msk [vmem:[%s899 + $0xb8] sm:$0xff] %vm180, %v890
      %924 = vst.msk [vmem:[%s899 + $0xc0] sm:$0xff] %vm180, %v891
      %925 = vst.msk [vmem:[%s899 + $0xc8] sm:$0xff] %vm180, %v892
      %926 = vst.msk [vmem:[%s899 + $0xd0] sm:$0xff] %vm180, %v893
      %927 = vst.msk [vmem:[%s899 + $0xd8] sm:$0xff] %vm180, %v894
      %928 = vst.msk [vmem:[%s899 + $0xe0] sm:$0xff] %vm180, %v895
      %929 = vst.msk [vmem:[%s899 + $0xe8] sm:$0xff] %vm180, %v896
      %930 = vst.msk [vmem:[%s899 + $0xf0] sm:$0xff] %vm180, %v897
      %931 = vst.msk [vmem:[%s899 + $0xf8] sm:$0xff] %vm180, %v898
      %932 = vst.msk [vmem:[%s255] sm:$0xff] %vm180, %v867
      %933 = vst.msk [vmem:[%s255 + $0x8] sm:$0xff] %vm180, %v868
      %934 = vst.msk [vmem:[%s255 + $0x10] sm:$0xff] %vm180, %v869
      %935 = vst.msk [vmem:[%s255 + $0x18] sm:$0xff] %vm180, %v870
      %936 = vst.msk [vmem:[%s255 + $0x20] sm:$0xff] %vm180, %v871
      %937 = vst.msk [vmem:[%s255 + $0x28] sm:$0xff] %vm180, %v872
      %938 = vst.msk [vmem:[%s255 + $0x30] sm:$0xff] %vm180, %v873
      %939 = vst.msk [vmem:[%s255 + $0x38] sm:$0xff] %vm180, %v874
      %940 = vst.msk [vmem:[%s255 + $0x40] sm:$0xff] %vm180, %v875
      %941 = vst.msk [vmem:[%s255 + $0x48] sm:$0xff] %vm180, %v876
      %942 = vst.msk [vmem:[%s255 + $0x50] sm:$0xff] %vm180, %v877
      %943 = vst.msk [vmem:[%s255 + $0x58] sm:$0xff] %vm180, %v878
      %944 = vst.msk [vmem:[%s255 + $0x60] sm:$0xff] %vm180, %v879
      %945 = vst.msk [vmem:[%s255 + $0x68] sm:$0xff] %vm180, %v880
      %946 = vst.msk [vmem:[%s255 + $0x70] sm:$0xff] %vm180, %v881
      %947 = vst.msk [vmem:[%s255 + $0x78] sm:$0xff] %vm180, %v882
      %948 = vst.msk [vmem:[%s255 + $0x80] sm:$0xff] %vm180, %v883
      %949 = vst.msk [vmem:[%s255 + $0x88] sm:$0xff] %vm180, %v884
      %950 = vst.msk [vmem:[%s255 + $0x90] sm:$0xff] %vm180, %v885
      %951 = vst.msk [vmem:[%s255 + $0x98] sm:$0xff] %vm180, %v886
      %952 = vst.msk [vmem:[%s255 + $0xa0] sm:$0xff] %vm180, %v887
      %953 = vst.msk [vmem:[%s255 + $0xa8] sm:$0xff] %vm180, %v888
      %954 = vst.msk [vmem:[%s255 + $0xb0] sm:$0xff] %vm180, %v889
      %955 = vst.msk [vmem:[%s255 + $0xb8] sm:$0xff] %vm180, %v890
      %956 = vst.msk [vmem:[%s255 + $0xc0] sm:$0xff] %vm180, %v891
      %957 = vst.msk [vmem:[%s255 + $0xc8] sm:$0xff] %vm180, %v892
      %958 = vst.msk [vmem:[%s255 + $0xd0] sm:$0xff] %vm180, %v893
      %959 = vst.msk [vmem:[%s255 + $0xd8] sm:$0xff] %vm180, %v894
      %960 = vst.msk [vmem:[%s255 + $0xe0] sm:$0xff] %vm180, %v895
      %961 = vst.msk [vmem:[%s255 + $0xe8] sm:$0xff] %vm180, %v896
      %962 = vst.msk [vmem:[%s255 + $0xf0] sm:$0xff] %vm180, %v897
      %963 = vst.msk [vmem:[%s255 + $0xf8] sm:$0xff] %vm180, %v898
      %v964 = vld [vmem:[#allocation2] sm:$0xff]
      %v965 = vld [vmem:[#allocation2 + $0x8] sm:$0xff]
      %v966 = vld [vmem:[#allocation2 + $0x10] sm:$0xff]
      %v967 = vld [vmem:[#allocation2 + $0x18] sm:$0xff]
      %v968 = vld [vmem:[#allocation2 + $0x20] sm:$0xff]
      %v969 = vld [vmem:[#allocation2 + $0x28] sm:$0xff]
      %v970 = vld [vmem:[#allocation2 + $0x30] sm:$0xff]
      %v971 = vld [vmem:[#allocation2 + $0x38] sm:$0xff]
      %v972 = vld [vmem:[#allocation2 + $0x40] sm:$0xff]
      %v973 = vld [vmem:[#allocation2 + $0x48] sm:$0xff]
      %v974 = vld [vmem:[#allocation2 + $0x50] sm:$0xff]
      %v975 = vld [vmem:[#allocation2 + $0x58] sm:$0xff]
      %v976 = vld [vmem:[#allocation2 + $0x60] sm:$0xff]
      %v977 = vld [vmem:[#allocation2 + $0x68] sm:$0xff]
      %v978 = vld [vmem:[#allocation2 + $0x70] sm:$0xff]
      %v979 = vld [vmem:[#allocation2 + $0x78] sm:$0xff]
      %v980 = vld [vmem:[#allocation2 + $0x80] sm:$0xff]
      %v981 = vld [vmem:[#allocation2 + $0x88] sm:$0xff]
      %v982 = vld [vmem:[#allocation2 + $0x90] sm:$0xff]
      %v983 = vld [vmem:[#allocation2 + $0x98] sm:$0xff]
      %v984 = vld [vmem:[#allocation2 + $0xa0] sm:$0xff]
      %v985 = vld [vmem:[#allocation2 + $0xa8] sm:$0xff]
      %v986 = vld [vmem:[#allocation2 + $0xb0] sm:$0xff]
      %v987 = vld [vmem:[#allocation2 + $0xb8] sm:$0xff]
      %v988 = vld [vmem:[#allocation2 + $0xc0] sm:$0xff]
      %v989 = vld [vmem:[#allocation2 + $0xc8] sm:$0xff]
      %v990 = vld [vmem:[#allocation2 + $0xd0] sm:$0xff]
      %v991 = vld [vmem:[#allocation2 + $0xd8] sm:$0xff]
      %v992 = vld [vmem:[#allocation2 + $0xe0] sm:$0xff]
      %v993 = vld [vmem:[#allocation2 + $0xe8] sm:$0xff]
      %v994 = vld [vmem:[#allocation2 + $0xf0] sm:$0xff]
      %v995 = vld [vmem:[#allocation2 + $0xf8] sm:$0xff]
      %v996 = vld [vmem:[%s320] sm:$0xff]
      %v997 = vld [vmem:[%s320 + $0x8] sm:$0xff]
      %v998 = vld [vmem:[%s320 + $0x10] sm:$0xff]
      %v999 = vld [vmem:[%s320 + $0x18] sm:$0xff]
      %v1000 = vld [vmem:[%s320 + $0x20] sm:$0xff]
      %v1001 = vld [vmem:[%s320 + $0x28] sm:$0xff]
      %v1002 = vld [vmem:[%s320 + $0x30] sm:$0xff]
      %v1003 = vld [vmem:[%s320 + $0x38] sm:$0xff]
      %v1004 = vld [vmem:[%s320 + $0x40] sm:$0xff]
      %v1005 = vld [vmem:[%s320 + $0x48] sm:$0xff]
      %v1006 = vld [vmem:[%s320 + $0x50] sm:$0xff]
      %v1007 = vld [vmem:[%s320 + $0x58] sm:$0xff]
      %v1008 = vld [vmem:[%s320 + $0x60] sm:$0xff]
      %v1009 = vld [vmem:[%s320 + $0x68] sm:$0xff]
      %v1010 = vld [vmem:[%s320 + $0x70] sm:$0xff]
      %v1011 = vld [vmem:[%s320 + $0x78] sm:$0xff]
      %v1012 = vld [vmem:[%s320 + $0x80] sm:$0xff]
      %v1013 = vld [vmem:[%s320 + $0x88] sm:$0xff]
      %v1014 = vld [vmem:[%s320 + $0x90] sm:$0xff]
      %v1015 = vld [vmem:[%s320 + $0x98] sm:$0xff]
      %v1016 = vld [vmem:[%s320 + $0xa0] sm:$0xff]
      %v1017 = vld [vmem:[%s320 + $0xa8] sm:$0xff]
      %v1018 = vld [vmem:[%s320 + $0xb0] sm:$0xff]
      %v1019 = vld [vmem:[%s320 + $0xb8] sm:$0xff]
      %v1020 = vld [vmem:[%s320 + $0xc0] sm:$0xff]
      %v1021 = vld [vmem:[%s320 + $0xc8] sm:$0xff]
      %v1022 = vld [vmem:[%s320 + $0xd0] sm:$0xff]
      %v1023 = vld [vmem:[%s320 + $0xd8] sm:$0xff]
      %v1024 = vld [vmem:[%s320 + $0xe0] sm:$0xff]
      %v1025 = vld [vmem:[%s320 + $0xe8] sm:$0xff]
      %v1026 = vld [vmem:[%s320 + $0xf0] sm:$0xff]
      %v1027 = vld [vmem:[%s320 + $0xf8] sm:$0xff]
      %v1028 = vmax.f32 %v964, %v996
      %v1029 = vmax.f32 %v965, %v997
      %v1030 = vmax.f32 %v966, %v998
      %v1031 = vmax.f32 %v967, %v999
      %v1032 = vmax.f32 %v968, %v1000
      %v1033 = vmax.f32 %v969, %v1001
      %v1034 = vmax.f32 %v970, %v1002
      %v1035 = vmax.f32 %v971, %v1003
      %v1036 = vmax.f32 %v972, %v1004
      %v1037 = vmax.f32 %v973, %v1005
      %v1038 = vmax.f32 %v974, %v1006
      %v1039 = vmax.f32 %v975, %v1007
      %v1040 = vmax.f32 %v976, %v1008
      %v1041 = vmax.f32 %v977, %v1009
      %v1042 = vmax.f32 %v978, %v1010
      %v1043 = vmax.f32 %v979, %v1011
      %v1044 = vmax.f32 %v980, %v1012
      %v1045 = vmax.f32 %v981, %v1013
      %v1046 = vmax.f32 %v982, %v1014
      %v1047 = vmax.f32 %v983, %v1015
      %v1048 = vmax.f32 %v984, %v1016
      %v1049 = vmax.f32 %v985, %v1017
      %v1050 = vmax.f32 %v986, %v1018
      %v1051 = vmax.f32 %v987, %v1019
      %v1052 = vmax.f32 %v988, %v1020
      %v1053 = vmax.f32 %v989, %v1021
      %v1054 = vmax.f32 %v990, %v1022
      %v1055 = vmax.f32 %v991, %v1023
      %v1056 = vmax.f32 %v992, %v1024
      %v1057 = vmax.f32 %v993, %v1025
      %v1058 = vmax.f32 %v994, %v1026
      %v1059 = vmax.f32 %v995, %v1027
      %v1060 = vld [vmem:[%s255] sm:$0xff]
      %v1061 = vld [vmem:[%s255 + $0x8] sm:$0xff]
      %v1062 = vld [vmem:[%s255 + $0x10] sm:$0xff]
      %v1063 = vld [vmem:[%s255 + $0x18] sm:$0xff]
      %v1064 = vld [vmem:[%s255 + $0x20] sm:$0xff]
      %v1065 = vld [vmem:[%s255 + $0x28] sm:$0xff]
      %v1066 = vld [vmem:[%s255 + $0x30] sm:$0xff]
      %v1067 = vld [vmem:[%s255 + $0x38] sm:$0xff]
      %v1068 = vld [vmem:[%s255 + $0x40] sm:$0xff]
      %v1069 = vld [vmem:[%s255 + $0x48] sm:$0xff]
      %v1070 = vld [vmem:[%s255 + $0x50] sm:$0xff]
      %v1071 = vld [vmem:[%s255 + $0x58] sm:$0xff]
      %v1072 = vld [vmem:[%s255 + $0x60] sm:$0xff]
      %v1073 = vld [vmem:[%s255 + $0x68] sm:$0xff]
      %v1074 = vld [vmem:[%s255 + $0x70] sm:$0xff]
      %v1075 = vld [vmem:[%s255 + $0x78] sm:$0xff]
      %v1076 = vld [vmem:[%s255 + $0x80] sm:$0xff]
      %v1077 = vld [vmem:[%s255 + $0x88] sm:$0xff]
      %v1078 = vld [vmem:[%s255 + $0x90] sm:$0xff]
      %v1079 = vld [vmem:[%s255 + $0x98] sm:$0xff]
      %v1080 = vld [vmem:[%s255 + $0xa0] sm:$0xff]
      %v1081 = vld [vmem:[%s255 + $0xa8] sm:$0xff]
      %v1082 = vld [vmem:[%s255 + $0xb0] sm:$0xff]
      %v1083 = vld [vmem:[%s255 + $0xb8] sm:$0xff]
      %v1084 = vld [vmem:[%s255 + $0xc0] sm:$0xff]
      %v1085 = vld [vmem:[%s255 + $0xc8] sm:$0xff]
      %v1086 = vld [vmem:[%s255 + $0xd0] sm:$0xff]
      %v1087 = vld [vmem:[%s255 + $0xd8] sm:$0xff]
      %v1088 = vld [vmem:[%s255 + $0xe0] sm:$0xff]
      %v1089 = vld [vmem:[%s255 + $0xe8] sm:$0xff]
      %v1090 = vld [vmem:[%s255 + $0xf0] sm:$0xff]
      %v1091 = vld [vmem:[%s255 + $0xf8] sm:$0xff]
      %v1092 = vmax.f32 %v1028, %v1060
      %v1093 = vmax.f32 %v1029, %v1061
      %v1094 = vmax.f32 %v1030, %v1062
      %v1095 = vmax.f32 %v1031, %v1063
      %v1096 = vmax.f32 %v1032, %v1064
      %v1097 = vmax.f32 %v1033, %v1065
      %v1098 = vmax.f32 %v1034, %v1066
      %v1099 = vmax.f32 %v1035, %v1067
      %v1100 = vmax.f32 %v1036, %v1068
      %v1101 = vmax.f32 %v1037, %v1069
      %v1102 = vmax.f32 %v1038, %v1070
      %v1103 = vmax.f32 %v1039, %v1071
      %v1104 = vmax.f32 %v1040, %v1072
      %v1105 = vmax.f32 %v1041, %v1073
      %v1106 = vmax.f32 %v1042, %v1074
      %v1107 = vmax.f32 %v1043, %v1075
      %v1108 = vmax.f32 %v1044, %v1076
      %v1109 = vmax.f32 %v1045, %v1077
      %v1110 = vmax.f32 %v1046, %v1078
      %v1111 = vmax.f32 %v1047, %v1079
      %v1112 = vmax.f32 %v1048, %v1080
      %v1113 = vmax.f32 %v1049, %v1081
      %v1114 = vmax.f32 %v1050, %v1082
      %v1115 = vmax.f32 %v1051, %v1083
      %v1116 = vmax.f32 %v1052, %v1084
      %v1117 = vmax.f32 %v1053, %v1085
      %v1118 = vmax.f32 %v1054, %v1086
      %v1119 = vmax.f32 %v1055, %v1087
      %v1120 = vmax.f32 %v1056, %v1088
      %v1121 = vmax.f32 %v1057, %v1089
      %v1122 = vmax.f32 %v1058, %v1090
      %v1123 = vmax.f32 %v1059, %v1091
      %v1124 = vld [vmem:[%s449] sm:$0xff]
      %v1125 = vld [vmem:[%s449 + $0x8] sm:$0xff]
      %v1126 = vld [vmem:[%s449 + $0x10] sm:$0xff]
      %v1127 = vld [vmem:[%s449 + $0x18] sm:$0xff]
      %v1128 = vld [vmem:[%s449 + $0x20] sm:$0xff]
      %v1129 = vld [vmem:[%s449 + $0x28] sm:$0xff]
      %v1130 = vld [vmem:[%s449 + $0x30] sm:$0xff]
      %v1131 = vld [vmem:[%s449 + $0x38] sm:$0xff]
      %v1132 = vld [vmem:[%s449 + $0x40] sm:$0xff]
      %v1133 = vld [vmem:[%s449 + $0x48] sm:$0xff]
      %v1134 = vld [vmem:[%s449 + $0x50] sm:$0xff]
      %v1135 = vld [vmem:[%s449 + $0x58] sm:$0xff]
      %v1136 = vld [vmem:[%s449 + $0x60] sm:$0xff]
      %v1137 = vld [vmem:[%s449 + $0x68] sm:$0xff]
      %v1138 = vld [vmem:[%s449 + $0x70] sm:$0xff]
      %v1139 = vld [vmem:[%s449 + $0x78] sm:$0xff]
      %v1140 = vld [vmem:[%s449 + $0x80] sm:$0xff]
      %v1141 = vld [vmem:[%s449 + $0x88] sm:$0xff]
      %v1142 = vld [vmem:[%s449 + $0x90] sm:$0xff]
      %v1143 = vld [vmem:[%s449 + $0x98] sm:$0xff]
      %v1144 = vld [vmem:[%s449 + $0xa0] sm:$0xff]
      %v1145 = vld [vmem:[%s449 + $0xa8] sm:$0xff]
      %v1146 = vld [vmem:[%s449 + $0xb0] sm:$0xff]
      %v1147 = vld [vmem:[%s449 + $0xb8] sm:$0xff]
      %v1148 = vld [vmem:[%s449 + $0xc0] sm:$0xff]
      %v1149 = vld [vmem:[%s449 + $0xc8] sm:$0xff]
      %v1150 = vld [vmem:[%s449 + $0xd0] sm:$0xff]
      %v1151 = vld [vmem:[%s449 + $0xd8] sm:$0xff]
      %v1152 = vld [vmem:[%s449 + $0xe0] sm:$0xff]
      %v1153 = vld [vmem:[%s449 + $0xe8] sm:$0xff]
      %v1154 = vld [vmem:[%s449 + $0xf0] sm:$0xff]
      %v1155 = vld [vmem:[%s449 + $0xf8] sm:$0xff]
      %v1156 = vmax.f32 %v1092, %v1124
      %v1157 = vmax.f32 %v1093, %v1125
      %v1158 = vmax.f32 %v1094, %v1126
      %v1159 = vmax.f32 %v1095, %v1127
      %v1160 = vmax.f32 %v1096, %v1128
      %v1161 = vmax.f32 %v1097, %v1129
      %v1162 = vmax.f32 %v1098, %v1130
      %v1163 = vmax.f32 %v1099, %v1131
      %v1164 = vmax.f32 %v1100, %v1132
      %v1165 = vmax.f32 %v1101, %v1133
      %v1166 = vmax.f32 %v1102, %v1134
      %v1167 = vmax.f32 %v1103, %v1135
      %v1168 = vmax.f32 %v1104, %v1136
      %v1169 = vmax.f32 %v1105, %v1137
      %v1170 = vmax.f32 %v1106, %v1138
      %v1171 = vmax.f32 %v1107, %v1139
      %v1172 = vmax.f32 %v1108, %v1140
      %v1173 = vmax.f32 %v1109, %v1141
      %v1174 = vmax.f32 %v1110, %v1142
      %v1175 = vmax.f32 %v1111, %v1143
      %v1176 = vmax.f32 %v1112, %v1144
      %v1177 = vmax.f32 %v1113, %v1145
      %v1178 = vmax.f32 %v1114, %v1146
      %v1179 = vmax.f32 %v1115, %v1147
      %v1180 = vmax.f32 %v1116, %v1148
      %v1181 = vmax.f32 %v1117, %v1149
      %v1182 = vmax.f32 %v1118, %v1150
      %v1183 = vmax.f32 %v1119, %v1151
      %v1184 = vmax.f32 %v1120, %v1152
      %v1185 = vmax.f32 %v1121, %v1153
      %v1186 = vmax.f32 %v1122, %v1154
      %v1187 = vmax.f32 %v1123, %v1155
      %v1188 = vld [vmem:[%s514] sm:$0xff]
      %v1189 = vld [vmem:[%s514 + $0x8] sm:$0xff]
      %v1190 = vld [vmem:[%s514 + $0x10] sm:$0xff]
      %v1191 = vld [vmem:[%s514 + $0x18] sm:$0xff]
      %v1192 = vld [vmem:[%s514 + $0x20] sm:$0xff]
      %v1193 = vld [vmem:[%s514 + $0x28] sm:$0xff]
      %v1194 = vld [vmem:[%s514 + $0x30] sm:$0xff]
      %v1195 = vld [vmem:[%s514 + $0x38] sm:$0xff]
      %v1196 = vld [vmem:[%s514 + $0x40] sm:$0xff]
      %v1197 = vld [vmem:[%s514 + $0x48] sm:$0xff]
      %v1198 = vld [vmem:[%s514 + $0x50] sm:$0xff]
      %v1199 = vld [vmem:[%s514 + $0x58] sm:$0xff]
      %v1200 = vld [vmem:[%s514 + $0x60] sm:$0xff]
      %v1201 = vld [vmem:[%s514 + $0x68] sm:$0xff]
      %v1202 = vld [vmem:[%s514 + $0x70] sm:$0xff]
      %v1203 = vld [vmem:[%s514 + $0x78] sm:$0xff]
      %v1204 = vld [vmem:[%s514 + $0x80] sm:$0xff]
      %v1205 = vld [vmem:[%s514 + $0x88] sm:$0xff]
      %v1206 = vld [vmem:[%s514 + $0x90] sm:$0xff]
      %v1207 = vld [vmem:[%s514 + $0x98] sm:$0xff]
      %v1208 = vld [vmem:[%s514 + $0xa0] sm:$0xff]
      %v1209 = vld [vmem:[%s514 + $0xa8] sm:$0xff]
      %v1210 = vld [vmem:[%s514 + $0xb0] sm:$0xff]
      %v1211 = vld [vmem:[%s514 + $0xb8] sm:$0xff]
      %v1212 = vld [vmem:[%s514 + $0xc0] sm:$0xff]
      %v1213 = vld [vmem:[%s514 + $0xc8] sm:$0xff]
      %v1214 = vld [vmem:[%s514 + $0xd0] sm:$0xff]
      %v1215 = vld [vmem:[%s514 + $0xd8] sm:$0xff]
      %v1216 = vld [vmem:[%s514 + $0xe0] sm:$0xff]
      %v1217 = vld [vmem:[%s514 + $0xe8] sm:$0xff]
      %v1218 = vld [vmem:[%s514 + $0xf0] sm:$0xff]
      %v1219 = vld [vmem:[%s514 + $0xf8] sm:$0xff]
      %v1220 = vmax.f32 %v1156, %v1188
      %v1221 = vmax.f32 %v1157, %v1189
      %v1222 = vmax.f32 %v1158, %v1190
      %v1223 = vmax.f32 %v1159, %v1191
      %v1224 = vmax.f32 %v1160, %v1192
      %v1225 = vmax.f32 %v1161, %v1193
      %v1226 = vmax.f32 %v1162, %v1194
      %v1227 = vmax.f32 %v1163, %v1195
      %v1228 = vmax.f32 %v1164, %v1196
      %v1229 = vmax.f32 %v1165, %v1197
      %v1230 = vmax.f32 %v1166, %v1198
      %v1231 = vmax.f32 %v1167, %v1199
      %v1232 = vmax.f32 %v1168, %v1200
      %v1233 = vmax.f32 %v1169, %v1201
      %v1234 = vmax.f32 %v1170, %v1202
      %v1235 = vmax.f32 %v1171, %v1203
      %v1236 = vmax.f32 %v1172, %v1204
      %v1237 = vmax.f32 %v1173, %v1205
      %v1238 = vmax.f32 %v1174, %v1206
      %v1239 = vmax.f32 %v1175, %v1207
      %v1240 = vmax.f32 %v1176, %v1208
      %v1241 = vmax.f32 %v1177, %v1209
      %v1242 = vmax.f32 %v1178, %v1210
      %v1243 = vmax.f32 %v1179, %v1211
      %v1244 = vmax.f32 %v1180, %v1212
      %v1245 = vmax.f32 %v1181, %v1213
      %v1246 = vmax.f32 %v1182, %v1214
      %v1247 = vmax.f32 %v1183, %v1215
      %v1248 = vmax.f32 %v1184, %v1216
      %v1249 = vmax.f32 %v1185, %v1217
      %v1250 = vmax.f32 %v1186, %v1218
      %v1251 = vmax.f32 %v1187, %v1219
      %1252 = vst.msk [vmem:[#allocation3 + $0x2] sm:$0xff] %vm180, %v1220
      %1253 = vst.msk [vmem:[#allocation3 + $0xa] sm:$0xff] %vm180, %v1221
      %1254 = vst.msk [vmem:[#allocation3 + $0x1a] sm:$0xff] %vm180, %v1222
      %1255 = vst.msk [vmem:[#allocation3 + $0x22] sm:$0xff] %vm180, %v1223
      %1256 = vst.msk [vmem:[#allocation3 + $0x32] sm:$0xff] %vm180, %v1224
      %1257 = vst.msk [vmem:[#allocation3 + $0x3a] sm:$0xff] %vm180, %v1225
      %1258 = vst.msk [vmem:[#allocation3 + $0x4a] sm:$0xff] %vm180, %v1226
      %1259 = vst.msk [vmem:[#allocation3 + $0x52] sm:$0xff] %vm180, %v1227
      %1260 = vst.msk [vmem:[#allocation3 + $0x62] sm:$0xff] %vm180, %v1228
      %1261 = vst.msk [vmem:[#allocation3 + $0x6a] sm:$0xff] %vm180, %v1229
      %1262 = vst.msk [vmem:[#allocation3 + $0x7a] sm:$0xff] %vm180, %v1230
      %1263 = vst.msk [vmem:[#allocation3 + $0x82] sm:$0xff] %vm180, %v1231
      %1264 = vst.msk [vmem:[#allocation3 + $0x92] sm:$0xff] %vm180, %v1232
      %1265 = vst.msk [vmem:[#allocation3 + $0x9a] sm:$0xff] %vm180, %v1233
      %1266 = vst.msk [vmem:[#allocation3 + $0xaa] sm:$0xff] %vm180, %v1234
      %1267 = vst.msk [vmem:[#allocation3 + $0xb2] sm:$0xff] %vm180, %v1235
      %1268 = vst.msk [vmem:[#allocation3 + $0xc2] sm:$0xff] %vm180, %v1236
      %1269 = vst.msk [vmem:[#allocation3 + $0xca] sm:$0xff] %vm180, %v1237
      %1270 = vst.msk [vmem:[#allocation3 + $0xda] sm:$0xff] %vm180, %v1238
      %1271 = vst.msk [vmem:[#allocation3 + $0xe2] sm:$0xff] %vm180, %v1239
      %1272 = vst.msk [vmem:[#allocation3 + $0xf2] sm:$0xff] %vm180, %v1240
      %1273 = vst.msk [vmem:[#allocation3 + $0xfa] sm:$0xff] %vm180, %v1241
      %1274 = vst.msk [vmem:[#allocation3 + $0x10a] sm:$0xff] %vm180, %v1242
      %1275 = vst.msk [vmem:[#allocation3 + $0x112] sm:$0xff] %vm180, %v1243
      %1276 = vst.msk [vmem:[#allocation3 + $0x122] sm:$0xff] %vm180, %v1244
      %1277 = vst.msk [vmem:[#allocation3 + $0x12a] sm:$0xff] %vm180, %v1245
      %1278 = vst.msk [vmem:[#allocation3 + $0x13a] sm:$0xff] %vm180, %v1246
      %1279 = vst.msk [vmem:[#allocation3 + $0x142] sm:$0xff] %vm180, %v1247
      %1280 = vst.msk [vmem:[#allocation3 + $0x152] sm:$0xff] %vm180, %v1248
      %1281 = vst.msk [vmem:[#allocation3 + $0x15a] sm:$0xff] %vm180, %v1249
      %1282 = vst.msk [vmem:[#allocation3 + $0x16a] sm:$0xff] %vm180, %v1250
      %1283 = vst.msk [vmem:[#allocation3 + $0x172] sm:$0xff] %vm180, %v1251
      %v1284 = vld [vmem:[#allocation3] sm:$0xff]
      %v1285 = vld [vmem:[#allocation3 + $0x8] sm:$0xff]
      %v1286 = vld [vmem:[#allocation3 + $0x18] sm:$0xff]
      %v1287 = vld [vmem:[#allocation3 + $0x20] sm:$0xff]
      %v1288 = vld [vmem:[#allocation3 + $0x30] sm:$0xff]
      %v1289 = vld [vmem:[#allocation3 + $0x38] sm:$0xff]
      %v1290 = vld [vmem:[#allocation3 + $0x48] sm:$0xff]
      %v1291 = vld [vmem:[#allocation3 + $0x50] sm:$0xff]
      %v1292 = vld [vmem:[#allocation3 + $0x60] sm:$0xff]
      %v1293 = vld [vmem:[#allocation3 + $0x68] sm:$0xff]
      %v1294 = vld [vmem:[#allocation3 + $0x78] sm:$0xff]
      %v1295 = vld [vmem:[#allocation3 + $0x80] sm:$0xff]
      %v1296 = vld [vmem:[#allocation3 + $0x90] sm:$0xff]
      %v1297 = vld [vmem:[#allocation3 + $0x98] sm:$0xff]
      %v1298 = vld [vmem:[#allocation3 + $0xa8] sm:$0xff]
      %v1299 = vld [vmem:[#allocation3 + $0xb0] sm:$0xff]
      %v1300 = vld [vmem:[#allocation3 + $0xc0] sm:$0xff]
      %v1301 = vld [vmem:[#allocation3 + $0xc8] sm:$0xff]
      %v1302 = vld [vmem:[#allocation3 + $0xd8] sm:$0xff]
      %v1303 = vld [vmem:[#allocation3 + $0xe0] sm:$0xff]
      %v1304 = vld [vmem:[#allocation3 + $0xf0] sm:$0xff]
      %v1305 = vld [vmem:[#allocation3 + $0xf8] sm:$0xff]
      %v1306 = vld [vmem:[#allocation3 + $0x108] sm:$0xff]
      %v1307 = vld [vmem:[#allocation3 + $0x110] sm:$0xff]
      %v1308 = vld [vmem:[#allocation3 + $0x120] sm:$0xff]
      %v1309 = vld [vmem:[#allocation3 + $0x128] sm:$0xff]
      %v1310 = vld [vmem:[#allocation3 + $0x138] sm:$0xff]
      %v1311 = vld [vmem:[#allocation3 + $0x140] sm:$0xff]
      %v1312 = vld [vmem:[#allocation3 + $0x150] sm:$0xff]
      %v1313 = vld [vmem:[#allocation3 + $0x158] sm:$0xff]
      %v1314 = vld [vmem:[#allocation3 + $0x168] sm:$0xff]
      %v1315 = vld [vmem:[#allocation3 + $0x170] sm:$0xff]
      %v1316 = vld [vmem:[#allocation3 + $0x1] sm:$0xff]
      %v1317 = vld [vmem:[#allocation3 + $0x9] sm:$0xff]
      %v1318 = vld [vmem:[#allocation3 + $0x19] sm:$0xff]
      %v1319 = vld [vmem:[#allocation3 + $0x21] sm:$0xff]
      %v1320 = vld [vmem:[#allocation3 + $0x31] sm:$0xff]
      %v1321 = vld [vmem:[#allocation3 + $0x39] sm:$0xff]
      %v1322 = vld [vmem:[#allocation3 + $0x49] sm:$0xff]
      %v1323 = vld [vmem:[#allocation3 + $0x51] sm:$0xff]
      %v1324 = vld [vmem:[#allocation3 + $0x61] sm:$0xff]
      %v1325 = vld [vmem:[#allocation3 + $0x69] sm:$0xff]
      %v1326 = vld [vmem:[#allocation3 + $0x79] sm:$0xff]
      %v1327 = vld [vmem:[#allocation3 + $0x81] sm:$0xff]
      %v1328 = vld [vmem:[#allocation3 + $0x91] sm:$0xff]
      %v1329 = vld [vmem:[#allocation3 + $0x99] sm:$0xff]
      %v1330 = vld [vmem:[#allocation3 + $0xa9] sm:$0xff]
      %v1331 = vld [vmem:[#allocation3 + $0xb1] sm:$0xff]
      %v1332 = vld [vmem:[#allocation3 + $0xc1] sm:$0xff]
      %v1333 = vld [vmem:[#allocation3 + $0xc9] sm:$0xff]
      %v1334 = vld [vmem:[#allocation3 + $0xd9] sm:$0xff]
      %v1335 = vld [vmem:[#allocation3 + $0xe1] sm:$0xff]
      %v1336 = vld [vmem:[#allocation3 + $0xf1] sm:$0xff]
      %v1337 = vld [vmem:[#allocation3 + $0xf9] sm:$0xff]
      %v1338 = vld [vmem:[#allocation3 + $0x109] sm:$0xff]
      %v1339 = vld [vmem:[#allocation3 + $0x111] sm:$0xff]
      %v1340 = vld [vmem:[#allocation3 + $0x121] sm:$0xff]
      %v1341 = vld [vmem:[#allocation3 + $0x129] sm:$0xff]
      %v1342 = vld [vmem:[#allocation3 + $0x139] sm:$0xff]
      %v1343 = vld [vmem:[#allocation3 + $0x141] sm:$0xff]
      %v1344 = vld [vmem:[#allocation3 + $0x151] sm:$0xff]
      %v1345 = vld [vmem:[#allocation3 + $0x159] sm:$0xff]
      %v1346 = vld [vmem:[#allocation3 + $0x169] sm:$0xff]
      %v1347 = vld [vmem:[#allocation3 + $0x171] sm:$0xff]
      %v1348 = vmax.f32 %v1284, %v1316
      %v1349 = vmax.f32 %v1285, %v1317
      %v1350 = vmax.f32 %v1286, %v1318
      %v1351 = vmax.f32 %v1287, %v1319
      %v1352 = vmax.f32 %v1288, %v1320
      %v1353 = vmax.f32 %v1289, %v1321
      %v1354 = vmax.f32 %v1290, %v1322
      %v1355 = vmax.f32 %v1291, %v1323
      %v1356 = vmax.f32 %v1292, %v1324
      %v1357 = vmax.f32 %v1293, %v1325
      %v1358 = vmax.f32 %v1294, %v1326
      %v1359 = vmax.f32 %v1295, %v1327
      %v1360 = vmax.f32 %v1296, %v1328
      %v1361 = vmax.f32 %v1297, %v1329
      %v1362 = vmax.f32 %v1298, %v1330
      %v1363 = vmax.f32 %v1299, %v1331
      %v1364 = vmax.f32 %v1300, %v1332
      %v1365 = vmax.f32 %v1301, %v1333
      %v1366 = vmax.f32 %v1302, %v1334
      %v1367 = vmax.f32 %v1303, %v1335
      %v1368 = vmax.f32 %v1304, %v1336
      %v1369 = vmax.f32 %v1305, %v1337
      %v1370 = vmax.f32 %v1306, %v1338
      %v1371 = vmax.f32 %v1307, %v1339
      %v1372 = vmax.f32 %v1308, %v1340
      %v1373 = vmax.f32 %v1309, %v1341
      %v1374 = vmax.f32 %v1310, %v1342
      %v1375 = vmax.f32 %v1311, %v1343
      %v1376 = vmax.f32 %v1312, %v1344
      %v1377 = vmax.f32 %v1313, %v1345
      %v1378 = vmax.f32 %v1314, %v1346
      %v1379 = vmax.f32 %v1315, %v1347
      %v1380 = vld [vmem:[#allocation3 + $0x2] sm:$0xff]
      %v1381 = vld [vmem:[#allocation3 + $0xa] sm:$0xff]
      %v1382 = vld [vmem:[#allocation3 + $0x1a] sm:$0xff]
      %v1383 = vld [vmem:[#allocation3 + $0x22] sm:$0xff]
      %v1384 = vld [vmem:[#allocation3 + $0x32] sm:$0xff]
      %v1385 = vld [vmem:[#allocation3 + $0x3a] sm:$0xff]
      %v1386 = vld [vmem:[#allocation3 + $0x4a] sm:$0xff]
      %v1387 = vld [vmem:[#allocation3 + $0x52] sm:$0xff]
      %v1388 = vld [vmem:[#allocation3 + $0x62] sm:$0xff]
      %v1389 = vld [vmem:[#allocation3 + $0x6a] sm:$0xff]
      %v1390 = vld [vmem:[#allocation3 + $0x7a] sm:$0xff]
      %v1391 = vld [vmem:[#allocation3 + $0x82] sm:$0xff]
      %v1392 = vld [vmem:[#allocation3 + $0x92] sm:$0xff]
      %v1393 = vld [vmem:[#allocation3 + $0x9a] sm:$0xff]
      %v1394 = vld [vmem:[#allocation3 + $0xaa] sm:$0xff]
      %v1395 = vld [vmem:[#allocation3 + $0xb2] sm:$0xff]
      %v1396 = vld [vmem:[#allocation3 + $0xc2] sm:$0xff]
      %v1397 = vld [vmem:[#allocation3 + $0xca] sm:$0xff]
      %v1398 = vld [vmem:[#allocation3 + $0xda] sm:$0xff]
      %v1399 = vld [vmem:[#allocation3 + $0xe2] sm:$0xff]
      %v1400 = vld [vmem:[#allocation3 + $0xf2] sm:$0xff]
      %v1401 = vld [vmem:[#allocation3 + $0xfa] sm:$0xff]
      %v1402 = vld [vmem:[#allocation3 + $0x10a] sm:$0xff]
      %v1403 = vld [vmem:[#allocation3 + $0x112] sm:$0xff]
      %v1404 = vld [vmem:[#allocation3 + $0x122] sm:$0xff]
      %v1405 = vld [vmem:[#allocation3 + $0x12a] sm:$0xff]
      %v1406 = vld [vmem:[#allocation3 + $0x13a] sm:$0xff]
      %v1407 = vld [vmem:[#allocation3 + $0x142] sm:$0xff]
      %v1408 = vld [vmem:[#allocation3 + $0x152] sm:$0xff]
      %v1409 = vld [vmem:[#allocation3 + $0x15a] sm:$0xff]
      %v1410 = vld [vmem:[#allocation3 + $0x16a] sm:$0xff]
      %v1411 = vld [vmem:[#allocation3 + $0x172] sm:$0xff]
      %v1412 = vmax.f32 %v1348, %v1380
      %v1413 = vmax.f32 %v1349, %v1381
      %v1414 = vmax.f32 %v1350, %v1382
      %v1415 = vmax.f32 %v1351, %v1383
      %v1416 = vmax.f32 %v1352, %v1384
      %v1417 = vmax.f32 %v1353, %v1385
      %v1418 = vmax.f32 %v1354, %v1386
      %v1419 = vmax.f32 %v1355, %v1387
      %v1420 = vmax.f32 %v1356, %v1388
      %v1421 = vmax.f32 %v1357, %v1389
      %v1422 = vmax.f32 %v1358, %v1390
      %v1423 = vmax.f32 %v1359, %v1391
      %v1424 = vmax.f32 %v1360, %v1392
      %v1425 = vmax.f32 %v1361, %v1393
      %v1426 = vmax.f32 %v1362, %v1394
      %v1427 = vmax.f32 %v1363, %v1395
      %v1428 = vmax.f32 %v1364, %v1396
      %v1429 = vmax.f32 %v1365, %v1397
      %v1430 = vmax.f32 %v1366, %v1398
      %v1431 = vmax.f32 %v1367, %v1399
      %v1432 = vmax.f32 %v1368, %v1400
      %v1433 = vmax.f32 %v1369, %v1401
      %v1434 = vmax.f32 %v1370, %v1402
      %v1435 = vmax.f32 %v1371, %v1403
      %v1436 = vmax.f32 %v1372, %v1404
      %v1437 = vmax.f32 %v1373, %v1405
      %v1438 = vmax.f32 %v1374, %v1406
      %v1439 = vmax.f32 %v1375, %v1407
      %v1440 = vmax.f32 %v1376, %v1408
      %v1441 = vmax.f32 %v1377, %v1409
      %v1442 = vmax.f32 %v1378, %v1410
      %v1443 = vmax.f32 %v1379, %v1411
      %v1444 = vld [vmem:[#allocation3 + $0x3] sm:$0xff]
      %v1445 = vld [vmem:[#allocation3 + $0xb] sm:$0xff]
      %v1446 = vld [vmem:[#allocation3 + $0x1b] sm:$0xff]
      %v1447 = vld [vmem:[#allocation3 + $0x23] sm:$0xff]
      %v1448 = vld [vmem:[#allocation3 + $0x33] sm:$0xff]
      %v1449 = vld [vmem:[#allocation3 + $0x3b] sm:$0xff]
      %v1450 = vld [vmem:[#allocation3 + $0x4b] sm:$0xff]
      %v1451 = vld [vmem:[#allocation3 + $0x53] sm:$0xff]
      %v1452 = vld [vmem:[#allocation3 + $0x63] sm:$0xff]
      %v1453 = vld [vmem:[#allocation3 + $0x6b] sm:$0xff]
      %v1454 = vld [vmem:[#allocation3 + $0x7b] sm:$0xff]
      %v1455 = vld [vmem:[#allocation3 + $0x83] sm:$0xff]
      %v1456 = vld [vmem:[#allocation3 + $0x93] sm:$0xff]
      %v1457 = vld [vmem:[#allocation3 + $0x9b] sm:$0xff]
      %v1458 = vld [vmem:[#allocation3 + $0xab] sm:$0xff]
      %v1459 = vld [vmem:[#allocation3 + $0xb3] sm:$0xff]
      %v1460 = vld [vmem:[#allocation3 + $0xc3] sm:$0xff]
      %v1461 = vld [vmem:[#allocation3 + $0xcb] sm:$0xff]
      %v1462 = vld [vmem:[#allocation3 + $0xdb] sm:$0xff]
      %v1463 = vld [vmem:[#allocation3 + $0xe3] sm:$0xff]
      %v1464 = vld [vmem:[#allocation3 + $0xf3] sm:$0xff]
      %v1465 = vld [vmem:[#allocation3 + $0xfb] sm:$0xff]
      %v1466 = vld [vmem:[#allocation3 + $0x10b] sm:$0xff]
      %v1467 = vld [vmem:[#allocation3 + $0x113] sm:$0xff]
      %v1468 = vld [vmem:[#allocation3 + $0x123] sm:$0xff]
      %v1469 = vld [vmem:[#allocation3 + $0x12b] sm:$0xff]
      %v1470 = vld [vmem:[#allocation3 + $0x13b] sm:$0xff]
      %v1471 = vld [vmem:[#allocation3 + $0x143] sm:$0xff]
      %v1472 = vld [vmem:[#allocation3 + $0x153] sm:$0xff]
      %v1473 = vld [vmem:[#allocation3 + $0x15b] sm:$0xff]
      %v1474 = vld [vmem:[#allocation3 + $0x16b] sm:$0xff]
      %v1475 = vld [vmem:[#allocation3 + $0x173] sm:$0xff]
      %v1476 = vmax.f32 %v1412, %v1444
      %v1477 = vmax.f32 %v1413, %v1445
      %v1478 = vmax.f32 %v1414, %v1446
      %v1479 = vmax.f32 %v1415, %v1447
      %v1480 = vmax.f32 %v1416, %v1448
      %v1481 = vmax.f32 %v1417, %v1449
      %v1482 = vmax.f32 %v1418, %v1450
      %v1483 = vmax.f32 %v1419, %v1451
      %v1484 = vmax.f32 %v1420, %v1452
      %v1485 = vmax.f32 %v1421, %v1453
      %v1486 = vmax.f32 %v1422, %v1454
      %v1487 = vmax.f32 %v1423, %v1455
      %v1488 = vmax.f32 %v1424, %v1456
      %v1489 = vmax.f32 %v1425, %v1457
      %v1490 = vmax.f32 %v1426, %v1458
      %v1491 = vmax.f32 %v1427, %v1459
      %v1492 = vmax.f32 %v1428, %v1460
      %v1493 = vmax.f32 %v1429, %v1461
      %v1494 = vmax.f32 %v1430, %v1462
      %v1495 = vmax.f32 %v1431, %v1463
      %v1496 = vmax.f32 %v1432, %v1464
      %v1497 = vmax.f32 %v1433, %v1465
      %v1498 = vmax.f32 %v1434, %v1466
      %v1499 = vmax.f32 %v1435, %v1467
      %v1500 = vmax.f32 %v1436, %v1468
      %v1501 = vmax.f32 %v1437, %v1469
      %v1502 = vmax.f32 %v1438, %v1470
      %v1503 = vmax.f32 %v1439, %v1471
      %v1504 = vmax.f32 %v1440, %v1472
      %v1505 = vmax.f32 %v1441, %v1473
      %v1506 = vmax.f32 %v1442, %v1474
      %v1507 = vmax.f32 %v1443, %v1475
      %v1508 = vld [vmem:[#allocation3 + $0x4] sm:$0xff]
      %v1509 = vld [vmem:[#allocation3 + $0xc] sm:$0xff]
      %v1510 = vld [vmem:[#allocation3 + $0x1c] sm:$0xff]
      %v1511 = vld [vmem:[#allocation3 + $0x24] sm:$0xff]
      %v1512 = vld [vmem:[#allocation3 + $0x34] sm:$0xff]
      %v1513 = vld [vmem:[#allocation3 + $0x3c] sm:$0xff]
      %v1514 = vld [vmem:[#allocation3 + $0x4c] sm:$0xff]
      %v1515 = vld [vmem:[#allocation3 + $0x54] sm:$0xff]
      %v1516 = vld [vmem:[#allocation3 + $0x64] sm:$0xff]
      %v1517 = vld [vmem:[#allocation3 + $0x6c] sm:$0xff]
      %v1518 = vld [vmem:[#allocation3 + $0x7c] sm:$0xff]
      %v1519 = vld [vmem:[#allocation3 + $0x84] sm:$0xff]
      %v1520 = vld [vmem:[#allocation3 + $0x94] sm:$0xff]
      %v1521 = vld [vmem:[#allocation3 + $0x9c] sm:$0xff]
      %v1522 = vld [vmem:[#allocation3 + $0xac] sm:$0xff]
      %v1523 = vld [vmem:[#allocation3 + $0xb4] sm:$0xff]
      %v1524 = vld [vmem:[#allocation3 + $0xc4] sm:$0xff]
      %v1525 = vld [vmem:[#allocation3 + $0xcc] sm:$0xff]
      %v1526 = vld [vmem:[#allocation3 + $0xdc] sm:$0xff]
      %v1527 = vld [vmem:[#allocation3 + $0xe4] sm:$0xff]
      %v1528 = vld [vmem:[#allocation3 + $0xf4] sm:$0xff]
      %v1529 = vld [vmem:[#allocation3 + $0xfc] sm:$0xff]
      %v1530 = vld [vmem:[#allocation3 + $0x10c] sm:$0xff]
      %v1531 = vld [vmem:[#allocation3 + $0x114] sm:$0xff]
      %v1532 = vld [vmem:[#allocation3 + $0x124] sm:$0xff]
      %v1533 = vld [vmem:[#allocation3 + $0x12c] sm:$0xff]
      %v1534 = vld [vmem:[#allocation3 + $0x13c] sm:$0xff]
      %v1535 = vld [vmem:[#allocation3 + $0x144] sm:$0xff]
      %v1536 = vld [vmem:[#allocation3 + $0x154] sm:$0xff]
      %v1537 = vld [vmem:[#allocation3 + $0x15c] sm:$0xff]
      %v1538 = vld [vmem:[#allocation3 + $0x16c] sm:$0xff]
      %v1539 = vld [vmem:[#allocation3 + $0x174] sm:$0xff]
      %v1540 = vmax.f32 %v1476, %v1508
      %v1541 = vmax.f32 %v1477, %v1509
      %v1542 = vmax.f32 %v1478, %v1510
      %v1543 = vmax.f32 %v1479, %v1511
      %v1544 = vmax.f32 %v1480, %v1512
      %v1545 = vmax.f32 %v1481, %v1513
      %v1546 = vmax.f32 %v1482, %v1514
      %v1547 = vmax.f32 %v1483, %v1515
      %v1548 = vmax.f32 %v1484, %v1516
      %v1549 = vmax.f32 %v1485, %v1517
      %v1550 = vmax.f32 %v1486, %v1518
      %v1551 = vmax.f32 %v1487, %v1519
      %v1552 = vmax.f32 %v1488, %v1520
      %v1553 = vmax.f32 %v1489, %v1521
      %v1554 = vmax.f32 %v1490, %v1522
      %v1555 = vmax.f32 %v1491, %v1523
      %v1556 = vmax.f32 %v1492, %v1524
      %v1557 = vmax.f32 %v1493, %v1525
      %v1558 = vmax.f32 %v1494, %v1526
      %v1559 = vmax.f32 %v1495, %v1527
      %v1560 = vmax.f32 %v1496, %v1528
      %v1561 = vmax.f32 %v1497, %v1529
      %v1562 = vmax.f32 %v1498, %v1530
      %v1563 = vmax.f32 %v1499, %v1531
      %v1564 = vmax.f32 %v1500, %v1532
      %v1565 = vmax.f32 %v1501, %v1533
      %v1566 = vmax.f32 %v1502, %v1534
      %v1567 = vmax.f32 %v1503, %v1535
      %v1568 = vmax.f32 %v1504, %v1536
      %v1569 = vmax.f32 %v1505, %v1537
      %v1570 = vmax.f32 %v1506, %v1538
      %v1571 = vmax.f32 %v1507, %v1539
      %s1572 = scalar_lea.vmem %s147, 512
      %1573 = vst.msk [vmem:[%s1572] sm:$0xff] %vm180, %v1540
      %1574 = vst.msk [vmem:[%s1572 + $0x8] sm:$0xff] %vm180, %v1541
      %1575 = vst.msk [vmem:[%s1572 + $0x10] sm:$0xff] %vm180, %v1542
      %1576 = vst.msk [vmem:[%s1572 + $0x18] sm:$0xff] %vm180, %v1543
      %1577 = vst.msk [vmem:[%s1572 + $0x20] sm:$0xff] %vm180, %v1544
      %1578 = vst.msk [vmem:[%s1572 + $0x28] sm:$0xff] %vm180, %v1545
      %1579 = vst.msk [vmem:[%s1572 + $0x30] sm:$0xff] %vm180, %v1546
      %1580 = vst.msk [vmem:[%s1572 + $0x38] sm:$0xff] %vm180, %v1547
      %1581 = vst.msk [vmem:[%s1572 + $0x40] sm:$0xff] %vm180, %v1548
      %1582 = vst.msk [vmem:[%s1572 + $0x48] sm:$0xff] %vm180, %v1549
      %1583 = vst.msk [vmem:[%s1572 + $0x50] sm:$0xff] %vm180, %v1550
      %1584 = vst.msk [vmem:[%s1572 + $0x58] sm:$0xff] %vm180, %v1551
      %1585 = vst.msk [vmem:[%s1572 + $0x60] sm:$0xff] %vm180, %v1552
      %1586 = vst.msk [vmem:[%s1572 + $0x68] sm:$0xff] %vm180, %v1553
      %1587 = vst.msk [vmem:[%s1572 + $0x70] sm:$0xff] %vm180, %v1554
      %1588 = vst.msk [vmem:[%s1572 + $0x78] sm:$0xff] %vm180, %v1555
      %1589 = vst.msk [vmem:[%s1572 + $0x80] sm:$0xff] %vm180, %v1556
      %1590 = vst.msk [vmem:[%s1572 + $0x88] sm:$0xff] %vm180, %v1557
      %1591 = vst.msk [vmem:[%s1572 + $0x90] sm:$0xff] %vm180, %v1558
      %1592 = vst.msk [vmem:[%s1572 + $0x98] sm:$0xff] %vm180, %v1559
      %1593 = vst.msk [vmem:[%s1572 + $0xa0] sm:$0xff] %vm180, %v1560
      %1594 = vst.msk [vmem:[%s1572 + $0xa8] sm:$0xff] %vm180, %v1561
      %1595 = vst.msk [vmem:[%s1572 + $0xb0] sm:$0xff] %vm180, %v1562
      %1596 = vst.msk [vmem:[%s1572 + $0xb8] sm:$0xff] %vm180, %v1563
      %1597 = vst.msk [vmem:[%s1572 + $0xc0] sm:$0xff] %vm180, %v1564
      %1598 = vst.msk [vmem:[%s1572 + $0xc8] sm:$0xff] %vm180, %v1565
      %1599 = vst.msk [vmem:[%s1572 + $0xd0] sm:$0xff] %vm180, %v1566
      %1600 = vst.msk [vmem:[%s1572 + $0xd8] sm:$0xff] %vm180, %v1567
      %1601 = vst.msk [vmem:[%s1572 + $0xe0] sm:$0xff] %vm180, %v1568
      %1602 = vst.msk [vmem:[%s1572 + $0xe8] sm:$0xff] %vm180, %v1569
      %1603 = vst.msk [vmem:[%s1572 + $0xf0] sm:$0xff] %vm180, %v1570
      %1604 = vst.msk [vmem:[%s1572 + $0xf8] sm:$0xff] %vm180, %v1571
      %1605 = vst.msk [vmem:[%s255] sm:$0xff] %vm180, %v1540
      %1606 = vst.msk [vmem:[%s255 + $0x8] sm:$0xff] %vm180, %v1541
      %1607 = vst.msk [vmem:[%s255 + $0x10] sm:$0xff] %vm180, %v1542
      %1608 = vst.msk [vmem:[%s255 + $0x18] sm:$0xff] %vm180, %v1543
      %1609 = vst.msk [vmem:[%s255 + $0x20] sm:$0xff] %vm180, %v1544
      %1610 = vst.msk [vmem:[%s255 + $0x28] sm:$0xff] %vm180, %v1545
      %1611 = vst.msk [vmem:[%s255 + $0x30] sm:$0xff] %vm180, %v1546
      %1612 = vst.msk [vmem:[%s255 + $0x38] sm:$0xff] %vm180, %v1547
      %1613 = vst.msk [vmem:[%s255 + $0x40] sm:$0xff] %vm180, %v1548
      %1614 = vst.msk [vmem:[%s255 + $0x48] sm:$0xff] %vm180, %v1549
      %1615 = vst.msk [vmem:[%s255 + $0x50] sm:$0xff] %vm180, %v1550
      %1616 = vst.msk [vmem:[%s255 + $0x58] sm:$0xff] %vm180, %v1551
      %1617 = vst.msk [vmem:[%s255 + $0x60] sm:$0xff] %vm180, %v1552
      %1618 = vst.msk [vmem:[%s255 + $0x68] sm:$0xff] %vm180, %v1553
      %1619 = vst.msk [vmem:[%s255 + $0x70] sm:$0xff] %vm180, %v1554
      %1620 = vst.msk [vmem:[%s255 + $0x78] sm:$0xff] %vm180, %v1555
      %1621 = vst.msk [vmem:[%s255 + $0x80] sm:$0xff] %vm180, %v1556
      %1622 = vst.msk [vmem:[%s255 + $0x88] sm:$0xff] %vm180, %v1557
      %1623 = vst.msk [vmem:[%s255 + $0x90] sm:$0xff] %vm180, %v1558
      %1624 = vst.msk [vmem:[%s255 + $0x98] sm:$0xff] %vm180, %v1559
      %1625 = vst.msk [vmem:[%s255 + $0xa0] sm:$0xff] %vm180, %v1560
      %1626 = vst.msk [vmem:[%s255 + $0xa8] sm:$0xff] %vm180, %v1561
      %1627 = vst.msk [vmem:[%s255 + $0xb0] sm:$0xff] %vm180, %v1562
      %1628 = vst.msk [vmem:[%s255 + $0xb8] sm:$0xff] %vm180, %v1563
      %1629 = vst.msk [vmem:[%s255 + $0xc0] sm:$0xff] %vm180, %v1564
      %1630 = vst.msk [vmem:[%s255 + $0xc8] sm:$0xff] %vm180, %v1565
      %1631 = vst.msk [vmem:[%s255 + $0xd0] sm:$0xff] %vm180, %v1566
      %1632 = vst.msk [vmem:[%s255 + $0xd8] sm:$0xff] %vm180, %v1567
      %1633 = vst.msk [vmem:[%s255 + $0xe0] sm:$0xff] %vm180, %v1568
      %1634 = vst.msk [vmem:[%s255 + $0xe8] sm:$0xff] %vm180, %v1569
      %1635 = vst.msk [vmem:[%s255 + $0xf0] sm:$0xff] %vm180, %v1570
      %1636 = vst.msk [vmem:[%s255 + $0xf8] sm:$0xff] %vm180, %v1571
      %v1637 = vld [vmem:[#allocation2] sm:$0xff]
      %v1638 = vld [vmem:[#allocation2 + $0x8] sm:$0xff]
      %v1639 = vld [vmem:[#allocation2 + $0x10] sm:$0xff]
      %v1640 = vld [vmem:[#allocation2 + $0x18] sm:$0xff]
      %v1641 = vld [vmem:[#allocation2 + $0x20] sm:$0xff]
      %v1642 = vld [vmem:[#allocation2 + $0x28] sm:$0xff]
      %v1643 = vld [vmem:[#allocation2 + $0x30] sm:$0xff]
      %v1644 = vld [vmem:[#allocation2 + $0x38] sm:$0xff]
      %v1645 = vld [vmem:[#allocation2 + $0x40] sm:$0xff]
      %v1646 = vld [vmem:[#allocation2 + $0x48] sm:$0xff]
      %v1647 = vld [vmem:[#allocation2 + $0x50] sm:$0xff]
      %v1648 = vld [vmem:[#allocation2 + $0x58] sm:$0xff]
      %v1649 = vld [vmem:[#allocation2 + $0x60] sm:$0xff]
      %v1650 = vld [vmem:[#allocation2 + $0x68] sm:$0xff]
      %v1651 = vld [vmem:[#allocation2 + $0x70] sm:$0xff]
      %v1652 = vld [vmem:[#allocation2 + $0x78] sm:$0xff]
      %v1653 = vld [vmem:[#allocation2 + $0x80] sm:$0xff]
      %v1654 = vld [vmem:[#allocation2 + $0x88] sm:$0xff]
      %v1655 = vld [vmem:[#allocation2 + $0x90] sm:$0xff]
      %v1656 = vld [vmem:[#allocation2 + $0x98] sm:$0xff]
      %v1657 = vld [vmem:[#allocation2 + $0xa0] sm:$0xff]
      %v1658 = vld [vmem:[#allocation2 + $0xa8] sm:$0xff]
      %v1659 = vld [vmem:[#allocation2 + $0xb0] sm:$0xff]
      %v1660 = vld [vmem:[#allocation2 + $0xb8] sm:$0xff]
      %v1661 = vld [vmem:[#allocation2 + $0xc0] sm:$0xff]
      %v1662 = vld [vmem:[#allocation2 + $0xc8] sm:$0xff]
      %v1663 = vld [vmem:[#allocation2 + $0xd0] sm:$0xff]
      %v1664 = vld [vmem:[#allocation2 + $0xd8] sm:$0xff]
      %v1665 = vld [vmem:[#allocation2 + $0xe0] sm:$0xff]
      %v1666 = vld [vmem:[#allocation2 + $0xe8] sm:$0xff]
      %v1667 = vld [vmem:[#allocation2 + $0xf0] sm:$0xff]
      %v1668 = vld [vmem:[#allocation2 + $0xf8] sm:$0xff]
      %v1669 = vld [vmem:[%s320] sm:$0xff]
      %v1670 = vld [vmem:[%s320 + $0x8] sm:$0xff]
      %v1671 = vld [vmem:[%s320 + $0x10] sm:$0xff]
      %v1672 = vld [vmem:[%s320 + $0x18] sm:$0xff]
      %v1673 = vld [vmem:[%s320 + $0x20] sm:$0xff]
      %v1674 = vld [vmem:[%s320 + $0x28] sm:$0xff]
      %v1675 = vld [vmem:[%s320 + $0x30] sm:$0xff]
      %v1676 = vld [vmem:[%s320 + $0x38] sm:$0xff]
      %v1677 = vld [vmem:[%s320 + $0x40] sm:$0xff]
      %v1678 = vld [vmem:[%s320 + $0x48] sm:$0xff]
      %v1679 = vld [vmem:[%s320 + $0x50] sm:$0xff]
      %v1680 = vld [vmem:[%s320 + $0x58] sm:$0xff]
      %v1681 = vld [vmem:[%s320 + $0x60] sm:$0xff]
      %v1682 = vld [vmem:[%s320 + $0x68] sm:$0xff]
      %v1683 = vld [vmem:[%s320 + $0x70] sm:$0xff]
      %v1684 = vld [vmem:[%s320 + $0x78] sm:$0xff]
      %v1685 = vld [vmem:[%s320 + $0x80] sm:$0xff]
      %v1686 = vld [vmem:[%s320 + $0x88] sm:$0xff]
      %v1687 = vld [vmem:[%s320 + $0x90] sm:$0xff]
      %v1688 = vld [vmem:[%s320 + $0x98] sm:$0xff]
      %v1689 = vld [vmem:[%s320 + $0xa0] sm:$0xff]
      %v1690 = vld [vmem:[%s320 + $0xa8] sm:$0xff]
      %v1691 = vld [vmem:[%s320 + $0xb0] sm:$0xff]
      %v1692 = vld [vmem:[%s320 + $0xb8] sm:$0xff]
      %v1693 = vld [vmem:[%s320 + $0xc0] sm:$0xff]
      %v1694 = vld [vmem:[%s320 + $0xc8] sm:$0xff]
      %v1695 = vld [vmem:[%s320 + $0xd0] sm:$0xff]
      %v1696 = vld [vmem:[%s320 + $0xd8] sm:$0xff]
      %v1697 = vld [vmem:[%s320 + $0xe0] sm:$0xff]
      %v1698 = vld [vmem:[%s320 + $0xe8] sm:$0xff]
      %v1699 = vld [vmem:[%s320 + $0xf0] sm:$0xff]
      %v1700 = vld [vmem:[%s320 + $0xf8] sm:$0xff]
      %v1701 = vmax.f32 %v1637, %v1669
      %v1702 = vmax.f32 %v1638, %v1670
      %v1703 = vmax.f32 %v1639, %v1671
      %v1704 = vmax.f32 %v1640, %v1672
      %v1705 = vmax.f32 %v1641, %v1673
      %v1706 = vmax.f32 %v1642, %v1674
      %v1707 = vmax.f32 %v1643, %v1675
      %v1708 = vmax.f32 %v1644, %v1676
      %v1709 = vmax.f32 %v1645, %v1677
      %v1710 = vmax.f32 %v1646, %v1678
      %v1711 = vmax.f32 %v1647, %v1679
      %v1712 = vmax.f32 %v1648, %v1680
      %v1713 = vmax.f32 %v1649, %v1681
      %v1714 = vmax.f32 %v1650, %v1682
      %v1715 = vmax.f32 %v1651, %v1683
      %v1716 = vmax.f32 %v1652, %v1684
      %v1717 = vmax.f32 %v1653, %v1685
      %v1718 = vmax.f32 %v1654, %v1686
      %v1719 = vmax.f32 %v1655, %v1687
      %v1720 = vmax.f32 %v1656, %v1688
      %v1721 = vmax.f32 %v1657, %v1689
      %v1722 = vmax.f32 %v1658, %v1690
      %v1723 = vmax.f32 %v1659, %v1691
      %v1724 = vmax.f32 %v1660, %v1692
      %v1725 = vmax.f32 %v1661, %v1693
      %v1726 = vmax.f32 %v1662, %v1694
      %v1727 = vmax.f32 %v1663, %v1695
      %v1728 = vmax.f32 %v1664, %v1696
      %v1729 = vmax.f32 %v1665, %v1697
      %v1730 = vmax.f32 %v1666, %v1698
      %v1731 = vmax.f32 %v1667, %v1699
      %v1732 = vmax.f32 %v1668, %v1700
      %v1733 = vld [vmem:[%s255] sm:$0xff]
      %v1734 = vld [vmem:[%s255 + $0x8] sm:$0xff]
      %v1735 = vld [vmem:[%s255 + $0x10] sm:$0xff]
      %v1736 = vld [vmem:[%s255 + $0x18] sm:$0xff]
      %v1737 = vld [vmem:[%s255 + $0x20] sm:$0xff]
      %v1738 = vld [vmem:[%s255 + $0x28] sm:$0xff]
      %v1739 = vld [vmem:[%s255 + $0x30] sm:$0xff]
      %v1740 = vld [vmem:[%s255 + $0x38] sm:$0xff]
      %v1741 = vld [vmem:[%s255 + $0x40] sm:$0xff]
      %v1742 = vld [vmem:[%s255 + $0x48] sm:$0xff]
      %v1743 = vld [vmem:[%s255 + $0x50] sm:$0xff]
      %v1744 = vld [vmem:[%s255 + $0x58] sm:$0xff]
      %v1745 = vld [vmem:[%s255 + $0x60] sm:$0xff]
      %v1746 = vld [vmem:[%s255 + $0x68] sm:$0xff]
      %v1747 = vld [vmem:[%s255 + $0x70] sm:$0xff]
      %v1748 = vld [vmem:[%s255 + $0x78] sm:$0xff]
      %v1749 = vld [vmem:[%s255 + $0x80] sm:$0xff]
      %v1750 = vld [vmem:[%s255 + $0x88] sm:$0xff]
      %v1751 = vld [vmem:[%s255 + $0x90] sm:$0xff]
      %v1752 = vld [vmem:[%s255 + $0x98] sm:$0xff]
      %v1753 = vld [vmem:[%s255 + $0xa0] sm:$0xff]
      %v1754 = vld [vmem:[%s255 + $0xa8] sm:$0xff]
      %v1755 = vld [vmem:[%s255 + $0xb0] sm:$0xff]
      %v1756 = vld [vmem:[%s255 + $0xb8] sm:$0xff]
      %v1757 = vld [vmem:[%s255 + $0xc0] sm:$0xff]
      %v1758 = vld [vmem:[%s255 + $0xc8] sm:$0xff]
      %v1759 = vld [vmem:[%s255 + $0xd0] sm:$0xff]
      %v1760 = vld [vmem:[%s255 + $0xd8] sm:$0xff]
      %v1761 = vld [vmem:[%s255 + $0xe0] sm:$0xff]
      %v1762 = vld [vmem:[%s255 + $0xe8] sm:$0xff]
      %v1763 = vld [vmem:[%s255 + $0xf0] sm:$0xff]
      %v1764 = vld [vmem:[%s255 + $0xf8] sm:$0xff]
      %v1765 = vmax.f32 %v1701, %v1733
      %v1766 = vmax.f32 %v1702, %v1734
      %v1767 = vmax.f32 %v1703, %v1735
      %v1768 = vmax.f32 %v1704, %v1736
      %v1769 = vmax.f32 %v1705, %v1737
      %v1770 = vmax.f32 %v1706, %v1738
      %v1771 = vmax.f32 %v1707, %v1739
      %v1772 = vmax.f32 %v1708, %v1740
      %v1773 = vmax.f32 %v1709, %v1741
      %v1774 = vmax.f32 %v1710, %v1742
      %v1775 = vmax.f32 %v1711, %v1743
      %v1776 = vmax.f32 %v1712, %v1744
      %v1777 = vmax.f32 %v1713, %v1745
      %v1778 = vmax.f32 %v1714, %v1746
      %v1779 = vmax.f32 %v1715, %v1747
      %v1780 = vmax.f32 %v1716, %v1748
      %v1781 = vmax.f32 %v1717, %v1749
      %v1782 = vmax.f32 %v1718, %v1750
      %v1783 = vmax.f32 %v1719, %v1751
      %v1784 = vmax.f32 %v1720, %v1752
      %v1785 = vmax.f32 %v1721, %v1753
      %v1786 = vmax.f32 %v1722, %v1754
      %v1787 = vmax.f32 %v1723, %v1755
      %v1788 = vmax.f32 %v1724, %v1756
      %v1789 = vmax.f32 %v1725, %v1757
      %v1790 = vmax.f32 %v1726, %v1758
      %v1791 = vmax.f32 %v1727, %v1759
      %v1792 = vmax.f32 %v1728, %v1760
      %v1793 = vmax.f32 %v1729, %v1761
      %v1794 = vmax.f32 %v1730, %v1762
      %v1795 = vmax.f32 %v1731, %v1763
      %v1796 = vmax.f32 %v1732, %v1764
      %v1797 = vld [vmem:[%s449] sm:$0xff]
      %v1798 = vld [vmem:[%s449 + $0x8] sm:$0xff]
      %v1799 = vld [vmem:[%s449 + $0x10] sm:$0xff]
      %v1800 = vld [vmem:[%s449 + $0x18] sm:$0xff]
      %v1801 = vld [vmem:[%s449 + $0x20] sm:$0xff]
      %v1802 = vld [vmem:[%s449 + $0x28] sm:$0xff]
      %v1803 = vld [vmem:[%s449 + $0x30] sm:$0xff]
      %v1804 = vld [vmem:[%s449 + $0x38] sm:$0xff]
      %v1805 = vld [vmem:[%s449 + $0x40] sm:$0xff]
      %v1806 = vld [vmem:[%s449 + $0x48] sm:$0xff]
      %v1807 = vld [vmem:[%s449 + $0x50] sm:$0xff]
      %v1808 = vld [vmem:[%s449 + $0x58] sm:$0xff]
      %v1809 = vld [vmem:[%s449 + $0x60] sm:$0xff]
      %v1810 = vld [vmem:[%s449 + $0x68] sm:$0xff]
      %v1811 = vld [vmem:[%s449 + $0x70] sm:$0xff]
      %v1812 = vld [vmem:[%s449 + $0x78] sm:$0xff]
      %v1813 = vld [vmem:[%s449 + $0x80] sm:$0xff]
      %v1814 = vld [vmem:[%s449 + $0x88] sm:$0xff]
      %v1815 = vld [vmem:[%s449 + $0x90] sm:$0xff]
      %v1816 = vld [vmem:[%s449 + $0x98] sm:$0xff]
      %v1817 = vld [vmem:[%s449 + $0xa0] sm:$0xff]
      %v1818 = vld [vmem:[%s449 + $0xa8] sm:$0xff]
      %v1819 = vld [vmem:[%s449 + $0xb0] sm:$0xff]
      %v1820 = vld [vmem:[%s449 + $0xb8] sm:$0xff]
      %v1821 = vld [vmem:[%s449 + $0xc0] sm:$0xff]
      %v1822 = vld [vmem:[%s449 + $0xc8] sm:$0xff]
      %v1823 = vld [vmem:[%s449 + $0xd0] sm:$0xff]
      %v1824 = vld [vmem:[%s449 + $0xd8] sm:$0xff]
      %v1825 = vld [vmem:[%s449 + $0xe0] sm:$0xff]
      %v1826 = vld [vmem:[%s449 + $0xe8] sm:$0xff]
      %v1827 = vld [vmem:[%s449 + $0xf0] sm:$0xff]
      %v1828 = vld [vmem:[%s449 + $0xf8] sm:$0xff]
      %v1829 = vmax.f32 %v1765, %v1797
      %v1830 = vmax.f32 %v1766, %v1798
      %v1831 = vmax.f32 %v1767, %v1799
      %v1832 = vmax.f32 %v1768, %v1800
      %v1833 = vmax.f32 %v1769, %v1801
      %v1834 = vmax.f32 %v1770, %v1802
      %v1835 = vmax.f32 %v1771, %v1803
      %v1836 = vmax.f32 %v1772, %v1804
      %v1837 = vmax.f32 %v1773, %v1805
      %v1838 = vmax.f32 %v1774, %v1806
      %v1839 = vmax.f32 %v1775, %v1807
      %v1840 = vmax.f32 %v1776, %v1808
      %v1841 = vmax.f32 %v1777, %v1809
      %v1842 = vmax.f32 %v1778, %v1810
      %v1843 = vmax.f32 %v1779, %v1811
      %v1844 = vmax.f32 %v1780, %v1812
      %v1845 = vmax.f32 %v1781, %v1813
      %v1846 = vmax.f32 %v1782, %v1814
      %v1847 = vmax.f32 %v1783, %v1815
      %v1848 = vmax.f32 %v1784, %v1816
      %v1849 = vmax.f32 %v1785, %v1817
      %v1850 = vmax.f32 %v1786, %v1818
      %v1851 = vmax.f32 %v1787, %v1819
      %v1852 = vmax.f32 %v1788, %v1820
      %v1853 = vmax.f32 %v1789, %v1821
      %v1854 = vmax.f32 %v1790, %v1822
      %v1855 = vmax.f32 %v1791, %v1823
      %v1856 = vmax.f32 %v1792, %v1824
      %v1857 = vmax.f32 %v1793, %v1825
      %v1858 = vmax.f32 %v1794, %v1826
      %v1859 = vmax.f32 %v1795, %v1827
      %v1860 = vmax.f32 %v1796, %v1828
      %v1861 = vld [vmem:[%s514] sm:$0xff]
      %v1862 = vld [vmem:[%s514 + $0x8] sm:$0xff]
      %v1863 = vld [vmem:[%s514 + $0x10] sm:$0xff]
      %v1864 = vld [vmem:[%s514 + $0x18] sm:$0xff]
      %v1865 = vld [vmem:[%s514 + $0x20] sm:$0xff]
      %v1866 = vld [vmem:[%s514 + $0x28] sm:$0xff]
      %v1867 = vld [vmem:[%s514 + $0x30] sm:$0xff]
      %v1868 = vld [vmem:[%s514 + $0x38] sm:$0xff]
      %v1869 = vld [vmem:[%s514 + $0x40] sm:$0xff]
      %v1870 = vld [vmem:[%s514 + $0x48] sm:$0xff]
      %v1871 = vld [vmem:[%s514 + $0x50] sm:$0xff]
      %v1872 = vld [vmem:[%s514 + $0x58] sm:$0xff]
      %v1873 = vld [vmem:[%s514 + $0x60] sm:$0xff]
      %v1874 = vld [vmem:[%s514 + $0x68] sm:$0xff]
      %v1875 = vld [vmem:[%s514 + $0x70] sm:$0xff]
      %v1876 = vld [vmem:[%s514 + $0x78] sm:$0xff]
      %v1877 = vld [vmem:[%s514 + $0x80] sm:$0xff]
      %v1878 = vld [vmem:[%s514 + $0x88] sm:$0xff]
      %v1879 = vld [vmem:[%s514 + $0x90] sm:$0xff]
      %v1880 = vld [vmem:[%s514 + $0x98] sm:$0xff]
      %v1881 = vld [vmem:[%s514 + $0xa0] sm:$0xff]
      %v1882 = vld [vmem:[%s514 + $0xa8] sm:$0xff]
      %v1883 = vld [vmem:[%s514 + $0xb0] sm:$0xff]
      %v1884 = vld [vmem:[%s514 + $0xb8] sm:$0xff]
      %v1885 = vld [vmem:[%s514 + $0xc0] sm:$0xff]
      %v1886 = vld [vmem:[%s514 + $0xc8] sm:$0xff]
      %v1887 = vld [vmem:[%s514 + $0xd0] sm:$0xff]
      %v1888 = vld [vmem:[%s514 + $0xd8] sm:$0xff]
      %v1889 = vld [vmem:[%s514 + $0xe0] sm:$0xff]
      %v1890 = vld [vmem:[%s514 + $0xe8] sm:$0xff]
      %v1891 = vld [vmem:[%s514 + $0xf0] sm:$0xff]
      %v1892 = vld [vmem:[%s514 + $0xf8] sm:$0xff]
      %v1893 = vmax.f32 %v1829, %v1861
      %v1894 = vmax.f32 %v1830, %v1862
      %v1895 = vmax.f32 %v1831, %v1863
      %v1896 = vmax.f32 %v1832, %v1864
      %v1897 = vmax.f32 %v1833, %v1865
      %v1898 = vmax.f32 %v1834, %v1866
      %v1899 = vmax.f32 %v1835, %v1867
      %v1900 = vmax.f32 %v1836, %v1868
      %v1901 = vmax.f32 %v1837, %v1869
      %v1902 = vmax.f32 %v1838, %v1870
      %v1903 = vmax.f32 %v1839, %v1871
      %v1904 = vmax.f32 %v1840, %v1872
      %v1905 = vmax.f32 %v1841, %v1873
      %v1906 = vmax.f32 %v1842, %v1874
      %v1907 = vmax.f32 %v1843, %v1875
      %v1908 = vmax.f32 %v1844, %v1876
      %v1909 = vmax.f32 %v1845, %v1877
      %v1910 = vmax.f32 %v1846, %v1878
      %v1911 = vmax.f32 %v1847, %v1879
      %v1912 = vmax.f32 %v1848, %v1880
      %v1913 = vmax.f32 %v1849, %v1881
      %v1914 = vmax.f32 %v1850, %v1882
      %v1915 = vmax.f32 %v1851, %v1883
      %v1916 = vmax.f32 %v1852, %v1884
      %v1917 = vmax.f32 %v1853, %v1885
      %v1918 = vmax.f32 %v1854, %v1886
      %v1919 = vmax.f32 %v1855, %v1887
      %v1920 = vmax.f32 %v1856, %v1888
      %v1921 = vmax.f32 %v1857, %v1889
      %v1922 = vmax.f32 %v1858, %v1890
      %v1923 = vmax.f32 %v1859, %v1891
      %v1924 = vmax.f32 %v1860, %v1892
      %1925 = vst.msk [vmem:[#allocation3 + $0x2] sm:$0xff] %vm180, %v1893
      %1926 = vst.msk [vmem:[#allocation3 + $0xa] sm:$0xff] %vm180, %v1894
      %1927 = vst.msk [vmem:[#allocation3 + $0x1a] sm:$0xff] %vm180, %v1895
      %1928 = vst.msk [vmem:[#allocation3 + $0x22] sm:$0xff] %vm180, %v1896
      %1929 = vst.msk [vmem:[#allocation3 + $0x32] sm:$0xff] %vm180, %v1897
      %1930 = vst.msk [vmem:[#allocation3 + $0x3a] sm:$0xff] %vm180, %v1898
      %1931 = vst.msk [vmem:[#allocation3 + $0x4a] sm:$0xff] %vm180, %v1899
      %1932 = vst.msk [vmem:[#allocation3 + $0x52] sm:$0xff] %vm180, %v1900
      %1933 = vst.msk [vmem:[#allocation3 + $0x62] sm:$0xff] %vm180, %v1901
      %1934 = vst.msk [vmem:[#allocation3 + $0x6a] sm:$0xff] %vm180, %v1902
      %1935 = vst.msk [vmem:[#allocation3 + $0x7a] sm:$0xff] %vm180, %v1903
      %1936 = vst.msk [vmem:[#allocation3 + $0x82] sm:$0xff] %vm180, %v1904
      %1937 = vst.msk [vmem:[#allocation3 + $0x92] sm:$0xff] %vm180, %v1905
      %1938 = vst.msk [vmem:[#allocation3 + $0x9a] sm:$0xff] %vm180, %v1906
      %1939 = vst.msk [vmem:[#allocation3 + $0xaa] sm:$0xff] %vm180, %v1907
      %1940 = vst.msk [vmem:[#allocation3 + $0xb2] sm:$0xff] %vm180, %v1908
      %1941 = vst.msk [vmem:[#allocation3 + $0xc2] sm:$0xff] %vm180, %v1909
      %1942 = vst.msk [vmem:[#allocation3 + $0xca] sm:$0xff] %vm180, %v1910
      %1943 = vst.msk [vmem:[#allocation3 + $0xda] sm:$0xff] %vm180, %v1911
      %1944 = vst.msk [vmem:[#allocation3 + $0xe2] sm:$0xff] %vm180, %v1912
      %1945 = vst.msk [vmem:[#allocation3 + $0xf2] sm:$0xff] %vm180, %v1913
      %1946 = vst.msk [vmem:[#allocation3 + $0xfa] sm:$0xff] %vm180, %v1914
      %1947 = vst.msk [vmem:[#allocation3 + $0x10a] sm:$0xff] %vm180, %v1915
      %1948 = vst.msk [vmem:[#allocation3 + $0x112] sm:$0xff] %vm180, %v1916
      %1949 = vst.msk [vmem:[#allocation3 + $0x122] sm:$0xff] %vm180, %v1917
      %1950 = vst.msk [vmem:[#allocation3 + $0x12a] sm:$0xff] %vm180, %v1918
      %1951 = vst.msk [vmem:[#allocation3 + $0x13a] sm:$0xff] %vm180, %v1919
      %1952 = vst.msk [vmem:[#allocation3 + $0x142] sm:$0xff] %vm180, %v1920
      %1953 = vst.msk [vmem:[#allocation3 + $0x152] sm:$0xff] %vm180, %v1921
      %1954 = vst.msk [vmem:[#allocation3 + $0x15a] sm:$0xff] %vm180, %v1922
      %1955 = vst.msk [vmem:[#allocation3 + $0x16a] sm:$0xff] %vm180, %v1923
      %1956 = vst.msk [vmem:[#allocation3 + $0x172] sm:$0xff] %vm180, %v1924
      %v1957 = vld [vmem:[#allocation3] sm:$0xff]
      %v1958 = vld [vmem:[#allocation3 + $0x8] sm:$0xff]
      %v1959 = vld [vmem:[#allocation3 + $0x18] sm:$0xff]
      %v1960 = vld [vmem:[#allocation3 + $0x20] sm:$0xff]
      %v1961 = vld [vmem:[#allocation3 + $0x30] sm:$0xff]
      %v1962 = vld [vmem:[#allocation3 + $0x38] sm:$0xff]
      %v1963 = vld [vmem:[#allocation3 + $0x48] sm:$0xff]
      %v1964 = vld [vmem:[#allocation3 + $0x50] sm:$0xff]
      %v1965 = vld [vmem:[#allocation3 + $0x60] sm:$0xff]
      %v1966 = vld [vmem:[#allocation3 + $0x68] sm:$0xff]
      %v1967 = vld [vmem:[#allocation3 + $0x78] sm:$0xff]
      %v1968 = vld [vmem:[#allocation3 + $0x80] sm:$0xff]
      %v1969 = vld [vmem:[#allocation3 + $0x90] sm:$0xff]
      %v1970 = vld [vmem:[#allocation3 + $0x98] sm:$0xff]
      %v1971 = vld [vmem:[#allocation3 + $0xa8] sm:$0xff]
      %v1972 = vld [vmem:[#allocation3 + $0xb0] sm:$0xff]
      %v1973 = vld [vmem:[#allocation3 + $0xc0] sm:$0xff]
      %v1974 = vld [vmem:[#allocation3 + $0xc8] sm:$0xff]
      %v1975 = vld [vmem:[#allocation3 + $0xd8] sm:$0xff]
      %v1976 = vld [vmem:[#allocation3 + $0xe0] sm:$0xff]
      %v1977 = vld [vmem:[#allocation3 + $0xf0] sm:$0xff]
      %v1978 = vld [vmem:[#allocation3 + $0xf8] sm:$0xff]
      %v1979 = vld [vmem:[#allocation3 + $0x108] sm:$0xff]
      %v1980 = vld [vmem:[#allocation3 + $0x110] sm:$0xff]
      %v1981 = vld [vmem:[#allocation3 + $0x120] sm:$0xff]
      %v1982 = vld [vmem:[#allocation3 + $0x128] sm:$0xff]
      %v1983 = vld [vmem:[#allocation3 + $0x138] sm:$0xff]
      %v1984 = vld [vmem:[#allocation3 + $0x140] sm:$0xff]
      %v1985 = vld [vmem:[#allocation3 + $0x150] sm:$0xff]
      %v1986 = vld [vmem:[#allocation3 + $0x158] sm:$0xff]
      %v1987 = vld [vmem:[#allocation3 + $0x168] sm:$0xff]
      %v1988 = vld [vmem:[#allocation3 + $0x170] sm:$0xff]
      %v1989 = vld [vmem:[#allocation3 + $0x1] sm:$0xff]
      %v1990 = vld [vmem:[#allocation3 + $0x9] sm:$0xff]
      %v1991 = vld [vmem:[#allocation3 + $0x19] sm:$0xff]
      %v1992 = vld [vmem:[#allocation3 + $0x21] sm:$0xff]
      %v1993 = vld [vmem:[#allocation3 + $0x31] sm:$0xff]
      %v1994 = vld [vmem:[#allocation3 + $0x39] sm:$0xff]
      %v1995 = vld [vmem:[#allocation3 + $0x49] sm:$0xff]
      %v1996 = vld [vmem:[#allocation3 + $0x51] sm:$0xff]
      %v1997 = vld [vmem:[#allocation3 + $0x61] sm:$0xff]
      %v1998 = vld [vmem:[#allocation3 + $0x69] sm:$0xff]
      %v1999 = vld [vmem:[#allocation3 + $0x79] sm:$0xff]
      %v2000 = vld [vmem:[#allocation3 + $0x81] sm:$0xff]
      %v2001 = vld [vmem:[#allocation3 + $0x91] sm:$0xff]
      %v2002 = vld [vmem:[#allocation3 + $0x99] sm:$0xff]
      %v2003 = vld [vmem:[#allocation3 + $0xa9] sm:$0xff]
      %v2004 = vld [vmem:[#allocation3 + $0xb1] sm:$0xff]
      %v2005 = vld [vmem:[#allocation3 + $0xc1] sm:$0xff]
      %v2006 = vld [vmem:[#allocation3 + $0xc9] sm:$0xff]
      %v2007 = vld [vmem:[#allocation3 + $0xd9] sm:$0xff]
      %v2008 = vld [vmem:[#allocation3 + $0xe1] sm:$0xff]
      %v2009 = vld [vmem:[#allocation3 + $0xf1] sm:$0xff]
      %v2010 = vld [vmem:[#allocation3 + $0xf9] sm:$0xff]
      %v2011 = vld [vmem:[#allocation3 + $0x109] sm:$0xff]
      %v2012 = vld [vmem:[#allocation3 + $0x111] sm:$0xff]
      %v2013 = vld [vmem:[#allocation3 + $0x121] sm:$0xff]
      %v2014 = vld [vmem:[#allocation3 + $0x129] sm:$0xff]
      %v2015 = vld [vmem:[#allocation3 + $0x139] sm:$0xff]
      %v2016 = vld [vmem:[#allocation3 + $0x141] sm:$0xff]
      %v2017 = vld [vmem:[#allocation3 + $0x151] sm:$0xff]
      %v2018 = vld [vmem:[#allocation3 + $0x159] sm:$0xff]
      %v2019 = vld [vmem:[#allocation3 + $0x169] sm:$0xff]
      %v2020 = vld [vmem:[#allocation3 + $0x171] sm:$0xff]
      %v2021 = vmax.f32 %v1957, %v1989
      %v2022 = vmax.f32 %v1958, %v1990
      %v2023 = vmax.f32 %v1959, %v1991
      %v2024 = vmax.f32 %v1960, %v1992
      %v2025 = vmax.f32 %v1961, %v1993
      %v2026 = vmax.f32 %v1962, %v1994
      %v2027 = vmax.f32 %v1963, %v1995
      %v2028 = vmax.f32 %v1964, %v1996
      %v2029 = vmax.f32 %v1965, %v1997
      %v2030 = vmax.f32 %v1966, %v1998
      %v2031 = vmax.f32 %v1967, %v1999
      %v2032 = vmax.f32 %v1968, %v2000
      %v2033 = vmax.f32 %v1969, %v2001
      %v2034 = vmax.f32 %v1970, %v2002
      %v2035 = vmax.f32 %v1971, %v2003
      %v2036 = vmax.f32 %v1972, %v2004
      %v2037 = vmax.f32 %v1973, %v2005
      %v2038 = vmax.f32 %v1974, %v2006
      %v2039 = vmax.f32 %v1975, %v2007
      %v2040 = vmax.f32 %v1976, %v2008
      %v2041 = vmax.f32 %v1977, %v2009
      %v2042 = vmax.f32 %v1978, %v2010
      %v2043 = vmax.f32 %v1979, %v2011
      %v2044 = vmax.f32 %v1980, %v2012
      %v2045 = vmax.f32 %v1981, %v2013
      %v2046 = vmax.f32 %v1982, %v2014
      %v2047 = vmax.f32 %v1983, %v2015
      %v2048 = vmax.f32 %v1984, %v2016
      %v2049 = vmax.f32 %v1985, %v2017
      %v2050 = vmax.f32 %v1986, %v2018
      %v2051 = vmax.f32 %v1987, %v2019
      %v2052 = vmax.f32 %v1988, %v2020
      %v2053 = vld [vmem:[#allocation3 + $0x2] sm:$0xff]
      %v2054 = vld [vmem:[#allocation3 + $0xa] sm:$0xff]
      %v2055 = vld [vmem:[#allocation3 + $0x1a] sm:$0xff]
      %v2056 = vld [vmem:[#allocation3 + $0x22] sm:$0xff]
      %v2057 = vld [vmem:[#allocation3 + $0x32] sm:$0xff]
      %v2058 = vld [vmem:[#allocation3 + $0x3a] sm:$0xff]
      %v2059 = vld [vmem:[#allocation3 + $0x4a] sm:$0xff]
      %v2060 = vld [vmem:[#allocation3 + $0x52] sm:$0xff]
      %v2061 = vld [vmem:[#allocation3 + $0x62] sm:$0xff]
      %v2062 = vld [vmem:[#allocation3 + $0x6a] sm:$0xff]
      %v2063 = vld [vmem:[#allocation3 + $0x7a] sm:$0xff]
      %v2064 = vld [vmem:[#allocation3 + $0x82] sm:$0xff]
      %v2065 = vld [vmem:[#allocation3 + $0x92] sm:$0xff]
      %v2066 = vld [vmem:[#allocation3 + $0x9a] sm:$0xff]
      %v2067 = vld [vmem:[#allocation3 + $0xaa] sm:$0xff]
      %v2068 = vld [vmem:[#allocation3 + $0xb2] sm:$0xff]
      %v2069 = vld [vmem:[#allocation3 + $0xc2] sm:$0xff]
      %v2070 = vld [vmem:[#allocation3 + $0xca] sm:$0xff]
      %v2071 = vld [vmem:[#allocation3 + $0xda] sm:$0xff]
      %v2072 = vld [vmem:[#allocation3 + $0xe2] sm:$0xff]
      %v2073 = vld [vmem:[#allocation3 + $0xf2] sm:$0xff]
      %v2074 = vld [vmem:[#allocation3 + $0xfa] sm:$0xff]
      %v2075 = vld [vmem:[#allocation3 + $0x10a] sm:$0xff]
      %v2076 = vld [vmem:[#allocation3 + $0x112] sm:$0xff]
      %v2077 = vld [vmem:[#allocation3 + $0x122] sm:$0xff]
      %v2078 = vld [vmem:[#allocation3 + $0x12a] sm:$0xff]
      %v2079 = vld [vmem:[#allocation3 + $0x13a] sm:$0xff]
      %v2080 = vld [vmem:[#allocation3 + $0x142] sm:$0xff]
      %v2081 = vld [vmem:[#allocation3 + $0x152] sm:$0xff]
      %v2082 = vld [vmem:[#allocation3 + $0x15a] sm:$0xff]
      %v2083 = vld [vmem:[#allocation3 + $0x16a] sm:$0xff]
      %v2084 = vld [vmem:[#allocation3 + $0x172] sm:$0xff]
      %v2085 = vmax.f32 %v2021, %v2053
      %v2086 = vmax.f32 %v2022, %v2054
      %v2087 = vmax.f32 %v2023, %v2055
      %v2088 = vmax.f32 %v2024, %v2056
      %v2089 = vmax.f32 %v2025, %v2057
      %v2090 = vmax.f32 %v2026, %v2058
      %v2091 = vmax.f32 %v2027, %v2059
      %v2092 = vmax.f32 %v2028, %v2060
      %v2093 = vmax.f32 %v2029, %v2061
      %v2094 = vmax.f32 %v2030, %v2062
      %v2095 = vmax.f32 %v2031, %v2063
      %v2096 = vmax.f32 %v2032, %v2064
      %v2097 = vmax.f32 %v2033, %v2065
      %v2098 = vmax.f32 %v2034, %v2066
      %v2099 = vmax.f32 %v2035, %v2067
      %v2100 = vmax.f32 %v2036, %v2068
      %v2101 = vmax.f32 %v2037, %v2069
      %v2102 = vmax.f32 %v2038, %v2070
      %v2103 = vmax.f32 %v2039, %v2071
      %v2104 = vmax.f32 %v2040, %v2072
      %v2105 = vmax.f32 %v2041, %v2073
      %v2106 = vmax.f32 %v2042, %v2074
      %v2107 = vmax.f32 %v2043, %v2075
      %v2108 = vmax.f32 %v2044, %v2076
      %v2109 = vmax.f32 %v2045, %v2077
      %v2110 = vmax.f32 %v2046, %v2078
      %v2111 = vmax.f32 %v2047, %v2079
      %v2112 = vmax.f32 %v2048, %v2080
      %v2113 = vmax.f32 %v2049, %v2081
      %v2114 = vmax.f32 %v2050, %v2082
      %v2115 = vmax.f32 %v2051, %v2083
      %v2116 = vmax.f32 %v2052, %v2084
      %v2117 = vld [vmem:[#allocation3 + $0x3] sm:$0xff]
      %v2118 = vld [vmem:[#allocation3 + $0xb] sm:$0xff]
      %v2119 = vld [vmem:[#allocation3 + $0x1b] sm:$0xff]
      %v2120 = vld [vmem:[#allocation3 + $0x23] sm:$0xff]
      %v2121 = vld [vmem:[#allocation3 + $0x33] sm:$0xff]
      %v2122 = vld [vmem:[#allocation3 + $0x3b] sm:$0xff]
      %v2123 = vld [vmem:[#allocation3 + $0x4b] sm:$0xff]
      %v2124 = vld [vmem:[#allocation3 + $0x53] sm:$0xff]
      %v2125 = vld [vmem:[#allocation3 + $0x63] sm:$0xff]
      %v2126 = vld [vmem:[#allocation3 + $0x6b] sm:$0xff]
      %v2127 = vld [vmem:[#allocation3 + $0x7b] sm:$0xff]
      %v2128 = vld [vmem:[#allocation3 + $0x83] sm:$0xff]
      %v2129 = vld [vmem:[#allocation3 + $0x93] sm:$0xff]
      %v2130 = vld [vmem:[#allocation3 + $0x9b] sm:$0xff]
      %v2131 = vld [vmem:[#allocation3 + $0xab] sm:$0xff]
      %v2132 = vld [vmem:[#allocation3 + $0xb3] sm:$0xff]
      %v2133 = vld [vmem:[#allocation3 + $0xc3] sm:$0xff]
      %v2134 = vld [vmem:[#allocation3 + $0xcb] sm:$0xff]
      %v2135 = vld [vmem:[#allocation3 + $0xdb] sm:$0xff]
      %v2136 = vld [vmem:[#allocation3 + $0xe3] sm:$0xff]
      %v2137 = vld [vmem:[#allocation3 + $0xf3] sm:$0xff]
      %v2138 = vld [vmem:[#allocation3 + $0xfb] sm:$0xff]
      %v2139 = vld [vmem:[#allocation3 + $0x10b] sm:$0xff]
      %v2140 = vld [vmem:[#allocation3 + $0x113] sm:$0xff]
      %v2141 = vld [vmem:[#allocation3 + $0x123] sm:$0xff]
      %v2142 = vld [vmem:[#allocation3 + $0x12b] sm:$0xff]
      %v2143 = vld [vmem:[#allocation3 + $0x13b] sm:$0xff]
      %v2144 = vld [vmem:[#allocation3 + $0x143] sm:$0xff]
      %v2145 = vld [vmem:[#allocation3 + $0x153] sm:$0xff]
      %v2146 = vld [vmem:[#allocation3 + $0x15b] sm:$0xff]
      %v2147 = vld [vmem:[#allocation3 + $0x16b] sm:$0xff]
      %v2148 = vld [vmem:[#allocation3 + $0x173] sm:$0xff]
      %v2149 = vmax.f32 %v2085, %v2117
      %v2150 = vmax.f32 %v2086, %v2118
      %v2151 = vmax.f32 %v2087, %v2119
      %v2152 = vmax.f32 %v2088, %v2120
      %v2153 = vmax.f32 %v2089, %v2121
      %v2154 = vmax.f32 %v2090, %v2122
      %v2155 = vmax.f32 %v2091, %v2123
      %v2156 = vmax.f32 %v2092, %v2124
      %v2157 = vmax.f32 %v2093, %v2125
      %v2158 = vmax.f32 %v2094, %v2126
      %v2159 = vmax.f32 %v2095, %v2127
      %v2160 = vmax.f32 %v2096, %v2128
      %v2161 = vmax.f32 %v2097, %v2129
      %v2162 = vmax.f32 %v2098, %v2130
      %v2163 = vmax.f32 %v2099, %v2131
      %v2164 = vmax.f32 %v2100, %v2132
      %v2165 = vmax.f32 %v2101, %v2133
      %v2166 = vmax.f32 %v2102, %v2134
      %v2167 = vmax.f32 %v2103, %v2135
      %v2168 = vmax.f32 %v2104, %v2136
      %v2169 = vmax.f32 %v2105, %v2137
      %v2170 = vmax.f32 %v2106, %v2138
      %v2171 = vmax.f32 %v2107, %v2139
      %v2172 = vmax.f32 %v2108, %v2140
      %v2173 = vmax.f32 %v2109, %v2141
      %v2174 = vmax.f32 %v2110, %v2142
      %v2175 = vmax.f32 %v2111, %v2143
      %v2176 = vmax.f32 %v2112, %v2144
      %v2177 = vmax.f32 %v2113, %v2145
      %v2178 = vmax.f32 %v2114, %v2146
      %v2179 = vmax.f32 %v2115, %v2147
      %v2180 = vmax.f32 %v2116, %v2148
      %v2181 = vld [vmem:[#allocation3 + $0x4] sm:$0xff]
      %v2182 = vld [vmem:[#allocation3 + $0xc] sm:$0xff]
      %v2183 = vld [vmem:[#allocation3 + $0x1c] sm:$0xff]
      %v2184 = vld [vmem:[#allocation3 + $0x24] sm:$0xff]
      %v2185 = vld [vmem:[#allocation3 + $0x34] sm:$0xff]
      %v2186 = vld [vmem:[#allocation3 + $0x3c] sm:$0xff]
      %v2187 = vld [vmem:[#allocation3 + $0x4c] sm:$0xff]
      %v2188 = vld [vmem:[#allocation3 + $0x54] sm:$0xff]
      %v2189 = vld [vmem:[#allocation3 + $0x64] sm:$0xff]
      %v2190 = vld [vmem:[#allocation3 + $0x6c] sm:$0xff]
      %v2191 = vld [vmem:[#allocation3 + $0x7c] sm:$0xff]
      %v2192 = vld [vmem:[#allocation3 + $0x84] sm:$0xff]
      %v2193 = vld [vmem:[#allocation3 + $0x94] sm:$0xff]
      %v2194 = vld [vmem:[#allocation3 + $0x9c] sm:$0xff]
      %v2195 = vld [vmem:[#allocation3 + $0xac] sm:$0xff]
      %v2196 = vld [vmem:[#allocation3 + $0xb4] sm:$0xff]
      %v2197 = vld [vmem:[#allocation3 + $0xc4] sm:$0xff]
      %v2198 = vld [vmem:[#allocation3 + $0xcc] sm:$0xff]
      %v2199 = vld [vmem:[#allocation3 + $0xdc] sm:$0xff]
      %v2200 = vld [vmem:[#allocation3 + $0xe4] sm:$0xff]
      %v2201 = vld [vmem:[#allocation3 + $0xf4] sm:$0xff]
      %v2202 = vld [vmem:[#allocation3 + $0xfc] sm:$0xff]
      %v2203 = vld [vmem:[#allocation3 + $0x10c] sm:$0xff]
      %v2204 = vld [vmem:[#allocation3 + $0x114] sm:$0xff]
      %v2205 = vld [vmem:[#allocation3 + $0x124] sm:$0xff]
      %v2206 = vld [vmem:[#allocation3 + $0x12c] sm:$0xff]
      %v2207 = vld [vmem:[#allocation3 + $0x13c] sm:$0xff]
      %v2208 = vld [vmem:[#allocation3 + $0x144] sm:$0xff]
      %v2209 = vld [vmem:[#allocation3 + $0x154] sm:$0xff]
      %v2210 = vld [vmem:[#allocation3 + $0x15c] sm:$0xff]
      %v2211 = vld [vmem:[#allocation3 + $0x16c] sm:$0xff]
      %v2212 = vld [vmem:[#allocation3 + $0x174] sm:$0xff]
      %v2213 = vmax.f32 %v2149, %v2181
      %v2214 = vmax.f32 %v2150, %v2182
      %v2215 = vmax.f32 %v2151, %v2183
      %v2216 = vmax.f32 %v2152, %v2184
      %v2217 = vmax.f32 %v2153, %v2185
      %v2218 = vmax.f32 %v2154, %v2186
      %v2219 = vmax.f32 %v2155, %v2187
      %v2220 = vmax.f32 %v2156, %v2188
      %v2221 = vmax.f32 %v2157, %v2189
      %v2222 = vmax.f32 %v2158, %v2190
      %v2223 = vmax.f32 %v2159, %v2191
      %v2224 = vmax.f32 %v2160, %v2192
      %v2225 = vmax.f32 %v2161, %v2193
      %v2226 = vmax.f32 %v2162, %v2194
      %v2227 = vmax.f32 %v2163, %v2195
      %v2228 = vmax.f32 %v2164, %v2196
      %v2229 = vmax.f32 %v2165, %v2197
      %v2230 = vmax.f32 %v2166, %v2198
      %v2231 = vmax.f32 %v2167, %v2199
      %v2232 = vmax.f32 %v2168, %v2200
      %v2233 = vmax.f32 %v2169, %v2201
      %v2234 = vmax.f32 %v2170, %v2202
      %v2235 = vmax.f32 %v2171, %v2203
      %v2236 = vmax.f32 %v2172, %v2204
      %v2237 = vmax.f32 %v2173, %v2205
      %v2238 = vmax.f32 %v2174, %v2206
      %v2239 = vmax.f32 %v2175, %v2207
      %v2240 = vmax.f32 %v2176, %v2208
      %v2241 = vmax.f32 %v2177, %v2209
      %v2242 = vmax.f32 %v2178, %v2210
      %v2243 = vmax.f32 %v2179, %v2211
      %v2244 = vmax.f32 %v2180, %v2212
      %s2245 = scalar_lea.vmem %s147, 768
      %2246 = vst.msk [vmem:[%s2245] sm:$0xff] %vm180, %v2213
      %2247 = vst.msk [vmem:[%s2245 + $0x8] sm:$0xff] %vm180, %v2214
      %2248 = vst.msk [vmem:[%s2245 + $0x10] sm:$0xff] %vm180, %v2215
      %2249 = vst.msk [vmem:[%s2245 + $0x18] sm:$0xff] %vm180, %v2216
      %2250 = vst.msk [vmem:[%s2245 + $0x20] sm:$0xff] %vm180, %v2217
      %2251 = vst.msk [vmem:[%s2245 + $0x28] sm:$0xff] %vm180, %v2218
      %2252 = vst.msk [vmem:[%s2245 + $0x30] sm:$0xff] %vm180, %v2219
      %2253 = vst.msk [vmem:[%s2245 + $0x38] sm:$0xff] %vm180, %v2220
      %2254 = vst.msk [vmem:[%s2245 + $0x40] sm:$0xff] %vm180, %v2221
      %2255 = vst.msk [vmem:[%s2245 + $0x48] sm:$0xff] %vm180, %v2222
      %2256 = vst.msk [vmem:[%s2245 + $0x50] sm:$0xff] %vm180, %v2223
      %2257 = vst.msk [vmem:[%s2245 + $0x58] sm:$0xff] %vm180, %v2224
      %2258 = vst.msk [vmem:[%s2245 + $0x60] sm:$0xff] %vm180, %v2225
      %2259 = vst.msk [vmem:[%s2245 + $0x68] sm:$0xff] %vm180, %v2226
      %2260 = vst.msk [vmem:[%s2245 + $0x70] sm:$0xff] %vm180, %v2227
      %2261 = vst.msk [vmem:[%s2245 + $0x78] sm:$0xff] %vm180, %v2228
      %2262 = vst.msk [vmem:[%s2245 + $0x80] sm:$0xff] %vm180, %v2229
      %2263 = vst.msk [vmem:[%s2245 + $0x88] sm:$0xff] %vm180, %v2230
      %2264 = vst.msk [vmem:[%s2245 + $0x90] sm:$0xff] %vm180, %v2231
      %2265 = vst.msk [vmem:[%s2245 + $0x98] sm:$0xff] %vm180, %v2232
      %2266 = vst.msk [vmem:[%s2245 + $0xa0] sm:$0xff] %vm180, %v2233
      %2267 = vst.msk [vmem:[%s2245 + $0xa8] sm:$0xff] %vm180, %v2234
      %2268 = vst.msk [vmem:[%s2245 + $0xb0] sm:$0xff] %vm180, %v2235
      %2269 = vst.msk [vmem:[%s2245 + $0xb8] sm:$0xff] %vm180, %v2236
      %2270 = vst.msk [vmem:[%s2245 + $0xc0] sm:$0xff] %vm180, %v2237
      %2271 = vst.msk [vmem:[%s2245 + $0xc8] sm:$0xff] %vm180, %v2238
      %2272 = vst.msk [vmem:[%s2245 + $0xd0] sm:$0xff] %vm180, %v2239
      %2273 = vst.msk [vmem:[%s2245 + $0xd8] sm:$0xff] %vm180, %v2240
      %2274 = vst.msk [vmem:[%s2245 + $0xe0] sm:$0xff] %vm180, %v2241
      %2275 = vst.msk [vmem:[%s2245 + $0xe8] sm:$0xff] %vm180, %v2242
      %2276 = vst.msk [vmem:[%s2245 + $0xf0] sm:$0xff] %vm180, %v2243
      %2277 = vst.msk [vmem:[%s2245 + $0xf8] sm:$0xff] %vm180, %v2244
      %p2278 = scmp.lt.s32.totalorder %s16, 1
      %s2279 = scalar_select %p2278, %s16, 1
      %p2280 = scmp.lt.s32.totalorder %s17, 0
      %s2281 = scalar_select %p2280, %s17, 0
      %s2282 = smul.addr %s2279, 128
      %s2283 = sadd.s32 %s2281, %s2282
      %s2284 = smul.addr %s2283, 8
      %s2285 = scalar_lea.vmem %s1, %s2284
      // Predicated region
      $region25: #{spp.1} parent=23 // pred_check
        %p2286 = pneg %p72
      $region26: #{spp.1} parent=23 // pred_check_branch
        %2288 = sbr.rel (%p2286) target = $region28
      $region27: #{spp.1} parent=23 // pred_region
        _
      $region28: #{spp.1} parent=23 // pred_fallthru
        _
    $region24: #{spp.1} parent=5 // pred_fallthru
      _
    %p2289 = scmp.le.s32.totalorder 2, %s7
    // Predicated region
    $region29: #{spp.1} parent=5 // pred_check
      %p2290 = pneg %p2289
    $region30: #{spp.1} parent=5 // pred_check_branch
      %2292 = sbr.rel (%p2290) target = $region32
    $region31: #{spp.1} parent=5 // pred_region
      %s2293 = ssub.s32 %s7, 2
      // Predicated region
      $region33: #{spp.1} parent=31 // pred_check
        %p2294 = pneg %p78
      $region34: #{spp.1} parent=31 // pred_check_branch
        %2296 = sbr.rel (%p2294) target = $region36
      $region35: #{spp.1} parent=31 // pred_region
        %p2297 = scmp.lt.s32.totalorder %s18, 1
        %s2298 = scalar_select %p2297, %s18, 1
        %p2299 = scmp.lt.s32.totalorder %s19, 0
        %s2300 = scalar_select %p2299, %s19, 0
        %s2301 = smul.addr %s2298, 128
        %s2302 = sadd.s32 %s2300, %s2301
        %s2303 = smul.addr %s2302, 8
        %s2304 = scalar_lea.vmem %s1, %s2303
      $region36: #{spp.1} parent=31 // pred_fallthru
        _
    $region32: #{spp.1} parent=5 // pred_fallthru
      _
  $region6: #{spp.1} parent=0 // loop_footer
    %s11 = sadd.s32 1, %s7
  $region7: #{spp.1} parent=0 // loop_footer_branch
    %6 = sbr.rel target = $region3
  $region8: #{spp.1} parent=0 // loop_exit
    _

</llo_original>
